<compile_context>
chip_gen: v7x
topology: tpu7x:2x2x1
jax: 0.10.0
libtpu: 0.0.40
codegen_flags: <defaults>
</compile_context>

<pallas_src>
import functools

import jax
import jax.numpy as jnp
from jax.experimental import pallas as pl
from jax.experimental.pallas import tpu as pltpu


# --------------------------------------------------------------------------------------
# helpers
# --------------------------------------------------------------------------------------
_NEG_INF = -1e30


def _round_up(x, m):
    return ((x + m - 1) // m) * m


def _vmem_limit_bytes():
    """Scoped-VMEM budget sized per chip generation (v5e/v6e: 128 MiB, v7x: 64 MiB/TC)."""
    try:
        cap = pltpu.get_tpu_info().vmem_capacity_bytes
        return int(cap * 3 // 4)            # leave headroom for Mosaic internals
    except Exception:
        return 48 << 20                      # conservative: fits every generation


def _big_vmem():
    """True on 128 MiB-VMEM chips (v5e/v6e) -> larger default tiles."""
    try:
        return pltpu.get_tpu_info().vmem_capacity_bytes >= (100 << 20)
    except Exception:
        return False


def _silu(x):
    return x * jax.nn.sigmoid(x)


# --------------------------------------------------------------------------------------
# RMSNorm kernel (input_layernorm / post_attention_layernorm)
# --------------------------------------------------------------------------------------
def _rmsnorm_kernel(x_ref, w_ref, o_ref, *, eps):
    x = x_ref[...].astype(jnp.float32)
    var = jnp.mean(x * x, axis=-1, keepdims=True)
    xn = x * jax.lax.rsqrt(var + eps)
    # torch: weight * normalized.to(input_dtype)
    o_ref[...] = (w_ref[...] * xn.astype(x_ref.dtype)).astype(o_ref.dtype)


def rmsnorm(x2d, w, *, eps, tm=None):
    """x2d: [T, D], w: [D] -> [T, D]."""
    T, D = x2d.shape
    if tm is None:
        tm = 1024 if _big_vmem() else 256
    tm = min(tm, _round_up(T, 8))
    w2d = w.reshape(1, D)
    return pl.pallas_call(
        functools.partial(_rmsnorm_kernel, eps=eps),
        out_shape=jax.ShapeDtypeStruct((T, D), x2d.dtype),
        grid_spec=pltpu.PrefetchScalarGridSpec(
            num_scalar_prefetch=0,
            grid=(pl.cdiv(T, tm),),
            in_specs=[
                pl.BlockSpec((tm, D), lambda i: (i, 0)),
                pl.BlockSpec((1, D), lambda i: (0, 0)),
            ],
            out_specs=pl.BlockSpec((tm, D), lambda i: (i, 0)),
        ),
        compiler_params=pltpu.CompilerParams(
            dimension_semantics=("parallel",),
            vmem_limit_bytes=_vmem_limit_bytes(),
        ),
    )(x2d, w2d)


# --------------------------------------------------------------------------------------
# Tiled matmul kernel (fused QKV projection, o projection) with optional residual fuse
# --------------------------------------------------------------------------------------
def _matmul_kernel(*refs, mxu_dtype, has_res):
    if has_res:
        a_ref, b_ref, res_ref, o_ref, acc_ref = refs
    else:
        a_ref, b_ref, o_ref, acc_ref = refs
        res_ref = None

    k = pl.program_id(2)

    @pl.when(k == 0)
    def _():
        acc_ref[...] = jnp.zeros_like(acc_ref)

    a = a_ref[...]
    b = b_ref[...]
    if mxu_dtype is not None:           # e.g. bf16 operands for the MXU, f32 accumulate
        a = a.astype(mxu_dtype)
        b = b.astype(mxu_dtype)
    acc_ref[...] += jnp.dot(a, b, preferred_element_type=jnp.float32)

    @pl.when(k == pl.num_programs(2) - 1)
    def _():
        out = acc_ref[...]
        if has_res:                      # residual add fused into the epilogue
            out = out + res_ref[...].astype(jnp.float32)
        o_ref[...] = out.astype(o_ref.dtype)


def linear(x2d, w, *, residual=None, tm=256, tn=None, tk=None, mxu_dtype=None):
    """x2d: [M, K], w: [K, N] (transposed vs torch Linear, no bias) -> [M, N] (+residual)."""
    M, K = x2d.shape
    K2, N = w.shape
    assert K == K2
    big = _big_vmem()
    if tn is None:
        tn = 512 if big else 256
    if tk is None:
        tk = 1024 if big else 512

    tm = min(tm, _round_up(M, 8))
    tn = min(tn, N)
    if N % tn:
        tn = N                           # small / odd N: single N tile
    tk = min(tk, K)
    if K % tk:                           # zero-pad the contraction axis (no in-kernel mask)
        pad = _round_up(K, tk) - K
        x2d = jnp.pad(x2d, ((0, 0), (0, pad)))
        w = jnp.pad(w, ((0, pad), (0, 0)))
        K += pad

    has_res = residual is not None
    in_specs = [
        pl.BlockSpec((tm, tk), lambda i, j, k: (i, k)),
        pl.BlockSpec((tk, tn), lambda i, j, k: (k, j)),
    ]
    operands = [x2d, w]
    if has_res:
        in_specs.append(pl.BlockSpec((tm, tn), lambda i, j, k: (i, j)))
        operands.append(residual)

    try:
        cost = pl.CostEstimate(
            flops=2 * M * K * N,
            transcendentals=0,
            bytes_accessed=(M * K + K * N + M * N) * x2d.dtype.itemsize,
        )
    except Exception:
        cost = None

    return pl.pallas_call(
        functools.partial(_matmul_kernel, mxu_dtype=mxu_dtype, has_res=has_res),
        out_shape=jax.ShapeDtypeStruct((M, N), x2d.dtype),
        grid_spec=pltpu.PrefetchScalarGridSpec(
            num_scalar_prefetch=0,
            grid=(pl.cdiv(M, tm), pl.cdiv(N, tn), pl.cdiv(K, tk)),
            in_specs=in_specs,
            out_specs=pl.BlockSpec((tm, tn), lambda i, j, k: (i, j)),
            scratch_shapes=[pltpu.VMEM((tm, tn), jnp.float32)],
        ),
        compiler_params=pltpu.CompilerParams(
            dimension_semantics=("parallel", "parallel", "arbitrary"),
            vmem_limit_bytes=_vmem_limit_bytes(),
        ),
        cost_estimate=cost,
    )(*operands)


# --------------------------------------------------------------------------------------
# Fused per-head q/k RMSNorm + RoPE kernel
# --------------------------------------------------------------------------------------
def _qk_norm_rope_kernel(q_ref, k_ref, cos_ref, sin_ref, qw_ref, kw_ref,
                         qo_ref, ko_ref, *, eps):
    cos = cos_ref[...][:, None, :]            # (tm, 1, dh), broadcast over heads
    sin = sin_ref[...][:, None, :]

    def norm_rope(x_ref, w_ref, o_ref):
        x = x_ref[...].astype(jnp.float32)    # (tm, n_heads, dh)
        var = jnp.mean(x * x, axis=-1, keepdims=True)
        xn = (x * jax.lax.rsqrt(var + eps)).astype(x_ref.dtype)
        xn = w_ref[...] * xn                  # per-head norm weight (1, 1, dh)
        dh = xn.shape[-1]
        half = dh // 2
        if dh >= 128 and dh % 128 == 0:
            # rotate_half via an XLU lane rotation (overlaps with VPU work for free)
            rolled = pltpu.roll(xn, shift=half, axis=-1)
            lane = jax.lax.broadcasted_iota(jnp.int32, xn.shape, xn.ndim - 1)
            rot = jnp.where(lane < half, -rolled, rolled)
        else:
            # small head_dim fallback (test shapes): sliced concat
            rot = jnp.concatenate([-xn[..., half:], xn[..., :half]], axis=-1)
        o_ref[...] = (xn * cos + rot * sin).astype(o_ref.dtype)

    norm_rope(q_ref, qw_ref, qo_ref)
    norm_rope(k_ref, kw_ref, ko_ref)


def qk_norm_rope(q3, k3, cos2d, sin2d, qw, kw, *, eps, tm=None):
    """q3: [T, nH, dh], k3: [T, nKV, dh], cos/sin: [T, dh] -> (q_rope, k_rope)."""
    T, nH, dh = q3.shape
    nKV = k3.shape[1]
    if tm is None:
        tm = 1024 if _big_vmem() else 256
    tm = min(tm, _round_up(T, 8))
    qw3 = qw.reshape(1, 1, dh)
    kw3 = kw.reshape(1, 1, dh)
    return pl.pallas_call(
        functools.partial(_qk_norm_rope_kernel, eps=eps),
        out_shape=(jax.ShapeDtypeStruct((T, nH, dh), q3.dtype),
                   jax.ShapeDtypeStruct((T, nKV, dh), k3.dtype)),
        grid_spec=pltpu.PrefetchScalarGridSpec(
            num_scalar_prefetch=0,
            grid=(pl.cdiv(T, tm),),
            in_specs=[
                pl.BlockSpec((tm, nH, dh), lambda i: (i, 0, 0)),
                pl.BlockSpec((tm, nKV, dh), lambda i: (i, 0, 0)),
                pl.BlockSpec((tm, dh), lambda i: (i, 0)),
                pl.BlockSpec((tm, dh), lambda i: (i, 0)),
                pl.BlockSpec((1, 1, dh), lambda i: (0, 0, 0)),
                pl.BlockSpec((1, 1, dh), lambda i: (0, 0, 0)),
            ],
            out_specs=[
                pl.BlockSpec((tm, nH, dh), lambda i: (i, 0, 0)),
                pl.BlockSpec((tm, nKV, dh), lambda i: (i, 0, 0)),
            ],
        ),
        compiler_params=pltpu.CompilerParams(
            dimension_semantics=("parallel",),
            vmem_limit_bytes=_vmem_limit_bytes(),
        ),
    )(q3, k3, cos2d, sin2d, qw3, kw3)


# --------------------------------------------------------------------------------------
# Flash-style causal GQA attention kernel
# --------------------------------------------------------------------------------------
def _flash_attn_kernel(q_ref, k_ref, v_ref, o_ref, m_sc, l_sc, acc_sc, *,
                       scaling, tq, tk):
    qi = pl.program_id(2)
    ki = pl.program_id(3)

    @pl.when(ki == 0)
    def _():
        m_sc[...] = jnp.full_like(m_sc, -jnp.inf)
        l_sc[...] = jnp.zeros_like(l_sc)
        acc_sc[...] = jnp.zeros_like(acc_sc)

    # Skip KV tiles strictly above the causal diagonal (saves ~half the score FLOPs).
    @pl.when(ki * tk <= qi * tq + (tq - 1))
    def _():
        q = q_ref[...]                                   # (n_rep, tq, dh)
        k = k_ref[...]                                   # (tk, dh) - shared by n_rep heads
        v = v_ref[...]                                   # (tk, dh)
        n_rep = q.shape[0]
        kb = jnp.broadcast_to(k[None], (n_rep,) + k.shape)
        vb = jnp.broadcast_to(v[None], (n_rep,) + v.shape)
        # operands stay in their stored dtype (bf16 in production); f32 accumulation
        s = jnp.einsum("hqd,hkd->hqk", q, kb,
                       preferred_element_type=jnp.float32) * scaling
        row = jax.lax.broadcasted_iota(jnp.int32, s.shape, 1) + qi * tq
        col = jax.lax.broadcasted_iota(jnp.int32, s.shape, 2) + ki * tk
        s = jnp.where(col <= row, s, _NEG_INF)           # causal mask
        m_prev = m_sc[...]
        m_new = jnp.maximum(m_prev, jnp.max(s, axis=-1, keepdims=True))
        alpha = jnp.exp(m_prev - m_new)
        p = jnp.exp(s - m_new)
        l_sc[...] = alpha * l_sc[...] + jnp.sum(p, axis=-1, keepdims=True)
        acc_sc[...] = alpha * acc_sc[...] + jnp.einsum(
            "hqk,hkd->hqd", p.astype(v.dtype), vb,
            preferred_element_type=jnp.float32)
        m_sc[...] = m_new

    @pl.when(ki == pl.num_programs(3) - 1)
    def _():
        inv_l = pl.reciprocal(l_sc[...], approx=False)
        o_ref[...] = (acc_sc[...] * inv_l).astype(o_ref.dtype)


def flash_attention(q, k, v, *, scaling, tq=128, tk=128):
    """q: [B, nKV, n_rep, S, dh], k/v: [B, nKV, S, dh] -> [B, nKV, n_rep, S, dh]."""
    B, nKV, n_rep, S, dh = q.shape
    tq = min(tq, S)
    tk = min(tk, S)
    if S % tq:
        tq = S      # TODO(synk): pad S for ragged sequence lengths / partial tiles
    if S % tk:
        tk = S

    nH = nKV * n_rep
    try:
        cost = pl.CostEstimate(
            flops=4 * B * nH * S * S * dh,
            transcendentals=B * nH * S * S,
            bytes_accessed=(2 * q.size + k.size + v.size) * q.dtype.itemsize,
        )
    except Exception:
        cost = None

    return pl.pallas_call(
        functools.partial(_flash_attn_kernel, scaling=scaling, tq=tq, tk=tk),
        out_shape=jax.ShapeDtypeStruct(q.shape, q.dtype),
        grid_spec=pltpu.PrefetchScalarGridSpec(
            num_scalar_prefetch=0,
            grid=(B, nKV, S // tq, S // tk),
            in_specs=[
                pl.BlockSpec((None, None, n_rep, tq, dh),
                             lambda b, g, i, j: (b, g, 0, i, 0)),
                pl.BlockSpec((None, None, tk, dh),
                             lambda b, g, i, j: (b, g, j, 0)),
                pl.BlockSpec((None, None, tk, dh),
                             lambda b, g, i, j: (b, g, j, 0)),
            ],
            out_specs=pl.BlockSpec((None, None, n_rep, tq, dh),
                                   lambda b, g, i, j: (b, g, 0, i, 0)),
            scratch_shapes=[
                pltpu.VMEM((n_rep, tq, 1), jnp.float32),
                pltpu.VMEM((n_rep, tq, 1), jnp.float32),
                pltpu.VMEM((n_rep, tq, dh), jnp.float32),
            ],
        ),
        compiler_params=pltpu.CompilerParams(
            dimension_semantics=("parallel", "parallel", "parallel", "arbitrary"),
            vmem_limit_bytes=_vmem_limit_bytes(),
        ),
        cost_estimate=cost,
    )(q, k, v)


# --------------------------------------------------------------------------------------
# SwiGLU MLP kernel: down( silu(gate(x)) * up(x) ), intermediate axis tiled + reduced,
# residual add fused into the finalize.
# --------------------------------------------------------------------------------------
def _mlp_kernel(*refs, mxu_dtype, has_res):
    if has_res:
        x_ref, wg_ref, wu_ref, wd_ref, res_ref, o_ref, acc_ref = refs
    else:
        x_ref, wg_ref, wu_ref, wd_ref, o_ref, acc_ref = refs
        res_ref = None

    k = pl.program_id(1)

    @pl.when(k == 0)
    def _():
        acc_ref[...] = jnp.zeros_like(acc_ref)

    x = x_ref[...]
    wg = wg_ref[...]
    wu = wu_ref[...]
    wd = wd_ref[...]
    if mxu_dtype is not None:       # bf16 MXU operands, f32 accumulation
        x = x.astype(mxu_dtype)
        wg = wg.astype(mxu_dtype)
        wu = wu.astype(mxu_dtype)
        wd = wd.astype(mxu_dtype)

    gate = jnp.dot(x, wg, preferred_element_type=jnp.float32)   # [tm, ti]
    up = jnp.dot(x, wu, preferred_element_type=jnp.float32)     # [tm, ti]
    h = _silu(gate) * up                                        # f32
    acc_ref[...] += jnp.dot(h.astype(wd.dtype), wd, preferred_element_type=jnp.float32)

    @pl.when(k == pl.num_programs(1) - 1)
    def _():
        out = acc_ref[...]
        if has_res:
            out = out + res_ref[...].astype(jnp.float32)
        o_ref[...] = out.astype(o_ref.dtype)


def dolly_mlp(x2d, wg, wu, wd, *, residual=None, tm=256, ti=None, mxu_dtype=None):
    """x2d: [T, H], wg/wu: [H, I], wd: [I, H] -> [T, H] (+residual)."""
    T, H = x2d.shape
    I = wg.shape[1]
    dtype_bytes = jnp.dtype(wg.dtype).itemsize

    if ti is None:
        ti = 1024 if _big_vmem() else 512
    # v7x-aware: cap ti so the 3 double-buffered weight chunks fit the scoped budget.
    budget = _vmem_limit_bytes() // 2
    cap = budget // max(1, 6 * H * dtype_bytes)
    cap = max(256, (cap // 256) * 256)
    ti = min(ti, cap, I) if I >= 256 else min(ti, I)
    if I % ti:   # zero-pad the intermediate axis; silu(0)*0 @ 0 contributes nothing
        pad = _round_up(I, ti) - I
        wg = jnp.pad(wg, ((0, 0), (0, pad)))
        wu = jnp.pad(wu, ((0, 0), (0, pad)))
        wd = jnp.pad(wd, ((0, pad), (0, 0)))
        I += pad

    tm = min(tm, _round_up(T, 8))
    has_res = residual is not None

    in_specs = [
        pl.BlockSpec((tm, H), lambda i, k: (i, 0)),   # x tile, resident across I
        pl.BlockSpec((H, ti), lambda i, k: (0, k)),   # gate_proj chunk
        pl.BlockSpec((H, ti), lambda i, k: (0, k)),   # up_proj chunk
        pl.BlockSpec((ti, H), lambda i, k: (k, 0)),   # down_proj chunk
    ]
    operands = [x2d, wg, wu, wd]
    if has_res:
        in_specs.append(pl.BlockSpec((tm, H), lambda i, k: (i, 0)))
        operands.append(residual)

    try:
        cost = pl.CostEstimate(
            flops=6 * T * H * I,
            transcendentals=T * I,
            bytes_accessed=(x2d.size + wg.size + wu.size + wd.size + T * H) * dtype_bytes,
        )
    except Exception:
        cost = None

    return pl.pallas_call(
        functools.partial(_mlp_kernel, mxu_dtype=mxu_dtype, has_res=has_res),
        out_shape=jax.ShapeDtypeStruct((T, H), x2d.dtype),
        grid_spec=pltpu.PrefetchScalarGridSpec(
            num_scalar_prefetch=0,
            grid=(pl.cdiv(T, tm), I // ti),
            in_specs=in_specs,
            out_specs=pl.BlockSpec((tm, H), lambda i, k: (i, 0)),
            scratch_shapes=[pltpu.VMEM((tm, H), jnp.float32)],
        ),
        compiler_params=pltpu.CompilerParams(
            dimension_semantics=("parallel", "arbitrary"),
            vmem_limit_bytes=_vmem_limit_bytes(),
        ),
        cost_estimate=cost,
    )(*operands)


# --------------------------------------------------------------------------------------
# Full decoder layer
# --------------------------------------------------------------------------------------
@functools.partial(jax.jit, static_argnames=("num_heads", "num_kv_heads", "head_dim",
                                              "eps", "mxu_dtype"))
def dolly_decoder_layer(x, params, cos, sin, *, num_heads, num_kv_heads, head_dim,
                        eps=1e-6, mxu_dtype=None):
    B, S, H = x.shape
    T = B * S
    dh = head_dim
    nH, nKV = num_heads, num_kv_heads
    n_rep = nH // nKV
    scaling = dh ** -0.5

    x2d = x.reshape(T, H)

    # ---- attention block ----
    h2d = rmsnorm(x2d, params["input_ln"], eps=eps)

    # fused q|k|v projection: the activations stream from HBM once
    qkv = linear(h2d, params["wqkv"], mxu_dtype=mxu_dtype)        # [T, (nH+2nKV)*dh]
    q = qkv[:, : nH * dh].reshape(T, nH, dh)
    k = qkv[:, nH * dh:(nH + nKV) * dh].reshape(T, nKV, dh)
    v = qkv[:, (nH + nKV) * dh:]

    # fused per-head RMSNorm + RoPE for q and k (single pass over q/k)
    q, k = qk_norm_rope(q, k, cos.reshape(T, dh), sin.reshape(T, dh),
                        params["q_norm"], params["k_norm"], eps=eps)

    # TODO(synk): these relayouts could be folded into the adjacent kernels' BlockSpecs.
    q = q.reshape(B, S, nKV, n_rep, dh).transpose(0, 2, 3, 1, 4)   # [B,nKV,n_rep,S,dh]
    k = k.reshape(B, S, nKV, dh).transpose(0, 2, 1, 3)             # [B,nKV,S,dh]
    v = v.reshape(B, S, nKV, dh).transpose(0, 2, 1, 3)

    attn = flash_attention(q, k, v, scaling=scaling)                # [B,nKV,n_rep,S,dh]
    attn2d = attn.transpose(0, 3, 1, 2, 4).reshape(T, nH * dh)

    # o-projection with the residual add fused into its epilogue
    hidden2d = linear(attn2d, params["wo"], residual=x2d, mxu_dtype=mxu_dtype)

    # ---- MLP block (residual fused into the down-proj epilogue) ----
    h2d = rmsnorm(hidden2d, params["post_ln"], eps=eps)
    out2d = dolly_mlp(h2d, params["wg"], params["wu"], params["wd"],
                      residual=hidden2d, mxu_dtype=mxu_dtype)
    return out2d.reshape(B, S, H)


# --------------------------------------------------------------------------------------
# Pure-JAX reference (mirrors the torch forward, highest matmul precision)
# --------------------------------------------------------------------------------------
def _rotate_half(x):
    half = x.shape[-1] // 2
    return jnp.concatenate([-x[..., half:], x[..., :half]], axis=-1)


def reference_decoder_layer(x, params, cos, sin, *, num_heads, num_kv_heads, head_dim,
                            eps=1e-6):
    P = jax.lax.Precision.HIGHEST
    B, S, H = x.shape
    dh = head_dim
    n_rep = num_heads // num_kv_heads
    scaling = dh ** -0.5

    def rms(h, w):
        hf = h.astype(jnp.float32)
        var = jnp.mean(hf * hf, axis=-1, keepdims=True)
        return w * (hf * jax.lax.rsqrt(var + eps)).astype(h.dtype)

    residual = x
    h = rms(x, params["input_ln"])
    h2d = h.reshape(-1, H)
    q = jnp.dot(h2d, params["wq"], precision=P)
    k = jnp.dot(h2d, params["wk"], precision=P)
    v = jnp.dot(h2d, params["wv"], precision=P)
    q = rms(q.reshape(B, S, num_heads, dh), params["q_norm"]).transpose(0, 2, 1, 3)
    k = rms(k.reshape(B, S, num_kv_heads, dh), params["k_norm"]).transpose(0, 2, 1, 3)
    v = v.reshape(B, S, num_kv_heads, dh).transpose(0, 2, 1, 3)

    cos4 = cos[:, None, :, :]
    sin4 = sin[:, None, :, :]
    q = q * cos4 + _rotate_half(q) * sin4
    k = k * cos4 + _rotate_half(k) * sin4

    k = jnp.repeat(k, n_rep, axis=1)
    v = jnp.repeat(v, n_rep, axis=1)
    scores = jnp.einsum("bhqd,bhkd->bhqk", q, k, precision=P) * scaling
    causal = jnp.tril(jnp.ones((S, S), dtype=bool))
    scores = jnp.where(causal[None, None], scores, -1e30)
    probs = jax.nn.softmax(scores.astype(jnp.float32), axis=-1).astype(q.dtype)
    attn = jnp.einsum("bhqk,bhkd->bhqd", probs, v, precision=P)
    attn = attn.transpose(0, 2, 1, 3).reshape(B * S, num_heads * dh)
    attn_out = jnp.dot(attn, params["wo"], precision=P)
    hidden = residual + attn_out.reshape(B, S, H)

    residual = hidden
    h2d = rms(hidden, params["post_ln"]).reshape(-1, H)
    g = jnp.dot(h2d, params["wg"], precision=P)
    u = jnp.dot(h2d, params["wu"], precision=P)
    m = jnp.dot((g * jax.nn.sigmoid(g)) * u, params["wd"], precision=P)
    return residual + m.reshape(B, S, H)


# --------------------------------------------------------------------------------------
# Test driver
# --------------------------------------------------------------------------------------
if __name__ == "__main__":
    batch, seq = 2, 8
    hidden_size = 64
    intermediate_size = 128
    num_heads = 4
    num_kv_heads = 2          # GQA: n_rep = 2
    head_dim = 16
    eps = 1e-6
    rope_theta = 10000.0

    key = jax.random.PRNGKey(0)
    keys = jax.random.split(key, 12)

    x = jax.random.normal(keys[0], (batch, seq, hidden_size), dtype=jnp.float32)

    def w(kk, shape):
        return jax.random.normal(kk, shape, dtype=jnp.float32) * 0.05

    params = {
        "input_ln": 1.0 + 0.1 * jax.random.normal(keys[1], (hidden_size,), jnp.float32),
        "post_ln": 1.0 + 0.1 * jax.random.normal(keys[2], (hidden_size,), jnp.float32),
        "q_norm": 1.0 + 0.1 * jax.random.normal(keys[3], (head_dim,), jnp.float32),
        "k_norm": 1.0 + 0.1 * jax.random.normal(keys[4], (head_dim,), jnp.float32),
        # weights stored transposed vs torch Linear: [in_features, out_features]
        "wq": w(keys[5], (hidden_size, num_heads * head_dim)),
        "wk": w(keys[6], (hidden_size, num_kv_heads * head_dim)),
        "wv": w(keys[7], (hidden_size, num_kv_heads * head_dim)),
        "wo": w(keys[8], (num_heads * head_dim, hidden_size)),
        "wg": w(keys[9], (hidden_size, intermediate_size)),
        "wu": w(keys[10], (hidden_size, intermediate_size)),
        "wd": w(keys[11], (intermediate_size, hidden_size)),
    }
    # pre-fused QKV weight (built once at param-construction time, not per call)
    params["wqkv"] = jnp.concatenate([params["wq"], params["wk"], params["wv"]], axis=1)

    # Qwen-style rotary embeddings
    inv_freq = 1.0 / (rope_theta ** (jnp.arange(0, head_dim, 2, dtype=jnp.float32)
                                     / head_dim))
    pos = jnp.arange(seq, dtype=jnp.float32)
    freqs = pos[:, None] * inv_freq[None, :]
    emb = jnp.concatenate([freqs, freqs], axis=-1)                   # [S, dh]
    cos = jnp.broadcast_to(jnp.cos(emb)[None], (batch, seq, head_dim))
    sin = jnp.broadcast_to(jnp.sin(emb)[None], (batch, seq, head_dim))

    out = dolly_decoder_layer(x, params, cos, sin,
                              num_heads=num_heads, num_kv_heads=num_kv_heads,
                              head_dim=head_dim, eps=eps)
    out = jax.block_until_ready(out)

    ref = reference_decoder_layer(x, params, cos, sin,
                                  num_heads=num_heads, num_kv_heads=num_kv_heads,
                                  head_dim=head_dim, eps=eps)

    assert out.shape == x.shape
    max_err = float(jnp.max(jnp.abs(out - ref)))
    assert jnp.allclose(out, ref, atol=5e-3, rtol=5e-3), (
        f"mismatch vs reference, max abs err = {max_err}")

    print("KERNEL_OK")
</pallas_src>

<mosaic_0001>
module attributes {stable_mosaic.version = 11 : i64} {
  func.func @_matmul_kernel(%arg0: i32, %arg1: i32, %arg2: i32, %arg3: memref<16x64xf32, #tpu.memory_space<vmem>>, %arg4: memref<64x128xf32, #tpu.memory_space<vmem>>, %arg5: memref<16x128xf32, #tpu.memory_space<vmem>>, %arg6: memref<16x128xf32, #tpu.memory_space<vmem>>) attributes {dimension_semantics = [#tpu.dimension_semantics<parallel>, #tpu.dimension_semantics<parallel>, #tpu.dimension_semantics<arbitrary>], iteration_bounds = array<i64: 1, 1, 1>, scalar_prefetch = 0 : i64, scratch_operands = 1 : i64, tpu.core_type = #tpu.core_type<tc>, window_params = [{transform_indices = @transform_0, window_bounds = array<i64: 16, 64>}, {transform_indices = @transform_1, window_bounds = array<i64: 64, 128>}, {transform_indices = @transform_2, window_bounds = array<i64: 16, 128>}]} {
    %c0_i32 = arith.constant 0 : i32
    %0 = arith.cmpi eq, %arg2, %c0_i32 : i32
    %1 = arith.extui %0 : i1 to i32
    %c0_i32_0 = arith.constant 0 : i32
    %2 = arith.cmpi ne, %1, %c0_i32_0 : i32
    scf.if %2 {
      %cst_10 = arith.constant 0.000000e+00 : f32
      %12 = vector.broadcast %cst_10 : f32 to vector<16x128xf32>
      %c0_11 = arith.constant 0 : index
      %c0_12 = arith.constant 0 : index
      %13 = vector.load %arg6[%c0_11, %c0_12] : memref<16x128xf32, #tpu.memory_space<vmem>>, vector<16x128xf32>
      tpu.vector_store %arg6[%c0_11, %c0_12], %12 {strides = array<i32>} : memref<16x128xf32, #tpu.memory_space<vmem>>, vector<16x128xf32>,
    } else {
    }
    %c0 = arith.constant 0 : index
    %c0_1 = arith.constant 0 : index
    %3 = vector.load %arg3[%c0, %c0_1] : memref<16x64xf32, #tpu.memory_space<vmem>>, vector<16x64xf32>
    %c0_2 = arith.constant 0 : index
    %c0_3 = arith.constant 0 : index
    %4 = vector.load %arg4[%c0_2, %c0_3] : memref<64x128xf32, #tpu.memory_space<vmem>>, vector<64x128xf32>
    %c0_4 = arith.constant 0 : index
    %c0_5 = arith.constant 0 : index
    %5 = vector.load %arg6[%c0_4, %c0_5] : memref<16x128xf32, #tpu.memory_space<vmem>>, vector<16x128xf32>
    %cst = arith.constant dense<0.000000e+00> : vector<16x128xf32>
    %6 = tpu.matmul %3, %4, %cst {dimension_numbers = #tpu.dot_dimension_numbers<[1], [0], [0], [1], [0, 0, 1, 1], [], []>} : vector<16x64xf32>, vector<64x128xf32>, vector<16x128xf32> -> vector<16x128xf32>
    %7 = arith.addf %5, %6 : vector<16x128xf32>
    %c0_6 = arith.constant 0 : index
    %c0_7 = arith.constant 0 : index
    %8 = vector.load %arg6[%c0_6, %c0_7] : memref<16x128xf32, #tpu.memory_space<vmem>>, vector<16x128xf32>
    tpu.vector_store %arg6[%c0_6, %c0_7], %7 {strides = array<i32>} : memref<16x128xf32, #tpu.memory_space<vmem>>, vector<16x128xf32>,
    %c0_i32_8 = arith.constant 0 : i32
    %9 = arith.cmpi eq, %arg2, %c0_i32_8 : i32
    %10 = arith.extui %9 : i1 to i32
    %c0_i32_9 = arith.constant 0 : i32
    %11 = arith.cmpi ne, %10, %c0_i32_9 : i32
    scf.if %11 {
      %c0_10 = arith.constant 0 : index
      %c0_11 = arith.constant 0 : index
      %12 = vector.load %arg6[%c0_10, %c0_11] : memref<16x128xf32, #tpu.memory_space<vmem>>, vector<16x128xf32>
      %c0_12 = arith.constant 0 : index
      %c0_13 = arith.constant 0 : index
      %13 = vector.load %arg5[%c0_12, %c0_13] : memref<16x128xf32, #tpu.memory_space<vmem>>, vector<16x128xf32>
      tpu.vector_store %arg5[%c0_12, %c0_13], %12 {strides = array<i32>} : memref<16x128xf32, #tpu.memory_space<vmem>>, vector<16x128xf32>,
    } else {
    }
    return
  }
  func.func @transform_0(%arg0: i32, %arg1: i32, %arg2: i32) -> (i32, i32) {
    %c0_i32 = arith.constant 0 : i32
    return %arg0, %arg2 : i32, i32
  }
  func.func @transform_1(%arg0: i32, %arg1: i32, %arg2: i32) -> (i32, i32) {
    %c0_i32 = arith.constant 0 : i32
    return %arg2, %arg1 : i32, i32
  }
  func.func @transform_2(%arg0: i32, %arg1: i32, %arg2: i32) -> (i32, i32) {
    %c0_i32 = arith.constant 0 : i32
    return %arg0, %arg1 : i32, i32
  }
}

module attributes {stable_mosaic.version = 11 : i64} {
  func.func @_rmsnorm_kernel(%arg0: i32, %arg1: memref<16x64xf32, #tpu.memory_space<vmem>>, %arg2: memref<1x64xf32, #tpu.memory_space<vmem>>, %arg3: memref<16x64xf32, #tpu.memory_space<vmem>>) attributes {dimension_semantics = [#tpu.dimension_semantics<parallel>], iteration_bounds = array<i64: 1>, scalar_prefetch = 0 : i64, scratch_operands = 0 : i64, tpu.core_type = #tpu.core_type<tc>, window_params = [{transform_indices = @transform_0, window_bounds = array<i64: 16, 64>}, {pipeline_mode = #tpu.pipeline_mode<synchronous>, transform_indices = @transform_1, window_bounds = array<i64: 1, 64>}, {transform_indices = @transform_2, window_bounds = array<i64: 16, 64>}]} {
    %c0 = arith.constant 0 : index
    %c0_0 = arith.constant 0 : index
    %0 = vector.load %arg1[%c0, %c0_0] : memref<16x64xf32, #tpu.memory_space<vmem>>, vector<16x64xf32>
    %1 = arith.mulf %0, %0 : vector<16x64xf32>
    %cst = arith.constant dense<0.000000e+00> : vector<16xf32>
    %2 = vector.multi_reduction <add>, %1, %cst [1] : vector<16x64xf32> to vector<16xf32>
    %3 = vector.shape_cast %2 : vector<16xf32> to vector<16x1xf32>
    %cst_1 = arith.constant 6.400000e+01 : f32
    %4 = vector.broadcast %cst_1 : f32 to vector<16x1xf32>
    %5 = arith.divf %3, %4 : vector<16x1xf32>
    %cst_2 = arith.constant 9.99999997E-7 : f32
    %6 = vector.broadcast %cst_2 : f32 to vector<16x1xf32>
    %7 = arith.addf %5, %6 : vector<16x1xf32>
    %8 = math.rsqrt %7 : vector<16x1xf32>
    %9 = vector.broadcast %8 : vector<16x1xf32> to vector<16x64xf32>
    %10 = arith.mulf %0, %9 : vector<16x64xf32>
    %c0_3 = arith.constant 0 : index
    %c0_4 = arith.constant 0 : index
    %11 = vector.load %arg2[%c0_3, %c0_4] : memref<1x64xf32, #tpu.memory_space<vmem>>, vector<1x64xf32>
    %12 = vector.broadcast %11 : vector<1x64xf32> to vector<16x64xf32>
    %13 = arith.mulf %12, %10 : vector<16x64xf32>
    %c0_5 = arith.constant 0 : index
    %c0_6 = arith.constant 0 : index
    %14 = vector.load %arg3[%c0_5, %c0_6] : memref<16x64xf32, #tpu.memory_space<vmem>>, vector<16x64xf32>
    tpu.vector_store %arg3[%c0_5, %c0_6], %13 {strides = array<i32>} : memref<16x64xf32, #tpu.memory_space<vmem>>, vector<16x64xf32>,
    return
  }
  func.func @transform_0(%arg0: i32) -> (i32, i32) {
    %c0_i32 = arith.constant 0 : i32
    %c0_i32_0 = arith.constant 0 : i32
    return %arg0, %c0_i32 : i32, i32
  }
  func.func @transform_1(%arg0: i32) -> (i32, i32) {
    %c0_i32 = arith.constant 0 : i32
    %c0_i32_0 = arith.constant 0 : i32
    %c0_i32_1 = arith.constant 0 : i32
    return %c0_i32, %c0_i32_0 : i32, i32
  }
  func.func @transform_2(%arg0: i32) -> (i32, i32) {
    %c0_i32 = arith.constant 0 : i32
    %c0_i32_0 = arith.constant 0 : i32
    return %arg0, %c0_i32 : i32, i32
  }
}

module attributes {stable_mosaic.version = 11 : i64} {
  func.func @_qk_norm_rope_kernel(%arg0: i32, %arg1: memref<16x4x16xf32, #tpu.memory_space<vmem>>, %arg2: memref<16x2x16xf32, #tpu.memory_space<vmem>>, %arg3: memref<16x16xf32, #tpu.memory_space<vmem>>, %arg4: memref<16x16xf32, #tpu.memory_space<vmem>>, %arg5: memref<1x1x16xf32, #tpu.memory_space<vmem>>, %arg6: memref<1x1x16xf32, #tpu.memory_space<vmem>>, %arg7: memref<16x4x16xf32, #tpu.memory_space<vmem>>, %arg8: memref<16x2x16xf32, #tpu.memory_space<vmem>>) attributes {dimension_semantics = [#tpu.dimension_semantics<parallel>], iteration_bounds = array<i64: 1>, scalar_prefetch = 0 : i64, scratch_operands = 0 : i64, tpu.core_type = #tpu.core_type<tc>, window_params = [{transform_indices = @transform_0, window_bounds = array<i64: 16, 4, 16>}, {transform_indices = @transform_1, window_bounds = array<i64: 16, 2, 16>}, {transform_indices = @transform_2, window_bounds = array<i64: 16, 16>}, {transform_indices = @transform_3, window_bounds = array<i64: 16, 16>}, {pipeline_mode = #tpu.pipeline_mode<synchronous>, transform_indices = @transform_4, window_bounds = array<i64: 1, 1, 16>}, {pipeline_mode = #tpu.pipeline_mode<synchronous>, transform_indices = @transform_5, window_bounds = array<i64: 1, 1, 16>}, {transform_indices = @transform_6, window_bounds = array<i64: 16, 4, 16>}, {transform_indices = @transform_7, window_bounds = array<i64: 16, 2, 16>}]} {
    %c0 = arith.constant 0 : index
    %c0_0 = arith.constant 0 : index
    %0 = vector.load %arg3[%c0, %c0_0] : memref<16x16xf32, #tpu.memory_space<vmem>>, vector<16x16xf32>
    %1 = vector.shape_cast %0 : vector<16x16xf32> to vector<16x1x16xf32>
    %c0_1 = arith.constant 0 : index
    %c0_2 = arith.constant 0 : index
    %2 = vector.load %arg4[%c0_1, %c0_2] : memref<16x16xf32, #tpu.memory_space<vmem>>, vector<16x16xf32>
    %3 = vector.shape_cast %2 : vector<16x16xf32> to vector<16x1x16xf32>
    %c0_3 = arith.constant 0 : index
    %c0_4 = arith.constant 0 : index
    %c0_5 = arith.constant 0 : index
    %4 = vector.load %arg1[%c0_3, %c0_4, %c0_5] : memref<16x4x16xf32, #tpu.memory_space<vmem>>, vector<16x4x16xf32>
    %5 = arith.mulf %4, %4 : vector<16x4x16xf32>
    %cst = arith.constant dense<0.000000e+00> : vector<16x4xf32>
    %6 = vector.multi_reduction <add>, %5, %cst [2] : vector<16x4x16xf32> to vector<16x4xf32>
    %7 = vector.shape_cast %6 : vector<16x4xf32> to vector<16x4x1xf32>
    %cst_6 = arith.constant 1.600000e+01 : f32
    %8 = vector.broadcast %cst_6 : f32 to vector<16x4x1xf32>
    %9 = arith.divf %7, %8 : vector<16x4x1xf32>
    %cst_7 = arith.constant 9.99999997E-7 : f32
    %10 = vector.broadcast %cst_7 : f32 to vector<16x4x1xf32>
    %11 = arith.addf %9, %10 : vector<16x4x1xf32>
    %12 = math.rsqrt %11 : vector<16x4x1xf32>
    %13 = vector.broadcast %12 : vector<16x4x1xf32> to vector<16x4x16xf32>
    %14 = arith.mulf %4, %13 : vector<16x4x16xf32>
    %c0_8 = arith.constant 0 : index
    %c0_9 = arith.constant 0 : index
    %c0_10 = arith.constant 0 : index
    %15 = vector.load %arg5[%c0_8, %c0_9, %c0_10] : memref<1x1x16xf32, #tpu.memory_space<vmem>>, vector<1x1x16xf32>
    %16 = vector.broadcast %15 : vector<1x1x16xf32> to vector<16x4x16xf32>
    %17 = arith.mulf %16, %14 : vector<16x4x16xf32>
    %18 = vector.extract_strided_slice %17 {offsets = [0, 0, 8], sizes = [16, 4, 8], strides = [1, 1, 1]} : vector<16x4x16xf32> to vector<16x4x8xf32>
    %cst_11 = arith.constant 0.000000e+00 : f32
    %19 = vector.broadcast %cst_11 : f32 to vector<16x4x8xf32>
    %20 = arith.subf %19, %18 : vector<16x4x8xf32>
    %21 = vector.extract_strided_slice %17 {offsets = [0, 0, 0], sizes = [16, 4, 8], strides = [1, 1, 1]} : vector<16x4x16xf32> to vector<16x4x8xf32>
    %22 = tpu.concatenate %20, %21 in 2 : vector<16x4x8xf32>, vector<16x4x8xf32> -> vector<16x4x16xf32>
    %23 = vector.broadcast %1 : vector<16x1x16xf32> to vector<16x4x16xf32>
    %24 = arith.mulf %17, %23 : vector<16x4x16xf32>
    %25 = vector.broadcast %3 : vector<16x1x16xf32> to vector<16x4x16xf32>
    %26 = arith.mulf %22, %25 : vector<16x4x16xf32>
    %27 = arith.addf %24, %26 : vector<16x4x16xf32>
    %c0_12 = arith.constant 0 : index
    %c0_13 = arith.constant 0 : index
    %c0_14 = arith.constant 0 : index
    %28 = vector.load %arg7[%c0_12, %c0_13, %c0_14] : memref<16x4x16xf32, #tpu.memory_space<vmem>>, vector<16x4x16xf32>
    tpu.vector_store %arg7[%c0_12, %c0_13, %c0_14], %27 {strides = array<i32>} : memref<16x4x16xf32, #tpu.memory_space<vmem>>, vector<16x4x16xf32>,
    %c0_15 = arith.constant 0 : index
    %c0_16 = arith.constant 0 : index
    %c0_17 = arith.constant 0 : index
    %29 = vector.load %arg2[%c0_15, %c0_16, %c0_17] : memref<16x2x16xf32, #tpu.memory_space<vmem>>, vector<16x2x16xf32>
    %30 = arith.mulf %29, %29 : vector<16x2x16xf32>
    %cst_18 = arith.constant dense<0.000000e+00> : vector<16x2xf32>
    %31 = vector.multi_reduction <add>, %30, %cst_18 [2] : vector<16x2x16xf32> to vector<16x2xf32>
    %32 = vector.shape_cast %31 : vector<16x2xf32> to vector<16x2x1xf32>
    %cst_19 = arith.constant 1.600000e+01 : f32
    %33 = vector.broadcast %cst_19 : f32 to vector<16x2x1xf32>
    %34 = arith.divf %32, %33 : vector<16x2x1xf32>
    %cst_20 = arith.constant 9.99999997E-7 : f32
    %35 = vector.broadcast %cst_20 : f32 to vector<16x2x1xf32>
    %36 = arith.addf %34, %35 : vector<16x2x1xf32>
    %37 = math.rsqrt %36 : vector<16x2x1xf32>
    %38 = vector.broadcast %37 : vector<16x2x1xf32> to vector<16x2x16xf32>
    %39 = arith.mulf %29, %38 : vector<16x2x16xf32>
    %c0_21 = arith.constant 0 : index
    %c0_22 = arith.constant 0 : index
    %c0_23 = arith.constant 0 : index
    %40 = vector.load %arg6[%c0_21, %c0_22, %c0_23] : memref<1x1x16xf32, #tpu.memory_space<vmem>>, vector<1x1x16xf32>
    %41 = vector.broadcast %40 : vector<1x1x16xf32> to vector<16x2x16xf32>
    %42 = arith.mulf %41, %39 : vector<16x2x16xf32>
    %43 = vector.extract_strided_slice %42 {offsets = [0, 0, 8], sizes = [16, 2, 8], strides = [1, 1, 1]} : vector<16x2x16xf32> to vector<16x2x8xf32>
    %cst_24 = arith.constant 0.000000e+00 : f32
    %44 = vector.broadcast %cst_24 : f32 to vector<16x2x8xf32>
    %45 = arith.subf %44, %43 : vector<16x2x8xf32>
    %46 = vector.extract_strided_slice %42 {offsets = [0, 0, 0], sizes = [16, 2, 8], strides = [1, 1, 1]} : vector<16x2x16xf32> to vector<16x2x8xf32>
    %47 = tpu.concatenate %45, %46 in 2 : vector<16x2x8xf32>, vector<16x2x8xf32> -> vector<16x2x16xf32>
    %48 = vector.broadcast %1 : vector<16x1x16xf32> to vector<16x2x16xf32>
    %49 = arith.mulf %42, %48 : vector<16x2x16xf32>
    %50 = vector.broadcast %3 : vector<16x1x16xf32> to vector<16x2x16xf32>
    %51 = arith.mulf %47, %50 : vector<16x2x16xf32>
    %52 = arith.addf %49, %51 : vector<16x2x16xf32>
    %c0_25 = arith.constant 0 : index
    %c0_26 = arith.constant 0 : index
    %c0_27 = arith.constant 0 : index
    %53 = vector.load %arg8[%c0_25, %c0_26, %c0_27] : memref<16x2x16xf32, #tpu.memory_space<vmem>>, vector<16x2x16xf32>
    tpu.vector_store %arg8[%c0_25, %c0_26, %c0_27], %52 {strides = array<i32>} : memref<16x2x16xf32, #tpu.memory_space<vmem>>, vector<16x2x16xf32>,
    return
  }
  func.func @transform_0(%arg0: i32) -> (i32, i32, i32) {
    %c0_i32 = arith.constant 0 : i32
    %c0_i32_0 = arith.constant 0 : i32
    %c0_i32_1 = arith.constant 0 : i32
    return %arg0, %c0_i32, %c0_i32_0 : i32, i32, i32
  }
  func.func @transform_1(%arg0: i32) -> (i32, i32, i32) {
    %c0_i32 = arith.constant 0 : i32
    %c0_i32_0 = arith.constant 0 : i32
    %c0_i32_1 = arith.constant 0 : i32
    return %arg0, %c0_i32, %c0_i32_0 : i32, i32, i32
  }
  func.func @transform_2(%arg0: i32) -> (i32, i32) {
    %c0_i32 = arith.constant 0 : i32
    %c0_i32_0 = arith.constant 0 : i32
    return %arg0, %c0_i32 : i32, i32
  }
  func.func @transform_3(%arg0: i32) -> (i32, i32) {
    %c0_i32 = arith.constant 0 : i32
    %c0_i32_0 = arith.constant 0 : i32
    return %arg0, %c0_i32 : i32, i32
  }
  func.func @transform_4(%arg0: i32) -> (i32, i32, i32) {
    %c0_i32 = arith.constant 0 : i32
    %c0_i32_0 = arith.constant 0 : i32
    %c0_i32_1 = arith.constant 0 : i32
    %c0_i32_2 = arith.constant 0 : i32
    return %c0_i32, %c0_i32_0, %c0_i32_1 : i32, i32, i32
  }
  func.func @transform_5(%arg0: i32) -> (i32, i32, i32) {
    %c0_i32 = arith.constant 0 : i32
    %c0_i32_0 = arith.constant 0 : i32
    %c0_i32_1 = arith.constant 0 : i32
    %c0_i32_2 = arith.constant 0 : i32
    return %c0_i32, %c0_i32_0, %c0_i32_1 : i32, i32, i32
  }
  func.func @transform_6(%arg0: i32) -> (i32, i32, i32) {
    %c0_i32 = arith.constant 0 : i32
    %c0_i32_0 = arith.constant 0 : i32
    %c0_i32_1 = arith.constant 0 : i32
    return %arg0, %c0_i32, %c0_i32_0 : i32, i32, i32
  }
  func.func @transform_7(%arg0: i32) -> (i32, i32, i32) {
    %c0_i32 = arith.constant 0 : i32
    %c0_i32_0 = arith.constant 0 : i32
    %c0_i32_1 = arith.constant 0 : i32
    return %arg0, %c0_i32, %c0_i32_0 : i32, i32, i32
  }
}

module attributes {stable_mosaic.version = 11 : i64} {
  func.func @_flash_attn_kernel(%arg0: i32, %arg1: i32, %arg2: i32, %arg3: i32, %arg4: memref<1x1x2x8x16xf32, #tpu.memory_space<vmem>>, %arg5: memref<1x1x8x16xf32, #tpu.memory_space<vmem>>, %arg6: memref<1x1x8x16xf32, #tpu.memory_space<vmem>>, %arg7: memref<1x1x2x8x16xf32, #tpu.memory_space<vmem>>, %arg8: memref<2x8x1xf32, #tpu.memory_space<vmem>>, %arg9: memref<2x8x1xf32, #tpu.memory_space<vmem>>, %arg10: memref<2x8x16xf32, #tpu.memory_space<vmem>>) attributes {dimension_semantics = [#tpu.dimension_semantics<parallel>, #tpu.dimension_semantics<parallel>, #tpu.dimension_semantics<parallel>, #tpu.dimension_semantics<arbitrary>], iteration_bounds = array<i64: 2, 2, 1, 1>, scalar_prefetch = 0 : i64, scratch_operands = 3 : i64, tpu.core_type = #tpu.core_type<tc>, window_params = [{transform_indices = @transform_0, window_bounds = array<i64: 1, 1, 2, 8, 16>}, {transform_indices = @transform_1, window_bounds = array<i64: 1, 1, 8, 16>}, {transform_indices = @transform_2, window_bounds = array<i64: 1, 1, 8, 16>}, {transform_indices = @transform_3, window_bounds = array<i64: 1, 1, 2, 8, 16>}]} {
    %c0_i32 = arith.constant 0 : i32
    %0 = arith.cmpi eq, %arg3, %c0_i32 : i32
    %1 = arith.extui %0 : i1 to i32
    %c0_i32_0 = arith.constant 0 : i32
    %2 = arith.cmpi ne, %1, %c0_i32_0 : i32
    scf.if %2 {
      %cst = arith.constant 0xFF800000 : f32
      %12 = vector.broadcast %cst : f32 to vector<2x8x1xf32>
      %c0 = arith.constant 0 : index
      %c0_5 = arith.constant 0 : index
      %c0_6 = arith.constant 0 : index
      %13 = vector.load %arg8[%c0, %c0_5, %c0_6] : memref<2x8x1xf32, #tpu.memory_space<vmem>>, vector<2x8x1xf32>
      tpu.vector_store %arg8[%c0, %c0_5, %c0_6], %12 {strides = array<i32>} : memref<2x8x1xf32, #tpu.memory_space<vmem>>, vector<2x8x1xf32>,
      %cst_7 = arith.constant 0.000000e+00 : f32
      %14 = vector.broadcast %cst_7 : f32 to vector<2x8x1xf32>
      %c0_8 = arith.constant 0 : index
      %c0_9 = arith.constant 0 : index
      %c0_10 = arith.constant 0 : index
      %15 = vector.load %arg9[%c0_8, %c0_9, %c0_10] : memref<2x8x1xf32, #tpu.memory_space<vmem>>, vector<2x8x1xf32>
      tpu.vector_store %arg9[%c0_8, %c0_9, %c0_10], %14 {strides = array<i32>} : memref<2x8x1xf32, #tpu.memory_space<vmem>>, vector<2x8x1xf32>,
      %cst_11 = arith.constant 0.000000e+00 : f32
      %16 = vector.broadcast %cst_11 : f32 to vector<2x8x16xf32>
      %c0_12 = arith.constant 0 : index
      %c0_13 = arith.constant 0 : index
      %c0_14 = arith.constant 0 : index
      %17 = vector.load %arg10[%c0_12, %c0_13, %c0_14] : memref<2x8x16xf32, #tpu.memory_space<vmem>>, vector<2x8x16xf32>
      tpu.vector_store %arg10[%c0_12, %c0_13, %c0_14], %16 {strides = array<i32>} : memref<2x8x16xf32, #tpu.memory_space<vmem>>, vector<2x8x16xf32>,
    } else {
    }
    %c8_i32 = arith.constant 8 : i32
    %3 = arith.muli %arg3, %c8_i32 : i32
    %c8_i32_1 = arith.constant 8 : i32
    %4 = arith.muli %arg2, %c8_i32_1 : i32
    %c7_i32 = arith.constant 7 : i32
    %5 = arith.addi %4, %c7_i32 : i32
    %6 = arith.cmpi sle, %3, %5 : i32
    %7 = arith.extui %6 : i1 to i32
    %c0_i32_2 = arith.constant 0 : i32
    %8 = arith.cmpi ne, %7, %c0_i32_2 : i32
    scf.if %8 {
      %c0 = arith.constant 0 : index
      %c0_5 = arith.constant 0 : index
      %c0_6 = arith.constant 0 : index
      %c0_7 = arith.constant 0 : index
      %c0_8 = arith.constant 0 : index
      %12 = vector.load %arg4[%c0, %c0_5, %c0_6, %c0_7, %c0_8] : memref<1x1x2x8x16xf32, #tpu.memory_space<vmem>>, vector<1x1x2x8x16xf32>
      %13 = vector.shape_cast %12 : vector<1x1x2x8x16xf32> to vector<2x8x16xf32>
      %c0_9 = arith.constant 0 : index
      %c0_10 = arith.constant 0 : index
      %c0_11 = arith.constant 0 : index
      %c0_12 = arith.constant 0 : index
      %14 = vector.load %arg5[%c0_9, %c0_10, %c0_11, %c0_12] : memref<1x1x8x16xf32, #tpu.memory_space<vmem>>, vector<1x1x8x16xf32>
      %15 = vector.shape_cast %14 : vector<1x1x8x16xf32> to vector<8x16xf32>
      %c0_13 = arith.constant 0 : index
      %c0_14 = arith.constant 0 : index
      %c0_15 = arith.constant 0 : index
      %c0_16 = arith.constant 0 : index
      %16 = vector.load %arg6[%c0_13, %c0_14, %c0_15, %c0_16] : memref<1x1x8x16xf32, #tpu.memory_space<vmem>>, vector<1x1x8x16xf32>
      %17 = vector.shape_cast %16 : vector<1x1x8x16xf32> to vector<8x16xf32>
      %18 = vector.shape_cast %15 : vector<8x16xf32> to vector<1x8x16xf32>
      %19 = vector.shape_cast %18 : vector<1x8x16xf32> to vector<1x8x16xf32>
      %20 = vector.broadcast %19 : vector<1x8x16xf32> to vector<2x8x16xf32>
      %21 = vector.shape_cast %17 : vector<8x16xf32> to vector<1x8x16xf32>
      %22 = vector.shape_cast %21 : vector<1x8x16xf32> to vector<1x8x16xf32>
      %23 = vector.broadcast %22 : vector<1x8x16xf32> to vector<2x8x16xf32>
      "tpu.trace_start"() <{level = 10 : i32, message = "hqd,hkd->hqk"}> : () -> ()
      %cst = arith.constant dense<0.000000e+00> : vector<2x8x8xf32>
      %24 = tpu.matmul %13, %20, %cst {dimension_numbers = #tpu.dot_dimension_numbers<[2], [2], [1], [1], [0, 0, 0, 1, 1, 1], [0], [0]>} : vector<2x8x16xf32>, vector<2x8x16xf32>, vector<2x8x8xf32> -> vector<2x8x8xf32>
      "tpu.trace_stop"() : () -> ()
      %cst_17 = arith.constant 2.500000e-01 : f32
      %25 = vector.broadcast %cst_17 : f32 to vector<2x8x8xf32>
      %26 = arith.mulf %24, %25 : vector<2x8x8xf32>
      %27 = tpu.iota {dimensions = array<i32: 1>} : vector<2x8x8xi32>
      %c8_i32_18 = arith.constant 8 : i32
      %28 = arith.muli %arg2, %c8_i32_18 : i32
      %29 = vector.broadcast %28 : i32 to vector<2x8x8xi32>
      %30 = arith.addi %27, %29 : vector<2x8x8xi32>
      %31 = tpu.iota {dimensions = array<i32: 2>} : vector<2x8x8xi32>
      %c8_i32_19 = arith.constant 8 : i32
      %32 = arith.muli %arg3, %c8_i32_19 : i32
      %33 = vector.broadcast %32 : i32 to vector<2x8x8xi32>
      %34 = arith.addi %31, %33 : vector<2x8x8xi32>
      %35 = arith.cmpi sle, %34, %30 : vector<2x8x8xi32>
      %cst_20 = arith.constant -1.000000e+30 : f32
      %36 = vector.broadcast %cst_20 : f32 to vector<2x8x8xf32>
      %37 = arith.select %35, %26, %36 : vector<2x8x8xi1>, vector<2x8x8xf32>
      %c0_21 = arith.constant 0 : index
      %c0_22 = arith.constant 0 : index
      %c0_23 = arith.constant 0 : index
      %38 = vector.load %arg8[%c0_21, %c0_22, %c0_23] : memref<2x8x1xf32, #tpu.memory_space<vmem>>, vector<2x8x1xf32>
      %cst_24 = arith.constant dense<0xFF800000> : vector<2x8xf32>
      %39 = vector.multi_reduction <maximumf>, %37, %cst_24 [2] : vector<2x8x8xf32> to vector<2x8xf32>
      %40 = vector.shape_cast %39 : vector<2x8xf32> to vector<2x8x1xf32>
      %41 = arith.maximumf %38, %40 : vector<2x8x1xf32>
      %42 = arith.subf %38, %41 : vector<2x8x1xf32>
      %43 = math.exp %42 : vector<2x8x1xf32>
      %44 = vector.broadcast %41 : vector<2x8x1xf32> to vector<2x8x8xf32>
      %45 = arith.subf %37, %44 : vector<2x8x8xf32>
      %46 = math.exp %45 : vector<2x8x8xf32>
      %c0_25 = arith.constant 0 : index
      %c0_26 = arith.constant 0 : index
      %c0_27 = arith.constant 0 : index
      %47 = vector.load %arg9[%c0_25, %c0_26, %c0_27] : memref<2x8x1xf32, #tpu.memory_space<vmem>>, vector<2x8x1xf32>
      %48 = arith.mulf %43, %47 : vector<2x8x1xf32>
      %cst_28 = arith.constant dense<0.000000e+00> : vector<2x8xf32>
      %49 = vector.multi_reduction <add>, %46, %cst_28 [2] : vector<2x8x8xf32> to vector<2x8xf32>
      %50 = vector.shape_cast %49 : vector<2x8xf32> to vector<2x8x1xf32>
      %51 = arith.addf %48, %50 : vector<2x8x1xf32>
      %c0_29 = arith.constant 0 : index
      %c0_30 = arith.constant 0 : index
      %c0_31 = arith.constant 0 : index
      %52 = vector.load %arg9[%c0_29, %c0_30, %c0_31] : memref<2x8x1xf32, #tpu.memory_space<vmem>>, vector<2x8x1xf32>
      tpu.vector_store %arg9[%c0_29, %c0_30, %c0_31], %51 {strides = array<i32>} : memref<2x8x1xf32, #tpu.memory_space<vmem>>, vector<2x8x1xf32>,
      %c0_32 = arith.constant 0 : index
      %c0_33 = arith.constant 0 : index
      %c0_34 = arith.constant 0 : index
      %53 = vector.load %arg10[%c0_32, %c0_33, %c0_34] : memref<2x8x16xf32, #tpu.memory_space<vmem>>, vector<2x8x16xf32>
      %54 = vector.broadcast %43 : vector<2x8x1xf32> to vector<2x8x16xf32>
      %55 = arith.mulf %54, %53 : vector<2x8x16xf32>
      "tpu.trace_start"() <{level = 10 : i32, message = "hqk,hkd->hqd"}> : () -> ()
      %cst_35 = arith.constant dense<0.000000e+00> : vector<2x8x16xf32>
      %56 = tpu.matmul %46, %23, %cst_35 {dimension_numbers = #tpu.dot_dimension_numbers<[2], [1], [1], [2], [0, 0, 0, 1, 1, 2], [0], [0]>} : vector<2x8x8xf32>, vector<2x8x16xf32>, vector<2x8x16xf32> -> vector<2x8x16xf32>
      "tpu.trace_stop"() : () -> ()
      %57 = arith.addf %55, %56 : vector<2x8x16xf32>
      %c0_36 = arith.constant 0 : index
      %c0_37 = arith.constant 0 : index
      %c0_38 = arith.constant 0 : index
      %58 = vector.load %arg10[%c0_36, %c0_37, %c0_38] : memref<2x8x16xf32, #tpu.memory_space<vmem>>, vector<2x8x16xf32>
      tpu.vector_store %arg10[%c0_36, %c0_37, %c0_38], %57 {strides = array<i32>} : memref<2x8x16xf32, #tpu.memory_space<vmem>>, vector<2x8x16xf32>,
      %c0_39 = arith.constant 0 : index
      %c0_40 = arith.constant 0 : index
      %c0_41 = arith.constant 0 : index
      %59 = vector.load %arg8[%c0_39, %c0_40, %c0_41] : memref<2x8x1xf32, #tpu.memory_space<vmem>>, vector<2x8x1xf32>
      tpu.vector_store %arg8[%c0_39, %c0_40, %c0_41], %41 {strides = array<i32>} : memref<2x8x1xf32, #tpu.memory_space<vmem>>, vector<2x8x1xf32>,
    } else {
    }
    %c0_i32_3 = arith.constant 0 : i32
    %9 = arith.cmpi eq, %arg3, %c0_i32_3 : i32
    %10 = arith.extui %9 : i1 to i32
    %c0_i32_4 = arith.constant 0 : i32
    %11 = arith.cmpi ne, %10, %c0_i32_4 : i32
    scf.if %11 {
      %c0 = arith.constant 0 : index
      %c0_5 = arith.constant 0 : index
      %c0_6 = arith.constant 0 : index
      %12 = vector.load %arg9[%c0, %c0_5, %c0_6] : memref<2x8x1xf32, #tpu.memory_space<vmem>>, vector<2x8x1xf32>
      %13 = tpu.reciprocal %12 : vector<2x8x1xf32> -> vector<2x8x1xf32>
      %c0_7 = arith.constant 0 : index
      %c0_8 = arith.constant 0 : index
      %c0_9 = arith.constant 0 : index
      %14 = vector.load %arg10[%c0_7, %c0_8, %c0_9] : memref<2x8x16xf32, #tpu.memory_space<vmem>>, vector<2x8x16xf32>
      %15 = vector.broadcast %13 : vector<2x8x1xf32> to vector<2x8x16xf32>
      %16 = arith.mulf %14, %15 : vector<2x8x16xf32>
      %c0_10 = arith.constant 0 : index
      %c0_11 = arith.constant 0 : index
      %c0_12 = arith.constant 0 : index
      %c0_13 = arith.constant 0 : index
      %c0_14 = arith.constant 0 : index
      %17 = vector.load %arg7[%c0_10, %c0_11, %c0_12, %c0_13, %c0_14] : memref<1x1x2x8x16xf32, #tpu.memory_space<vmem>>, vector<1x1x2x8x16xf32>
      %18 = vector.shape_cast %17 : vector<1x1x2x8x16xf32> to vector<2x8x16xf32>
      %19 = vector.shape_cast %16 : vector<2x8x16xf32> to vector<1x1x2x8x16xf32>
      tpu.vector_store %arg7[%c0_10, %c0_11, %c0_12, %c0_13, %c0_14], %19 {strides = array<i32>} : memref<1x1x2x8x16xf32, #tpu.memory_space<vmem>>, vector<1x1x2x8x16xf32>,
    } else {
    }
    return
  }
  func.func @transform_0(%arg0: i32, %arg1: i32, %arg2: i32, %arg3: i32) -> (i32, i32, i32, i32, i32) {
    %c0_i32 = arith.constant 0 : i32
    %c0_i32_0 = arith.constant 0 : i32
    %c0_i32_1 = arith.constant 0 : i32
    return %arg0, %arg1, %c0_i32, %arg2, %c0_i32_0 : i32, i32, i32, i32, i32
  }
  func.func @transform_1(%arg0: i32, %arg1: i32, %arg2: i32, %arg3: i32) -> (i32, i32, i32, i32) {
    %c0_i32 = arith.constant 0 : i32
    %c0_i32_0 = arith.constant 0 : i32
    return %arg0, %arg1, %arg3, %c0_i32 : i32, i32, i32, i32
  }
  func.func @transform_2(%arg0: i32, %arg1: i32, %arg2: i32, %arg3: i32) -> (i32, i32, i32, i32) {
    %c0_i32 = arith.constant 0 : i32
    %c0_i32_0 = arith.constant 0 : i32
    return %arg0, %arg1, %arg3, %c0_i32 : i32, i32, i32, i32
  }
  func.func @transform_3(%arg0: i32, %arg1: i32, %arg2: i32, %arg3: i32) -> (i32, i32, i32, i32, i32) {
    %c0_i32 = arith.constant 0 : i32
    %c0_i32_0 = arith.constant 0 : i32
    %c0_i32_1 = arith.constant 0 : i32
    return %arg0, %arg1, %c0_i32, %arg2, %c0_i32_0 : i32, i32, i32, i32, i32
  }
}

module attributes {stable_mosaic.version = 11 : i64} {
  func.func @_matmul_kernel(%arg0: i32, %arg1: i32, %arg2: i32, %arg3: memref<16x64xf32, #tpu.memory_space<vmem>>, %arg4: memref<64x64xf32, #tpu.memory_space<vmem>>, %arg5: memref<16x64xf32, #tpu.memory_space<vmem>>, %arg6: memref<16x64xf32, #tpu.memory_space<vmem>>, %arg7: memref<16x64xf32, #tpu.memory_space<vmem>>) attributes {dimension_semantics = [#tpu.dimension_semantics<parallel>, #tpu.dimension_semantics<parallel>, #tpu.dimension_semantics<arbitrary>], iteration_bounds = array<i64: 1, 1, 1>, scalar_prefetch = 0 : i64, scratch_operands = 1 : i64, tpu.core_type = #tpu.core_type<tc>, window_params = [{transform_indices = @transform_0, window_bounds = array<i64: 16, 64>}, {transform_indices = @transform_1, window_bounds = array<i64: 64, 64>}, {transform_indices = @transform_2, window_bounds = array<i64: 16, 64>}, {transform_indices = @transform_3, window_bounds = array<i64: 16, 64>}]} {
    %c0_i32 = arith.constant 0 : i32
    %0 = arith.cmpi eq, %arg2, %c0_i32 : i32
    %1 = arith.extui %0 : i1 to i32
    %c0_i32_0 = arith.constant 0 : i32
    %2 = arith.cmpi ne, %1, %c0_i32_0 : i32
    scf.if %2 {
      %cst_10 = arith.constant 0.000000e+00 : f32
      %12 = vector.broadcast %cst_10 : f32 to vector<16x64xf32>
      %c0_11 = arith.constant 0 : index
      %c0_12 = arith.constant 0 : index
      %13 = vector.load %arg7[%c0_11, %c0_12] : memref<16x64xf32, #tpu.memory_space<vmem>>, vector<16x64xf32>
      tpu.vector_store %arg7[%c0_11, %c0_12], %12 {strides = array<i32>} : memref<16x64xf32, #tpu.memory_space<vmem>>, vector<16x64xf32>,
    } else {
    }
    %c0 = arith.constant 0 : index
    %c0_1 = arith.constant 0 : index
    %3 = vector.load %arg3[%c0, %c0_1] : memref<16x64xf32, #tpu.memory_space<vmem>>, vector<16x64xf32>
    %c0_2 = arith.constant 0 : index
    %c0_3 = arith.constant 0 : index
    %4 = vector.load %arg4[%c0_2, %c0_3] : memref<64x64xf32, #tpu.memory_space<vmem>>, vector<64x64xf32>
    %c0_4 = arith.constant 0 : index
    %c0_5 = arith.constant 0 : index
    %5 = vector.load %arg7[%c0_4, %c0_5] : memref<16x64xf32, #tpu.memory_space<vmem>>, vector<16x64xf32>
    %cst = arith.constant dense<0.000000e+00> : vector<16x64xf32>
    %6 = tpu.matmul %3, %4, %cst {dimension_numbers = #tpu.dot_dimension_numbers<[1], [0], [0], [1], [0, 0, 1, 1], [], []>} : vector<16x64xf32>, vector<64x64xf32>, vector<16x64xf32> -> vector<16x64xf32>
    %7 = arith.addf %5, %6 : vector<16x64xf32>
    %c0_6 = arith.constant 0 : index
    %c0_7 = arith.constant 0 : index
    %8 = vector.load %arg7[%c0_6, %c0_7] : memref<16x64xf32, #tpu.memory_space<vmem>>, vector<16x64xf32>
    tpu.vector_store %arg7[%c0_6, %c0_7], %7 {strides = array<i32>} : memref<16x64xf32, #tpu.memory_space<vmem>>, vector<16x64xf32>,
    %c0_i32_8 = arith.constant 0 : i32
    %9 = arith.cmpi eq, %arg2, %c0_i32_8 : i32
    %10 = arith.extui %9 : i1 to i32
    %c0_i32_9 = arith.constant 0 : i32
    %11 = arith.cmpi ne, %10, %c0_i32_9 : i32
    scf.if %11 {
      %c0_10 = arith.constant 0 : index
      %c0_11 = arith.constant 0 : index
      %12 = vector.load %arg7[%c0_10, %c0_11] : memref<16x64xf32, #tpu.memory_space<vmem>>, vector<16x64xf32>
      %c0_12 = arith.constant 0 : index
      %c0_13 = arith.constant 0 : index
      %13 = vector.load %arg5[%c0_12, %c0_13] : memref<16x64xf32, #tpu.memory_space<vmem>>, vector<16x64xf32>
      %14 = arith.addf %12, %13 : vector<16x64xf32>
      %c0_14 = arith.constant 0 : index
      %c0_15 = arith.constant 0 : index
      %15 = vector.load %arg6[%c0_14, %c0_15] : memref<16x64xf32, #tpu.memory_space<vmem>>, vector<16x64xf32>
      tpu.vector_store %arg6[%c0_14, %c0_15], %14 {strides = array<i32>} : memref<16x64xf32, #tpu.memory_space<vmem>>, vector<16x64xf32>,
    } else {
    }
    return
  }
  func.func @transform_0(%arg0: i32, %arg1: i32, %arg2: i32) -> (i32, i32) {
    %c0_i32 = arith.constant 0 : i32
    return %arg0, %arg2 : i32, i32
  }
  func.func @transform_1(%arg0: i32, %arg1: i32, %arg2: i32) -> (i32, i32) {
    %c0_i32 = arith.constant 0 : i32
    return %arg2, %arg1 : i32, i32
  }
  func.func @transform_2(%arg0: i32, %arg1: i32, %arg2: i32) -> (i32, i32) {
    %c0_i32 = arith.constant 0 : i32
    return %arg0, %arg1 : i32, i32
  }
  func.func @transform_3(%arg0: i32, %arg1: i32, %arg2: i32) -> (i32, i32) {
    %c0_i32 = arith.constant 0 : i32
    return %arg0, %arg1 : i32, i32
  }
}

module attributes {stable_mosaic.version = 11 : i64} {
  func.func @_mlp_kernel(%arg0: i32, %arg1: i32, %arg2: memref<16x64xf32, #tpu.memory_space<vmem>>, %arg3: memref<64x128xf32, #tpu.memory_space<vmem>>, %arg4: memref<64x128xf32, #tpu.memory_space<vmem>>, %arg5: memref<128x64xf32, #tpu.memory_space<vmem>>, %arg6: memref<16x64xf32, #tpu.memory_space<vmem>>, %arg7: memref<16x64xf32, #tpu.memory_space<vmem>>, %arg8: memref<16x64xf32, #tpu.memory_space<vmem>>) attributes {dimension_semantics = [#tpu.dimension_semantics<parallel>, #tpu.dimension_semantics<arbitrary>], iteration_bounds = array<i64: 1, 1>, scalar_prefetch = 0 : i64, scratch_operands = 1 : i64, tpu.core_type = #tpu.core_type<tc>, window_params = [{transform_indices = @transform_0, window_bounds = array<i64: 16, 64>}, {transform_indices = @transform_1, window_bounds = array<i64: 64, 128>}, {transform_indices = @transform_2, window_bounds = array<i64: 64, 128>}, {transform_indices = @transform_3, window_bounds = array<i64: 128, 64>}, {transform_indices = @transform_4, window_bounds = array<i64: 16, 64>}, {transform_indices = @transform_5, window_bounds = array<i64: 16, 64>}]} {
    %c0_i32 = arith.constant 0 : i32
    %0 = arith.cmpi eq, %arg1, %c0_i32 : i32
    %1 = arith.extui %0 : i1 to i32
    %c0_i32_0 = arith.constant 0 : i32
    %2 = arith.cmpi ne, %1, %c0_i32_0 : i32
    scf.if %2 {
      %cst_17 = arith.constant 0.000000e+00 : f32
      %23 = vector.broadcast %cst_17 : f32 to vector<16x64xf32>
      %c0_18 = arith.constant 0 : index
      %c0_19 = arith.constant 0 : index
      %24 = vector.load %arg8[%c0_18, %c0_19] : memref<16x64xf32, #tpu.memory_space<vmem>>, vector<16x64xf32>
      tpu.vector_store %arg8[%c0_18, %c0_19], %23 {strides = array<i32>} : memref<16x64xf32, #tpu.memory_space<vmem>>, vector<16x64xf32>,
    } else {
    }
    %c0 = arith.constant 0 : index
    %c0_1 = arith.constant 0 : index
    %3 = vector.load %arg2[%c0, %c0_1] : memref<16x64xf32, #tpu.memory_space<vmem>>, vector<16x64xf32>
    %c0_2 = arith.constant 0 : index
    %c0_3 = arith.constant 0 : index
    %4 = vector.load %arg3[%c0_2, %c0_3] : memref<64x128xf32, #tpu.memory_space<vmem>>, vector<64x128xf32>
    %c0_4 = arith.constant 0 : index
    %c0_5 = arith.constant 0 : index
    %5 = vector.load %arg4[%c0_4, %c0_5] : memref<64x128xf32, #tpu.memory_space<vmem>>, vector<64x128xf32>
    %c0_6 = arith.constant 0 : index
    %c0_7 = arith.constant 0 : index
    %6 = vector.load %arg5[%c0_6, %c0_7] : memref<128x64xf32, #tpu.memory_space<vmem>>, vector<128x64xf32>
    %cst = arith.constant dense<0.000000e+00> : vector<16x128xf32>
    %7 = tpu.matmul %3, %4, %cst {dimension_numbers = #tpu.dot_dimension_numbers<[1], [0], [0], [1], [0, 0, 1, 1], [], []>} : vector<16x64xf32>, vector<64x128xf32>, vector<16x128xf32> -> vector<16x128xf32>
    %cst_8 = arith.constant dense<0.000000e+00> : vector<16x128xf32>
    %8 = tpu.matmul %3, %5, %cst_8 {dimension_numbers = #tpu.dot_dimension_numbers<[1], [0], [0], [1], [0, 0, 1, 1], [], []>} : vector<16x64xf32>, vector<64x128xf32>, vector<16x128xf32> -> vector<16x128xf32>
    %9 = arith.negf %7 : vector<16x128xf32>
    %10 = math.exp %9 : vector<16x128xf32>
    %cst_9 = arith.constant 1.000000e+00 : f32
    %11 = vector.broadcast %cst_9 : f32 to vector<16x128xf32>
    %12 = arith.addf %11, %10 : vector<16x128xf32>
    %13 = arith.divf %11, %12 : vector<16x128xf32>
    %14 = arith.mulf %7, %13 : vector<16x128xf32>
    %15 = arith.mulf %14, %8 : vector<16x128xf32>
    %c0_10 = arith.constant 0 : index
    %c0_11 = arith.constant 0 : index
    %16 = vector.load %arg8[%c0_10, %c0_11] : memref<16x64xf32, #tpu.memory_space<vmem>>, vector<16x64xf32>
    %cst_12 = arith.constant dense<0.000000e+00> : vector<16x64xf32>
    %17 = tpu.matmul %15, %6, %cst_12 {dimension_numbers = #tpu.dot_dimension_numbers<[1], [0], [0], [1], [0, 0, 1, 1], [], []>} : vector<16x128xf32>, vector<128x64xf32>, vector<16x64xf32> -> vector<16x64xf32>
    %18 = arith.addf %16, %17 : vector<16x64xf32>
    %c0_13 = arith.constant 0 : index
    %c0_14 = arith.constant 0 : index
    %19 = vector.load %arg8[%c0_13, %c0_14] : memref<16x64xf32, #tpu.memory_space<vmem>>, vector<16x64xf32>
    tpu.vector_store %arg8[%c0_13, %c0_14], %18 {strides = array<i32>} : memref<16x64xf32, #tpu.memory_space<vmem>>, vector<16x64xf32>,
    %c0_i32_15 = arith.constant 0 : i32
    %20 = arith.cmpi eq, %arg1, %c0_i32_15 : i32
    %21 = arith.extui %20 : i1 to i32
    %c0_i32_16 = arith.constant 0 : i32
    %22 = arith.cmpi ne, %21, %c0_i32_16 : i32
    scf.if %22 {
      %c0_17 = arith.constant 0 : index
      %c0_18 = arith.constant 0 : index
      %23 = vector.load %arg8[%c0_17, %c0_18] : memref<16x64xf32, #tpu.memory_space<vmem>>, vector<16x64xf32>
      %c0_19 = arith.constant 0 : index
      %c0_20 = arith.constant 0 : index
      %24 = vector.load %arg6[%c0_19, %c0_20] : memref<16x64xf32, #tpu.memory_space<vmem>>, vector<16x64xf32>
      %25 = arith.addf %23, %24 : vector<16x64xf32>
      %c0_21 = arith.constant 0 : index
      %c0_22 = arith.constant 0 : index
      %26 = vector.load %arg7[%c0_21, %c0_22] : memref<16x64xf32, #tpu.memory_space<vmem>>, vector<16x64xf32>
      tpu.vector_store %arg7[%c0_21, %c0_22], %25 {strides = array<i32>} : memref<16x64xf32, #tpu.memory_space<vmem>>, vector<16x64xf32>,
    } else {
    }
    return
  }
  func.func @transform_0(%arg0: i32, %arg1: i32) -> (i32, i32) {
    %c0_i32 = arith.constant 0 : i32
    %c0_i32_0 = arith.constant 0 : i32
    return %arg0, %c0_i32 : i32, i32
  }
  func.func @transform_1(%arg0: i32, %arg1: i32) -> (i32, i32) {
    %c0_i32 = arith.constant 0 : i32
    %c0_i32_0 = arith.constant 0 : i32
    return %c0_i32, %arg1 : i32, i32
  }
  func.func @transform_2(%arg0: i32, %arg1: i32) -> (i32, i32) {
    %c0_i32 = arith.constant 0 : i32
    %c0_i32_0 = arith.constant 0 : i32
    return %c0_i32, %arg1 : i32, i32
  }
  func.func @transform_3(%arg0: i32, %arg1: i32) -> (i32, i32) {
    %c0_i32 = arith.constant 0 : i32
    %c0_i32_0 = arith.constant 0 : i32
    return %arg1, %c0_i32 : i32, i32
  }
  func.func @transform_4(%arg0: i32, %arg1: i32) -> (i32, i32) {
    %c0_i32 = arith.constant 0 : i32
    %c0_i32_0 = arith.constant 0 : i32
    return %arg0, %c0_i32 : i32, i32
  }
  func.func @transform_5(%arg0: i32, %arg1: i32) -> (i32, i32) {
    %c0_i32 = arith.constant 0 : i32
    %c0_i32_0 = arith.constant 0 : i32
    return %arg0, %c0_i32 : i32, i32
  }
}

</mosaic_0001>

<llo_original>
// kernel: dolly_decoder_layer.7
$region0: #{dolly_decoder_layer.7}
  #allocation0 [shape = 'u32[]', space=smem, size = 0x4, offset = 0x4, fixed_abs, tag = 'smem constant byte address 0x4 - core index']
  #allocation1 [shape = 'u32[144,128]{1,0:T(1,128)}', space=vmem, size = 0x12000, scoped, tag = 'internal scratch']
  %s0 = inlined_call_operand.vmem [shape: f32[16,64], index: 0, kind: input, shape index: {}]
  %s1 = inlined_call_operand.vmem [shape: f32[1,64], index: 1, kind: input, shape index: {}]
  %s2 = inlined_call_operand.vmem [shape: f32[16,64], index: 2, kind: output, shape index: {}]
  %s3 = sld [smem:[#allocation0]]
  $region18: #{dolly_decoder_layer.7} parent=0
    _
  %s5 = ssub.s32 1, %s3
  %s6 = scalar_select 0, %s5, %s3
  // Predicated region
  $region2: #{dolly_decoder_layer.7} parent=0 // pred_check
    _
  $region3: #{dolly_decoder_layer.7} parent=0 // pred_check_branch
    %8 = sbr.rel (0) target = $region5
  $region4: #{dolly_decoder_layer.7} parent=0 // pred_region
    _
  $region5: #{dolly_decoder_layer.7} parent=0 // pred_fallthru
    _
  // Predicated region
  $region6: #{dolly_decoder_layer.7} parent=0 // pred_check
    _
  $region7: #{dolly_decoder_layer.7} parent=0 // pred_check_branch
    %10 = sbr.rel (0) target = $region9
  $region8: #{dolly_decoder_layer.7} parent=0 // pred_region
    _
  $region9: #{dolly_decoder_layer.7} parent=0 // pred_fallthru
    _
  %v11 = vld [vmem:[%s0] sm:$0xff]
  %v12 = vld [vmem:[%s0 + $0x8] sm:$0xff]
  %v13 = vmul.f32 %v11, %v11
  %v14 = vmul.f32 %v12, %v12
  %vm15 = vcmask 523264
  %v16 = vsel %vm15, %v13, 0.0
  %17 = vadd.xlane.f32.xlu0 %v16
  %v18 = vpop.xlane.xlu0 %17
  %v19 = vsel %vm15, %v14, 0.0
  %20 = vadd.xlane.f32.xlu0 %v19
  %v21 = vpop.xlane.xlu0 %20
  %v22 = vrcp.pop 64.0
  %v23 = vmul.f32 %v18, %v22
  %v24 = vmul.f32 %v21, %v22
  %v25 = vadd.f32 %v23, 1e-06
  %v26 = vadd.f32 %v24, 1e-06
  %v27 = vrsqrt.pop %v25
  %v28 = vrsqrt.pop %v26
  %v29 = vmul.f32 %v11, %v27
  %v30 = vmul.f32 %v12, %v28
  %v31 = vld [vmem:[%s1] sm:$0x1]
  %v33 = vlaneseq
  %v34 = vshrl.u32 %v33, 7
  %v35 = vsub.s32 0, %v34
  %v36 = vrot.slane %v31, %v35
  %v38 = vmul.f32 %v36, %v29
  %v39 = vmul.f32 %v36, %v30
  %40 = vst.msk [vmem:[%s2] sm:$0xff] %vm15, %v38
  %41 = vst.msk [vmem:[%s2 + $0x8] sm:$0xff] %vm15, %v39
  // Predicated region
  $region10: #{dolly_decoder_layer.7} parent=0 // pred_check
    _
  $region11: #{dolly_decoder_layer.7} parent=0 // pred_check_branch
    %43 = sbr.rel (0) target = $region13
  $region12: #{dolly_decoder_layer.7} parent=0 // pred_region
    _
  $region13: #{dolly_decoder_layer.7} parent=0 // pred_fallthru
    _
  // Predicated region
  $region14: #{dolly_decoder_layer.7} parent=0 // pred_check
    _
  $region15: #{dolly_decoder_layer.7} parent=0 // pred_check_branch
    %45 = sbr.rel (0) target = $region17
  $region16: #{dolly_decoder_layer.7} parent=0 // pred_region
    _
  $region17: #{dolly_decoder_layer.7} parent=0 // pred_fallthru
    _

// kernel: dolly_decoder_layer.8
$region0: #{dolly_decoder_layer.8}
  #allocation0 [shape = 'u32[]', space=smem, size = 0x4, offset = 0x4, fixed_abs, tag = 'smem constant byte address 0x4 - core index']
  #allocation1 [shape = 'u32[144,128]{1,0:T(1,128)}', space=vmem, size = 0x12000, scoped, tag = 'internal scratch']
  #allocation2 [shape = 'f32[16,128]{1,0:T(8,128)}', space=vmem, size = 0x2000, scoped, tag = 'scratch operand']
  %s0 = inlined_call_operand.vmem [shape: f32[16,64], index: 0, kind: input, shape index: {}]
  %s1 = inlined_call_operand.hbm [shape: f32[64,128], index: 1, kind: input, shape index: {}]
  %s2 = inlined_call_operand.vmem [shape: f32[16,128], index: 2, kind: output, shape index: {}]
  %s3 = sld [smem:[#allocation0]]
  $region30: #{dolly_decoder_layer.8} parent=0
    _
  %s5 = ssub.s32 1, %s3
  %s6 = scalar_select 0, %s5, %s3
  $region1: #{dolly_decoder_layer.8} parent=0
    #allocation3 [shape = 'u8[32768]{0}', space=vmem, size = 0x8000, scoped, tag = 'input window, operand 1, single buffered']
    #allocation4 [shape = 's32[1]{0}', space=sflag, size = 0x4, scoped, tag = 'scoped memory for dolly_decoder_layer.8']
    %7 = vsyncpa [#allocation4], 0
    // Predicated region
    $region2: #{dolly_decoder_layer.8} parent=1 // pred_check
      _
    $region3: #{dolly_decoder_layer.8} parent=1 // pred_check_branch
      %9 = sbr.rel (0) target = $region5
    $region4: #{dolly_decoder_layer.8} parent=1 // pred_region
      _
    $region5: #{dolly_decoder_layer.8} parent=1 // pred_fallthru
      _
    // Predicated region
    $region6: #{dolly_decoder_layer.8} parent=1 // pred_check
      _
    $region7: #{dolly_decoder_layer.8} parent=1 // pred_check_branch
      %11 = sbr.rel (0) target = $region9
    $region8: #{dolly_decoder_layer.8} parent=1 // pred_region
      %s13 = ssub.s32 1024, 1024
      %14 = vsyncadd [#allocation4], %s13
      %s15 = sshll.u32 [#allocation3], 4
      %s16 = int_to_ptr.vmem [resolvable:$true] %s15
      %21 = dma.hbm_to_vmem [thread:$0]  %s1, 1024, %s16, [#allocation4], 128, 128, 8
    $region9: #{dolly_decoder_layer.8} parent=1 // pred_fallthru
      _
    // Predicated region
    $region10: #{dolly_decoder_layer.8} parent=1 // pred_check
      _
    $region11: #{dolly_decoder_layer.8} parent=1 // pred_check_branch
      %23 = sbr.rel (0) target = $region13
    $region12: #{dolly_decoder_layer.8} parent=1 // pred_region
      %24 = dma.done [#allocation4], 1024
    $region13: #{dolly_decoder_layer.8} parent=1 // pred_fallthru
      _
    %p25 = scmp.eq.s32.totalorder 0, 0
    // Predicated region
    $region14: #{dolly_decoder_layer.8} parent=1 // pred_check
      %p26 = pneg %p25
    $region15: #{dolly_decoder_layer.8} parent=1 // pred_check_branch
      %28 = sbr.rel (%p26) target = $region17
    $region16: #{dolly_decoder_layer.8} parent=1 // pred_region
      %29 = vst [vmem:[#allocation2] sm:$0xff] 0.0
      %30 = vst [vmem:[#allocation2 + $0x8] sm:$0xff] 0.0
    $region17: #{dolly_decoder_layer.8} parent=1 // pred_fallthru
      _
    %v31 = vld [vmem:[%s0] sm:$0xff]
    %v32 = vld [vmem:[%s0 + $0x8] sm:$0xff]
    %v33 = vld [vmem:[#allocation3] sm:$0xff]
    %v34 = vld [vmem:[#allocation3 + $0x8] sm:$0xff]
    %v35 = vld [vmem:[#allocation3 + $0x10] sm:$0xff]
    %v36 = vld [vmem:[#allocation3 + $0x18] sm:$0xff]
    %v37 = vld [vmem:[#allocation3 + $0x20] sm:$0xff]
    %v38 = vld [vmem:[#allocation3 + $0x28] sm:$0xff]
    %v39 = vld [vmem:[#allocation3 + $0x30] sm:$0xff]
    %v40 = vld [vmem:[#allocation3 + $0x38] sm:$0xff]
    %v41 = vld [vmem:[#allocation2] sm:$0xff]
    %v42 = vld [vmem:[#allocation2 + $0x8] sm:$0xff]
    %vm43 = vcmask 523264
    %v45 = vsel %vm43, %v31, 0
    %v48 = vsel %vm43, %v32, 0
    %50 = vmatprep.subr.mxu0 0.0
    %51 = vmatpush1.msra.mxu0 %v33
    %52 = vmatprep.subr.mxu0 0.0
    %53 = vmatpush1.msra.mxu0 %v34
    %54 = vmatprep.subr.mxu0 0.0
    %55 = vmatpush1.msra.mxu0 %v35
    %56 = vmatprep.subr.mxu0 0.0
    %57 = vmatpush1.msra.mxu0 %v36
    %58 = vmatprep.subr.mxu0 0.0
    %59 = vmatpush1.msra.mxu0 %v37
    %60 = vmatprep.subr.mxu0 0.0
    %61 = vmatpush1.msra.mxu0 %v38
    %62 = vmatprep.subr.mxu0 0.0
    %63 = vmatpush1.msra.mxu0 %v39
    %64 = vmatprep.subr.mxu0 0.0
    %65 = vmatpush1.msra.mxu0 %v40
    %66 = vmatprep.subr.mxu0 0.0
    %67 = vmatpush1.msra.mxu0 0.0
    %68 = vmatprep.subr.mxu0 0.0
    %69 = vmatpush1.msra.mxu0 0.0
    %70 = vmatprep.subr.mxu0 0.0
    %71 = vmatpush1.msra.mxu0 0.0
    %72 = vmatprep.subr.mxu0 0.0
    %73 = vmatpush1.msra.mxu0 0.0
    %74 = vmatprep.subr.mxu0 0.0
    %75 = vmatpush1.msra.mxu0 0.0
    %76 = vmatprep.subr.mxu0 0.0
    %77 = vmatpush1.msra.mxu0 0.0
    %78 = vmatprep.subr.mxu0 0.0
    %79 = vmatpush1.msra.mxu0 0.0
    %80 = vmatprep.subr.mxu0 0.0
    %81 = vmatpush1.msra.mxu0 0.0
    %82 = vmatprep.subr.mxu0 0.0
    %83 = vmatpush1.msra.mxu0 0.0
    %84 = vmatprep.subr.mxu0 0.0
    %85 = vmatpush1.msra.mxu0 0.0
    %86 = vmatprep.subr.mxu0 0.0
    %87 = vmatpush1.msra.mxu0 0.0
    %88 = vmatprep.subr.mxu0 0.0
    %89 = vmatpush1.msra.mxu0 0.0
    %90 = vmatprep.subr.mxu0 0.0
    %91 = vmatpush1.msra.mxu0 0.0
    %92 = vmatprep.subr.mxu0 0.0
    %93 = vmatpush1.msra.mxu0 0.0
    %94 = vmatprep.subr.mxu0 0.0
    %95 = vmatpush1.msra.mxu0 0.0
    %96 = vmatprep.subr.mxu0 0.0
    %97 = vmatpush1.msra.mxu0 0.0
    %98 = vmatprep.subr.mxu0 0.0
    %99 = vmatpush1.msra.mxu0 0.0
    %100 = vmatprep.subr.mxu0 0.0
    %101 = vmatpush1.msra.mxu0 0.0
    %102 = vmatprep.subr.mxu0 0.0
    %103 = vmatpush1.msra.mxu0 0.0
    %104 = vmatprep.subr.mxu0 0.0
    %105 = vmatpush1.msra.mxu0 0.0
    %106 = vmatprep.subr.mxu0 0.0
    %107 = vmatpush1.msra.mxu0 0.0
    %108 = vmatprep.subr.mxu0 0.0
    %109 = vmatpush1.msra.mxu0 0.0
    %110 = vmatprep.subr.mxu0 0.0
    %111 = vmatpush1.msra.mxu0 0.0
    %112 = vmatprep.subr.mxu0 0.0
    %113 = vmatpush1.msra.mxu0 0.0
    %114 = vmatprep.mubr.f32.mxu0 0.0
    %115 = vmatmul.mubr.f32.gmra.mrb[0].mxu0 %v45
    %v116 = vpop.f32.mrb[0].mxu0
    %v117 = vadd.f32 0.0, %v116
    %v118 = vpop.f32.mrb[0].mxu0
    %119 = vmatprep.mubr.f32.mxu0 0.0
    %120 = vmatmul.mubr.f32.gmra.mrb[0].mxu0 %v48
    %v121 = vpop.f32.mrb[0].mxu0
    %v122 = vadd.f32 0.0, %v121
    %v123 = vpop.f32.mrb[0].mxu0
    %124 = vdwg.mxu0
    %v125 = vadd.f32 %v41, %v117
    %v126 = vadd.f32 %v42, %v122
    %127 = vst [vmem:[#allocation2] sm:$0xff] %v125
    %128 = vst [vmem:[#allocation2 + $0x8] sm:$0xff] %v126
    // Predicated region
    $region18: #{dolly_decoder_layer.8} parent=1 // pred_check
      %p129 = pneg %p25
    $region19: #{dolly_decoder_layer.8} parent=1 // pred_check_branch
      %131 = sbr.rel (%p129) target = $region21
    $region20: #{dolly_decoder_layer.8} parent=1 // pred_region
      %v132 = vld [vmem:[#allocation2] sm:$0xff]
      %v133 = vld [vmem:[#allocation2 + $0x8] sm:$0xff]
      %134 = vst [vmem:[%s2] sm:$0xff] %v132
      %135 = vst [vmem:[%s2 + $0x8] sm:$0xff] %v133
    $region21: #{dolly_decoder_layer.8} parent=1 // pred_fallthru
      _
    // Predicated region
    $region22: #{dolly_decoder_layer.8} parent=1 // pred_check
      _
    $region23: #{dolly_decoder_layer.8} parent=1 // pred_check_branch
      %137 = sbr.rel (0) target = $region25
    $region24: #{dolly_decoder_layer.8} parent=1 // pred_region
      _
    $region25: #{dolly_decoder_layer.8} parent=1 // pred_fallthru
      _
    // Predicated region
    $region26: #{dolly_decoder_layer.8} parent=1 // pred_check
      _
    $region27: #{dolly_decoder_layer.8} parent=1 // pred_check_branch
      %139 = sbr.rel (0) target = $region29
    $region28: #{dolly_decoder_layer.8} parent=1 // pred_region
      _
    $region29: #{dolly_decoder_layer.8} parent=1 // pred_fallthru
      _
    %140 = vsyncpa [#allocation4], 1

// kernel: dolly_decoder_layer.9
$region0: #{dolly_decoder_layer.9}
  #allocation0 [shape = 'u32[]', space=smem, size = 0x4, offset = 0x4, fixed_abs, tag = 'smem constant byte address 0x4 - core index']
  #allocation1 [shape = 'u32[144,128]{1,0:T(1,128)}', space=vmem, size = 0x12000, scoped, tag = 'internal scratch']
  %s0 = inlined_call_operand.vmem [shape: f32[16,4,16], index: 0, kind: input, shape index: {}]
  %s1 = inlined_call_operand.vmem [shape: f32[16,2,16], index: 1, kind: input, shape index: {}]
  %s2 = inlined_call_operand.vmem [shape: f32[16,16], index: 2, kind: input, shape index: {}]
  %s3 = inlined_call_operand.vmem [shape: f32[16,16], index: 3, kind: input, shape index: {}]
  %s4 = inlined_call_operand.vmem [shape: f32[1,1,16], index: 4, kind: input, shape index: {}]
  %s5 = inlined_call_operand.vmem [shape: f32[1,1,16], index: 5, kind: input, shape index: {}]
  %s6 = inlined_call_operand.vmem [shape: f32[16,4,16], index: 6, kind: output, shape index: {0}]
  %s7 = inlined_call_operand.vmem [shape: f32[16,2,16], index: 7, kind: output, shape index: {1}]
  %8 = xla_tuple %s6, %s7
  %s9 = sld [smem:[#allocation0]]
  $region42: #{dolly_decoder_layer.9} parent=0
    _
  %s11 = ssub.s32 1, %s9
  %s12 = scalar_select 0, %s11, %s9
  // Predicated region
  $region2: #{dolly_decoder_layer.9} parent=0 // pred_check
    _
  $region3: #{dolly_decoder_layer.9} parent=0 // pred_check_branch
    %14 = sbr.rel (0) target = $region5
  $region4: #{dolly_decoder_layer.9} parent=0 // pred_region
    _
  $region5: #{dolly_decoder_layer.9} parent=0 // pred_fallthru
    _
  // Predicated region
  $region6: #{dolly_decoder_layer.9} parent=0 // pred_check
    _
  $region7: #{dolly_decoder_layer.9} parent=0 // pred_check_branch
    %16 = sbr.rel (0) target = $region9
  $region8: #{dolly_decoder_layer.9} parent=0 // pred_region
    _
  $region9: #{dolly_decoder_layer.9} parent=0 // pred_fallthru
    _
  // Predicated region
  $region10: #{dolly_decoder_layer.9} parent=0 // pred_check
    _
  $region11: #{dolly_decoder_layer.9} parent=0 // pred_check_branch
    %18 = sbr.rel (0) target = $region13
  $region12: #{dolly_decoder_layer.9} parent=0 // pred_region
    _
  $region13: #{dolly_decoder_layer.9} parent=0 // pred_fallthru
    _
  // Predicated region
  $region14: #{dolly_decoder_layer.9} parent=0 // pred_check
    _
  $region15: #{dolly_decoder_layer.9} parent=0 // pred_check_branch
    %20 = sbr.rel (0) target = $region17
  $region16: #{dolly_decoder_layer.9} parent=0 // pred_region
    _
  $region17: #{dolly_decoder_layer.9} parent=0 // pred_fallthru
    _
  // Predicated region
  $region18: #{dolly_decoder_layer.9} parent=0 // pred_check
    _
  $region19: #{dolly_decoder_layer.9} parent=0 // pred_check_branch
    %22 = sbr.rel (0) target = $region21
  $region20: #{dolly_decoder_layer.9} parent=0 // pred_region
    _
  $region21: #{dolly_decoder_layer.9} parent=0 // pred_fallthru
    _
  // Predicated region
  $region22: #{dolly_decoder_layer.9} parent=0 // pred_check
    _
  $region23: #{dolly_decoder_layer.9} parent=0 // pred_check_branch
    %24 = sbr.rel (0) target = $region25
  $region24: #{dolly_decoder_layer.9} parent=0 // pred_region
    _
  $region25: #{dolly_decoder_layer.9} parent=0 // pred_fallthru
    _
  %v25 = vld [vmem:[%s2] sm:$0xff]
  %v26 = vld [vmem:[%s2 + $0x8] sm:$0xff]
  %v29 = vcombine.high %v25, %v25
  %v31 = vunpack.c.l.s4 1966171168
  %v32 = vunpack.c.0.s8 %v31
  %v33 = vlaneseq
  %v34 = vshrl.u32 %v33, 7
  %v35 = vsub.s32 %v32, %v34
  %v36 = vrot.slane %v25, %v35
  %v38 = vunpack.c.l.s4 1966171168
  %v39 = vunpack.c.0.s8 %v38
  %v40 = vlaneseq
  %v41 = vshrl.u32 %v40, 7
  %v42 = vsub.s32 %v39, %v41
  %v43 = vrot.slane %v29, %v42
  %v44 = vcombine.high %v36, %v36
  %v45 = vcombine.high %v43, %v43
  %v47 = vunpack.c.l.s4 1966171168
  %v48 = vunpack.c.0.s8 %v47
  %v49 = vlaneseq
  %v50 = vshrl.u32 %v49, 7
  %v51 = vsub.s32 %v48, %v50
  %v52 = vrot.slane %v36, %v51
  %v54 = vunpack.c.l.s4 1966171168
  %v55 = vunpack.c.0.s8 %v54
  %v56 = vlaneseq
  %v57 = vshrl.u32 %v56, 7
  %v58 = vsub.s32 %v55, %v57
  %v59 = vrot.slane %v43, %v58
  %v61 = vunpack.c.l.s4 1966171168
  %v62 = vunpack.c.0.s8 %v61
  %v63 = vlaneseq
  %v64 = vshrl.u32 %v63, 7
  %v65 = vsub.s32 %v62, %v64
  %v66 = vrot.slane %v44, %v65
  %v68 = vunpack.c.l.s4 1966171168
  %v69 = vunpack.c.0.s8 %v68
  %v70 = vlaneseq
  %v71 = vshrl.u32 %v70, 7
  %v72 = vsub.s32 %v69, %v71
  %v73 = vrot.slane %v45, %v72
  %v74 = vcombine.high %v52, %v52
  %v75 = vcombine.high %v59, %v59
  %v76 = vcombine.high %v66, %v66
  %v77 = vcombine.high %v73, %v73
  %v78 = vcombine.high %v26, %v26
  %v80 = vunpack.c.l.s4 1966171168
  %v81 = vunpack.c.0.s8 %v80
  %v82 = vlaneseq
  %v83 = vshrl.u32 %v82, 7
  %v84 = vsub.s32 %v81, %v83
  %v85 = vrot.slane %v26, %v84
  %v87 = vunpack.c.l.s4 1966171168
  %v88 = vunpack.c.0.s8 %v87
  %v89 = vlaneseq
  %v90 = vshrl.u32 %v89, 7
  %v91 = vsub.s32 %v88, %v90
  %v92 = vrot.slane %v78, %v91
  %v93 = vcombine.high %v85, %v85
  %v94 = vcombine.high %v92, %v92
  %v96 = vunpack.c.l.s4 1966171168
  %v97 = vunpack.c.0.s8 %v96
  %v98 = vlaneseq
  %v99 = vshrl.u32 %v98, 7
  %v100 = vsub.s32 %v97, %v99
  %v101 = vrot.slane %v85, %v100
  %v103 = vunpack.c.l.s4 1966171168
  %v104 = vunpack.c.0.s8 %v103
  %v105 = vlaneseq
  %v106 = vshrl.u32 %v105, 7
  %v107 = vsub.s32 %v104, %v106
  %v108 = vrot.slane %v92, %v107
  %v110 = vunpack.c.l.s4 1966171168
  %v111 = vunpack.c.0.s8 %v110
  %v112 = vlaneseq
  %v113 = vshrl.u32 %v112, 7
  %v114 = vsub.s32 %v111, %v113
  %v115 = vrot.slane %v93, %v114
  %v117 = vunpack.c.l.s4 1966171168
  %v118 = vunpack.c.0.s8 %v117
  %v119 = vlaneseq
  %v120 = vshrl.u32 %v119, 7
  %v121 = vsub.s32 %v118, %v120
  %v122 = vrot.slane %v94, %v121
  %v123 = vcombine.high %v101, %v101
  %v124 = vcombine.high %v108, %v108
  %v125 = vcombine.high %v115, %v115
  %v126 = vcombine.high %v122, %v122
  %v127 = vld [vmem:[%s3] sm:$0xff]
  %v128 = vld [vmem:[%s3 + $0x8] sm:$0xff]
  %v131 = vcombine.high %v127, %v127
  %v133 = vunpack.c.l.s4 1966171168
  %v134 = vunpack.c.0.s8 %v133
  %v135 = vlaneseq
  %v136 = vshrl.u32 %v135, 7
  %v137 = vsub.s32 %v134, %v136
  %v138 = vrot.slane %v127, %v137
  %v140 = vunpack.c.l.s4 1966171168
  %v141 = vunpack.c.0.s8 %v140
  %v142 = vlaneseq
  %v143 = vshrl.u32 %v142, 7
  %v144 = vsub.s32 %v141, %v143
  %v145 = vrot.slane %v131, %v144
  %v146 = vcombine.high %v138, %v138
  %v147 = vcombine.high %v145, %v145
  %v149 = vunpack.c.l.s4 1966171168
  %v150 = vunpack.c.0.s8 %v149
  %v151 = vlaneseq
  %v152 = vshrl.u32 %v151, 7
  %v153 = vsub.s32 %v150, %v152
  %v154 = vrot.slane %v138, %v153
  %v156 = vunpack.c.l.s4 1966171168
  %v157 = vunpack.c.0.s8 %v156
  %v158 = vlaneseq
  %v159 = vshrl.u32 %v158, 7
  %v160 = vsub.s32 %v157, %v159
  %v161 = vrot.slane %v145, %v160
  %v163 = vunpack.c.l.s4 1966171168
  %v164 = vunpack.c.0.s8 %v163
  %v165 = vlaneseq
  %v166 = vshrl.u32 %v165, 7
  %v167 = vsub.s32 %v164, %v166
  %v168 = vrot.slane %v146, %v167
  %v170 = vunpack.c.l.s4 1966171168
  %v171 = vunpack.c.0.s8 %v170
  %v172 = vlaneseq
  %v173 = vshrl.u32 %v172, 7
  %v174 = vsub.s32 %v171, %v173
  %v175 = vrot.slane %v147, %v174
  %v176 = vcombine.high %v154, %v154
  %v177 = vcombine.high %v161, %v161
  %v178 = vcombine.high %v168, %v168
  %v179 = vcombine.high %v175, %v175
  %v180 = vcombine.high %v128, %v128
  %v182 = vunpack.c.l.s4 1966171168
  %v183 = vunpack.c.0.s8 %v182
  %v184 = vlaneseq
  %v185 = vshrl.u32 %v184, 7
  %v186 = vsub.s32 %v183, %v185
  %v187 = vrot.slane %v128, %v186
  %v189 = vunpack.c.l.s4 1966171168
  %v190 = vunpack.c.0.s8 %v189
  %v191 = vlaneseq
  %v192 = vshrl.u32 %v191, 7
  %v193 = vsub.s32 %v190, %v192
  %v194 = vrot.slane %v180, %v193
  %v195 = vcombine.high %v187, %v187
  %v196 = vcombine.high %v194, %v194
  %v198 = vunpack.c.l.s4 1966171168
  %v199 = vunpack.c.0.s8 %v198
  %v200 = vlaneseq
  %v201 = vshrl.u32 %v200, 7
  %v202 = vsub.s32 %v199, %v201
  %v203 = vrot.slane %v187, %v202
  %v205 = vunpack.c.l.s4 1966171168
  %v206 = vunpack.c.0.s8 %v205
  %v207 = vlaneseq
  %v208 = vshrl.u32 %v207, 7
  %v209 = vsub.s32 %v206, %v208
  %v210 = vrot.slane %v194, %v209
  %v212 = vunpack.c.l.s4 1966171168
  %v213 = vunpack.c.0.s8 %v212
  %v214 = vlaneseq
  %v215 = vshrl.u32 %v214, 7
  %v216 = vsub.s32 %v213, %v215
  %v217 = vrot.slane %v195, %v216
  %v219 = vunpack.c.l.s4 1966171168
  %v220 = vunpack.c.0.s8 %v219
  %v221 = vlaneseq
  %v222 = vshrl.u32 %v221, 7
  %v223 = vsub.s32 %v220, %v222
  %v224 = vrot.slane %v196, %v223
  %v225 = vcombine.high %v203, %v203
  %v226 = vcombine.high %v210, %v210
  %v227 = vcombine.high %v217, %v217
  %v228 = vcombine.high %v224, %v224
  %v229 = vld [vmem:[%s0] sm:$0xf]
  %v230 = vld [vmem:[%s0 + $0x4] sm:$0xf]
  %v231 = vld [vmem:[%s0 + $0x8] sm:$0xf]
  %v232 = vld [vmem:[%s0 + $0xc] sm:$0xf]
  %v233 = vld [vmem:[%s0 + $0x10] sm:$0xf]
  %v234 = vld [vmem:[%s0 + $0x14] sm:$0xf]
  %v235 = vld [vmem:[%s0 + $0x18] sm:$0xf]
  %v236 = vld [vmem:[%s0 + $0x1c] sm:$0xf]
  %v237 = vld [vmem:[%s0 + $0x20] sm:$0xf]
  %v238 = vld [vmem:[%s0 + $0x24] sm:$0xf]
  %v239 = vld [vmem:[%s0 + $0x28] sm:$0xf]
  %v240 = vld [vmem:[%s0 + $0x2c] sm:$0xf]
  %v241 = vld [vmem:[%s0 + $0x30] sm:$0xf]
  %v242 = vld [vmem:[%s0 + $0x34] sm:$0xf]
  %v243 = vld [vmem:[%s0 + $0x38] sm:$0xf]
  %v244 = vld [vmem:[%s0 + $0x3c] sm:$0xf]
  %v245 = vmul.f32 %v229, %v229
  %v246 = vmul.f32 %v230, %v230
  %v247 = vmul.f32 %v231, %v231
  %v248 = vmul.f32 %v232, %v232
  %v249 = vmul.f32 %v233, %v233
  %v250 = vmul.f32 %v234, %v234
  %v251 = vmul.f32 %v235, %v235
  %v252 = vmul.f32 %v236, %v236
  %v253 = vmul.f32 %v237, %v237
  %v254 = vmul.f32 %v238, %v238
  %v255 = vmul.f32 %v239, %v239
  %v256 = vmul.f32 %v240, %v240
  %v257 = vmul.f32 %v241, %v241
  %v258 = vmul.f32 %v242, %v242
  %v259 = vmul.f32 %v243, %v243
  %v260 = vmul.f32 %v244, %v244
  %vm261 = vcmask 125952
  %v262 = vsel %vm261, %v245, 0.0
  %263 = vadd.xlane.f32.xlu0 %v262
  %v264 = vpop.xlane.xlu0 %263
  %v265 = vsel %vm261, %v246, 0.0
  %266 = vadd.xlane.f32.xlu0 %v265
  %v267 = vpop.xlane.xlu0 %266
  %v268 = vsel %vm261, %v247, 0.0
  %269 = vadd.xlane.f32.xlu0 %v268
  %v270 = vpop.xlane.xlu0 %269
  %v271 = vsel %vm261, %v248, 0.0
  %272 = vadd.xlane.f32.xlu0 %v271
  %v273 = vpop.xlane.xlu0 %272
  %v274 = vsel %vm261, %v249, 0.0
  %275 = vadd.xlane.f32.xlu0 %v274
  %v276 = vpop.xlane.xlu0 %275
  %v277 = vsel %vm261, %v250, 0.0
  %278 = vadd.xlane.f32.xlu0 %v277
  %v279 = vpop.xlane.xlu0 %278
  %v280 = vsel %vm261, %v251, 0.0
  %281 = vadd.xlane.f32.xlu0 %v280
  %v282 = vpop.xlane.xlu0 %281
  %v283 = vsel %vm261, %v252, 0.0
  %284 = vadd.xlane.f32.xlu0 %v283
  %v285 = vpop.xlane.xlu0 %284
  %v286 = vsel %vm261, %v253, 0.0
  %287 = vadd.xlane.f32.xlu0 %v286
  %v288 = vpop.xlane.xlu0 %287
  %v289 = vsel %vm261, %v254, 0.0
  %290 = vadd.xlane.f32.xlu0 %v289
  %v291 = vpop.xlane.xlu0 %290
  %v292 = vsel %vm261, %v255, 0.0
  %293 = vadd.xlane.f32.xlu0 %v292
  %v294 = vpop.xlane.xlu0 %293
  %v295 = vsel %vm261, %v256, 0.0
  %296 = vadd.xlane.f32.xlu0 %v295
  %v297 = vpop.xlane.xlu0 %296
  %v298 = vsel %vm261, %v257, 0.0
  %299 = vadd.xlane.f32.xlu0 %v298
  %v300 = vpop.xlane.xlu0 %299
  %v301 = vsel %vm261, %v258, 0.0
  %302 = vadd.xlane.f32.xlu0 %v301
  %v303 = vpop.xlane.xlu0 %302
  %v304 = vsel %vm261, %v259, 0.0
  %305 = vadd.xlane.f32.xlu0 %v304
  %v306 = vpop.xlane.xlu0 %305
  %v307 = vsel %vm261, %v260, 0.0
  %308 = vadd.xlane.f32.xlu0 %v307
  %v309 = vpop.xlane.xlu0 %308
  %v310 = vrcp.pop 16.0
  %v311 = vmul.f32 %v264, %v310
  %v312 = vmul.f32 %v267, %v310
  %v313 = vmul.f32 %v270, %v310
  %v314 = vmul.f32 %v273, %v310
  %v315 = vmul.f32 %v276, %v310
  %v316 = vmul.f32 %v279, %v310
  %v317 = vmul.f32 %v282, %v310
  %v318 = vmul.f32 %v285, %v310
  %v319 = vmul.f32 %v288, %v310
  %v320 = vmul.f32 %v291, %v310
  %v321 = vmul.f32 %v294, %v310
  %v322 = vmul.f32 %v297, %v310
  %v323 = vmul.f32 %v300, %v310
  %v324 = vmul.f32 %v303, %v310
  %v325 = vmul.f32 %v306, %v310
  %v326 = vmul.f32 %v309, %v310
  %v327 = vadd.f32 %v311, 1e-06
  %v328 = vadd.f32 %v312, 1e-06
  %v329 = vadd.f32 %v313, 1e-06
  %v330 = vadd.f32 %v314, 1e-06
  %v331 = vadd.f32 %v315, 1e-06
  %v332 = vadd.f32 %v316, 1e-06
  %v333 = vadd.f32 %v317, 1e-06
  %v334 = vadd.f32 %v318, 1e-06
  %v335 = vadd.f32 %v319, 1e-06
  %v336 = vadd.f32 %v320, 1e-06
  %v337 = vadd.f32 %v321, 1e-06
  %v338 = vadd.f32 %v322, 1e-06
  %v339 = vadd.f32 %v323, 1e-06
  %v340 = vadd.f32 %v324, 1e-06
  %v341 = vadd.f32 %v325, 1e-06
  %v342 = vadd.f32 %v326, 1e-06
  %v343 = vrsqrt.pop %v327
  %v344 = vrsqrt.pop %v328
  %v345 = vrsqrt.pop %v329
  %v346 = vrsqrt.pop %v330
  %v347 = vrsqrt.pop %v331
  %v348 = vrsqrt.pop %v332
  %v349 = vrsqrt.pop %v333
  %v350 = vrsqrt.pop %v334
  %v351 = vrsqrt.pop %v335
  %v352 = vrsqrt.pop %v336
  %v353 = vrsqrt.pop %v337
  %v354 = vrsqrt.pop %v338
  %v355 = vrsqrt.pop %v339
  %v356 = vrsqrt.pop %v340
  %v357 = vrsqrt.pop %v341
  %v358 = vrsqrt.pop %v342
  %v359 = vmul.f32 %v229, %v343
  %v360 = vmul.f32 %v230, %v344
  %v361 = vmul.f32 %v231, %v345
  %v362 = vmul.f32 %v232, %v346
  %v363 = vmul.f32 %v233, %v347
  %v364 = vmul.f32 %v234, %v348
  %v365 = vmul.f32 %v235, %v349
  %v366 = vmul.f32 %v236, %v350
  %v367 = vmul.f32 %v237, %v351
  %v368 = vmul.f32 %v238, %v352
  %v369 = vmul.f32 %v239, %v353
  %v370 = vmul.f32 %v240, %v354
  %v371 = vmul.f32 %v241, %v355
  %v372 = vmul.f32 %v242, %v356
  %v373 = vmul.f32 %v243, %v357
  %v374 = vmul.f32 %v244, %v358
  %v375 = vld [vmem:[%s4] sm:$0x1]
  %v377 = vlaneseq
  %v378 = vshrl.u32 %v377, 7
  %v379 = vsub.s32 0, %v378
  %v380 = vrot.slane %v375, %v379
  %v382 = vmul.f32 %v380, %v359
  %v383 = vmul.f32 %v380, %v360
  %v384 = vmul.f32 %v380, %v361
  %v385 = vmul.f32 %v380, %v362
  %v386 = vmul.f32 %v380, %v363
  %v387 = vmul.f32 %v380, %v364
  %v388 = vmul.f32 %v380, %v365
  %v389 = vmul.f32 %v380, %v366
  %v390 = vmul.f32 %v380, %v367
  %v391 = vmul.f32 %v380, %v368
  %v392 = vmul.f32 %v380, %v369
  %v393 = vmul.f32 %v380, %v370
  %v394 = vmul.f32 %v380, %v371
  %v395 = vmul.f32 %v380, %v372
  %v396 = vmul.f32 %v380, %v373
  %v397 = vmul.f32 %v380, %v374
  %v398 = vsub.f32 0.0, %v382
  %v399 = vsub.f32 0.0, %v383
  %v400 = vsub.f32 0.0, %v384
  %v401 = vsub.f32 0.0, %v385
  %v402 = vsub.f32 0.0, %v386
  %v403 = vsub.f32 0.0, %v387
  %v404 = vsub.f32 0.0, %v388
  %v405 = vsub.f32 0.0, %v389
  %v406 = vsub.f32 0.0, %v390
  %v407 = vsub.f32 0.0, %v391
  %v408 = vsub.f32 0.0, %v392
  %v409 = vsub.f32 0.0, %v393
  %v410 = vsub.f32 0.0, %v394
  %v411 = vsub.f32 0.0, %v395
  %v412 = vsub.f32 0.0, %v396
  %v413 = vsub.f32 0.0, %v397
  %430 = vrot.lane.b32.xlu0 %v398, 120
  %v431 = vpop.permute.xlu0 %430
  %432 = vrot.lane.b32.xlu0 %v399, 120
  %v433 = vpop.permute.xlu0 %432
  %434 = vrot.lane.b32.xlu0 %v400, 120
  %v435 = vpop.permute.xlu0 %434
  %436 = vrot.lane.b32.xlu0 %v401, 120
  %v437 = vpop.permute.xlu0 %436
  %438 = vrot.lane.b32.xlu0 %v402, 120
  %v439 = vpop.permute.xlu0 %438
  %440 = vrot.lane.b32.xlu0 %v403, 120
  %v441 = vpop.permute.xlu0 %440
  %442 = vrot.lane.b32.xlu0 %v404, 120
  %v443 = vpop.permute.xlu0 %442
  %444 = vrot.lane.b32.xlu0 %v405, 120
  %v445 = vpop.permute.xlu0 %444
  %446 = vrot.lane.b32.xlu0 %v406, 120
  %v447 = vpop.permute.xlu0 %446
  %448 = vrot.lane.b32.xlu0 %v407, 120
  %v449 = vpop.permute.xlu0 %448
  %450 = vrot.lane.b32.xlu0 %v408, 120
  %v451 = vpop.permute.xlu0 %450
  %452 = vrot.lane.b32.xlu0 %v409, 120
  %v453 = vpop.permute.xlu0 %452
  %454 = vrot.lane.b32.xlu0 %v410, 120
  %v455 = vpop.permute.xlu0 %454
  %456 = vrot.lane.b32.xlu0 %v411, 120
  %v457 = vpop.permute.xlu0 %456
  %458 = vrot.lane.b32.xlu0 %v412, 120
  %v459 = vpop.permute.xlu0 %458
  %460 = vrot.lane.b32.xlu0 %v413, 120
  %v461 = vpop.permute.xlu0 %460
  %494 = vrot.lane.b32.xlu0 %v382, 8
  %v495 = vpop.permute.xlu0 %494
  %496 = vrot.lane.b32.xlu0 %v383, 8
  %v497 = vpop.permute.xlu0 %496
  %498 = vrot.lane.b32.xlu0 %v384, 8
  %v499 = vpop.permute.xlu0 %498
  %500 = vrot.lane.b32.xlu0 %v385, 8
  %v501 = vpop.permute.xlu0 %500
  %502 = vrot.lane.b32.xlu0 %v386, 8
  %v503 = vpop.permute.xlu0 %502
  %504 = vrot.lane.b32.xlu0 %v387, 8
  %v505 = vpop.permute.xlu0 %504
  %506 = vrot.lane.b32.xlu0 %v388, 8
  %v507 = vpop.permute.xlu0 %506
  %508 = vrot.lane.b32.xlu0 %v389, 8
  %v509 = vpop.permute.xlu0 %508
  %510 = vrot.lane.b32.xlu0 %v390, 8
  %v511 = vpop.permute.xlu0 %510
  %512 = vrot.lane.b32.xlu0 %v391, 8
  %v513 = vpop.permute.xlu0 %512
  %514 = vrot.lane.b32.xlu0 %v392, 8
  %v515 = vpop.permute.xlu0 %514
  %516 = vrot.lane.b32.xlu0 %v393, 8
  %v517 = vpop.permute.xlu0 %516
  %518 = vrot.lane.b32.xlu0 %v394, 8
  %v519 = vpop.permute.xlu0 %518
  %520 = vrot.lane.b32.xlu0 %v395, 8
  %v521 = vpop.permute.xlu0 %520
  %522 = vrot.lane.b32.xlu0 %v396, 8
  %v523 = vpop.permute.xlu0 %522
  %524 = vrot.lane.b32.xlu0 %v397, 8
  %v525 = vpop.permute.xlu0 %524
  %vm542 = vcmask 64512
  %v543 = vsel %vm542, %v431, %v495
  %v544 = vsel %vm542, %v433, %v497
  %v545 = vsel %vm542, %v435, %v499
  %v546 = vsel %vm542, %v437, %v501
  %v547 = vsel %vm542, %v439, %v503
  %v548 = vsel %vm542, %v441, %v505
  %v549 = vsel %vm542, %v443, %v507
  %v550 = vsel %vm542, %v445, %v509
  %v551 = vsel %vm542, %v447, %v511
  %v552 = vsel %vm542, %v449, %v513
  %v553 = vsel %vm542, %v451, %v515
  %v554 = vsel %vm542, %v453, %v517
  %v555 = vsel %vm542, %v455, %v519
  %v556 = vsel %vm542, %v457, %v521
  %v557 = vsel %vm542, %v459, %v523
  %v558 = vsel %vm542, %v461, %v525
  %v559 = vlaneseq
  %v560 = vshrl.u32 %v559, 7
  %v561 = vsub.s32 0, %v560
  %v562 = vrot.slane %v52, %v561
  %v563 = vlaneseq
  %v564 = vshrl.u32 %v563, 7
  %v565 = vsub.s32 0, %v564
  %v566 = vrot.slane %v66, %v565
  %v567 = vlaneseq
  %v568 = vshrl.u32 %v567, 7
  %v569 = vsub.s32 0, %v568
  %v570 = vrot.slane %v74, %v569
  %v571 = vlaneseq
  %v572 = vshrl.u32 %v571, 7
  %v573 = vsub.s32 0, %v572
  %v574 = vrot.slane %v76, %v573
  %v575 = vlaneseq
  %v576 = vshrl.u32 %v575, 7
  %v577 = vsub.s32 0, %v576
  %v578 = vrot.slane %v59, %v577
  %v579 = vlaneseq
  %v580 = vshrl.u32 %v579, 7
  %v581 = vsub.s32 0, %v580
  %v582 = vrot.slane %v73, %v581
  %v583 = vlaneseq
  %v584 = vshrl.u32 %v583, 7
  %v585 = vsub.s32 0, %v584
  %v586 = vrot.slane %v75, %v585
  %v587 = vlaneseq
  %v588 = vshrl.u32 %v587, 7
  %v589 = vsub.s32 0, %v588
  %v590 = vrot.slane %v77, %v589
  %v591 = vlaneseq
  %v592 = vshrl.u32 %v591, 7
  %v593 = vsub.s32 0, %v592
  %v594 = vrot.slane %v101, %v593
  %v595 = vlaneseq
  %v596 = vshrl.u32 %v595, 7
  %v597 = vsub.s32 0, %v596
  %v598 = vrot.slane %v115, %v597
  %v599 = vlaneseq
  %v600 = vshrl.u32 %v599, 7
  %v601 = vsub.s32 0, %v600
  %v602 = vrot.slane %v123, %v601
  %v603 = vlaneseq
  %v604 = vshrl.u32 %v603, 7
  %v605 = vsub.s32 0, %v604
  %v606 = vrot.slane %v125, %v605
  %v607 = vlaneseq
  %v608 = vshrl.u32 %v607, 7
  %v609 = vsub.s32 0, %v608
  %v610 = vrot.slane %v108, %v609
  %v611 = vlaneseq
  %v612 = vshrl.u32 %v611, 7
  %v613 = vsub.s32 0, %v612
  %v614 = vrot.slane %v122, %v613
  %v615 = vlaneseq
  %v616 = vshrl.u32 %v615, 7
  %v617 = vsub.s32 0, %v616
  %v618 = vrot.slane %v124, %v617
  %v619 = vlaneseq
  %v620 = vshrl.u32 %v619, 7
  %v621 = vsub.s32 0, %v620
  %v622 = vrot.slane %v126, %v621
  %v639 = vmul.f32 %v382, %v562
  %v640 = vmul.f32 %v383, %v566
  %v641 = vmul.f32 %v384, %v570
  %v642 = vmul.f32 %v385, %v574
  %v643 = vmul.f32 %v386, %v578
  %v644 = vmul.f32 %v387, %v582
  %v645 = vmul.f32 %v388, %v586
  %v646 = vmul.f32 %v389, %v590
  %v647 = vmul.f32 %v390, %v594
  %v648 = vmul.f32 %v391, %v598
  %v649 = vmul.f32 %v392, %v602
  %v650 = vmul.f32 %v393, %v606
  %v651 = vmul.f32 %v394, %v610
  %v652 = vmul.f32 %v395, %v614
  %v653 = vmul.f32 %v396, %v618
  %v654 = vmul.f32 %v397, %v622
  %v655 = vlaneseq
  %v656 = vshrl.u32 %v655, 7
  %v657 = vsub.s32 0, %v656
  %v658 = vrot.slane %v154, %v657
  %v659 = vlaneseq
  %v660 = vshrl.u32 %v659, 7
  %v661 = vsub.s32 0, %v660
  %v662 = vrot.slane %v168, %v661
  %v663 = vlaneseq
  %v664 = vshrl.u32 %v663, 7
  %v665 = vsub.s32 0, %v664
  %v666 = vrot.slane %v176, %v665
  %v667 = vlaneseq
  %v668 = vshrl.u32 %v667, 7
  %v669 = vsub.s32 0, %v668
  %v670 = vrot.slane %v178, %v669
  %v671 = vlaneseq
  %v672 = vshrl.u32 %v671, 7
  %v673 = vsub.s32 0, %v672
  %v674 = vrot.slane %v161, %v673
  %v675 = vlaneseq
  %v676 = vshrl.u32 %v675, 7
  %v677 = vsub.s32 0, %v676
  %v678 = vrot.slane %v175, %v677
  %v679 = vlaneseq
  %v680 = vshrl.u32 %v679, 7
  %v681 = vsub.s32 0, %v680
  %v682 = vrot.slane %v177, %v681
  %v683 = vlaneseq
  %v684 = vshrl.u32 %v683, 7
  %v685 = vsub.s32 0, %v684
  %v686 = vrot.slane %v179, %v685
  %v687 = vlaneseq
  %v688 = vshrl.u32 %v687, 7
  %v689 = vsub.s32 0, %v688
  %v690 = vrot.slane %v203, %v689
  %v691 = vlaneseq
  %v692 = vshrl.u32 %v691, 7
  %v693 = vsub.s32 0, %v692
  %v694 = vrot.slane %v217, %v693
  %v695 = vlaneseq
  %v696 = vshrl.u32 %v695, 7
  %v697 = vsub.s32 0, %v696
  %v698 = vrot.slane %v225, %v697
  %v699 = vlaneseq
  %v700 = vshrl.u32 %v699, 7
  %v701 = vsub.s32 0, %v700
  %v702 = vrot.slane %v227, %v701
  %v703 = vlaneseq
  %v704 = vshrl.u32 %v703, 7
  %v705 = vsub.s32 0, %v704
  %v706 = vrot.slane %v210, %v705
  %v707 = vlaneseq
  %v708 = vshrl.u32 %v707, 7
  %v709 = vsub.s32 0, %v708
  %v710 = vrot.slane %v224, %v709
  %v711 = vlaneseq
  %v712 = vshrl.u32 %v711, 7
  %v713 = vsub.s32 0, %v712
  %v714 = vrot.slane %v226, %v713
  %v715 = vlaneseq
  %v716 = vshrl.u32 %v715, 7
  %v717 = vsub.s32 0, %v716
  %v718 = vrot.slane %v228, %v717
  %v735 = vmul.f32 %v543, %v658
  %v736 = vmul.f32 %v544, %v662
  %v737 = vmul.f32 %v545, %v666
  %v738 = vmul.f32 %v546, %v670
  %v739 = vmul.f32 %v547, %v674
  %v740 = vmul.f32 %v548, %v678
  %v741 = vmul.f32 %v549, %v682
  %v742 = vmul.f32 %v550, %v686
  %v743 = vmul.f32 %v551, %v690
  %v744 = vmul.f32 %v552, %v694
  %v745 = vmul.f32 %v553, %v698
  %v746 = vmul.f32 %v554, %v702
  %v747 = vmul.f32 %v555, %v706
  %v748 = vmul.f32 %v556, %v710
  %v749 = vmul.f32 %v557, %v714
  %v750 = vmul.f32 %v558, %v718
  %v751 = vadd.f32 %v639, %v735
  %v752 = vadd.f32 %v640, %v736
  %v753 = vadd.f32 %v641, %v737
  %v754 = vadd.f32 %v642, %v738
  %v755 = vadd.f32 %v643, %v739
  %v756 = vadd.f32 %v644, %v740
  %v757 = vadd.f32 %v645, %v741
  %v758 = vadd.f32 %v646, %v742
  %v759 = vadd.f32 %v647, %v743
  %v760 = vadd.f32 %v648, %v744
  %v761 = vadd.f32 %v649, %v745
  %v762 = vadd.f32 %v650, %v746
  %v763 = vadd.f32 %v651, %v747
  %v764 = vadd.f32 %v652, %v748
  %v765 = vadd.f32 %v653, %v749
  %v766 = vadd.f32 %v654, %v750
  %767 = vst.msk [vmem:[%s6] sm:$0xf] %vm261, %v751
  %768 = vst.msk [vmem:[%s6 + $0x4] sm:$0xf] %vm261, %v752
  %769 = vst.msk [vmem:[%s6 + $0x8] sm:$0xf] %vm261, %v753
  %770 = vst.msk [vmem:[%s6 + $0xc] sm:$0xf] %vm261, %v754
  %771 = vst.msk [vmem:[%s6 + $0x10] sm:$0xf] %vm261, %v755
  %772 = vst.msk [vmem:[%s6 + $0x14] sm:$0xf] %vm261, %v756
  %773 = vst.msk [vmem:[%s6 + $0x18] sm:$0xf] %vm261, %v757
  %774 = vst.msk [vmem:[%s6 + $0x1c] sm:$0xf] %vm261, %v758
  %775 = vst.msk [vmem:[%s6 + $0x20] sm:$0xf] %vm261, %v759
  %776 = vst.msk [vmem:[%s6 + $0x24] sm:$0xf] %vm261, %v760
  %777 = vst.msk [vmem:[%s6 + $0x28] sm:$0xf] %vm261, %v761
  %778 = vst.msk [vmem:[%s6 + $0x2c] sm:$0xf] %vm261, %v762
  %779 = vst.msk [vmem:[%s6 + $0x30] sm:$0xf] %vm261, %v763
  %780 = vst.msk [vmem:[%s6 + $0x34] sm:$0xf] %vm261, %v764
  %781 = vst.msk [vmem:[%s6 + $0x38] sm:$0xf] %vm261, %v765
  %782 = vst.msk [vmem:[%s6 + $0x3c] sm:$0xf] %vm261, %v766
  %v783 = vld [vmem:[%s1] sm:$0x3]
  %v784 = vld [vmem:[%s1 + $0x2] sm:$0x3]
  %v785 = vld [vmem:[%s1 + $0x4] sm:$0x3]
  %v786 = vld [vmem:[%s1 + $0x6] sm:$0x3]
  %v787 = vld [vmem:[%s1 + $0x8] sm:$0x3]
  %v788 = vld [vmem:[%s1 + $0xa] sm:$0x3]
  %v789 = vld [vmem:[%s1 + $0xc] sm:$0x3]
  %v790 = vld [vmem:[%s1 + $0xe] sm:$0x3]
  %v791 = vld [vmem:[%s1 + $0x10] sm:$0x3]
  %v792 = vld [vmem:[%s1 + $0x12] sm:$0x3]
  %v793 = vld [vmem:[%s1 + $0x14] sm:$0x3]
  %v794 = vld [vmem:[%s1 + $0x16] sm:$0x3]
  %v795 = vld [vmem:[%s1 + $0x18] sm:$0x3]
  %v796 = vld [vmem:[%s1 + $0x1a] sm:$0x3]
  %v797 = vld [vmem:[%s1 + $0x1c] sm:$0x3]
  %v798 = vld [vmem:[%s1 + $0x1e] sm:$0x3]
  %v799 = vmul.f32 %v783, %v783
  %v800 = vmul.f32 %v784, %v784
  %v801 = vmul.f32 %v785, %v785
  %v802 = vmul.f32 %v786, %v786
  %v803 = vmul.f32 %v787, %v787
  %v804 = vmul.f32 %v788, %v788
  %v805 = vmul.f32 %v789, %v789
  %v806 = vmul.f32 %v790, %v790
  %v807 = vmul.f32 %v791, %v791
  %v808 = vmul.f32 %v792, %v792
  %v809 = vmul.f32 %v793, %v793
  %v810 = vmul.f32 %v794, %v794
  %v811 = vmul.f32 %v795, %v795
  %v812 = vmul.f32 %v796, %v796
  %v813 = vmul.f32 %v797, %v797
  %v814 = vmul.f32 %v798, %v798
  %vm815 = vcmask 123904
  %v816 = vsel %vm815, %v799, 0.0
  %817 = vadd.xlane.f32.xlu0 %v816
  %v818 = vpop.xlane.xlu0 %817
  %v819 = vsel %vm815, %v800, 0.0
  %820 = vadd.xlane.f32.xlu0 %v819
  %v821 = vpop.xlane.xlu0 %820
  %v822 = vsel %vm815, %v801, 0.0
  %823 = vadd.xlane.f32.xlu0 %v822
  %v824 = vpop.xlane.xlu0 %823
  %v825 = vsel %vm815, %v802, 0.0
  %826 = vadd.xlane.f32.xlu0 %v825
  %v827 = vpop.xlane.xlu0 %826
  %v828 = vsel %vm815, %v803, 0.0
  %829 = vadd.xlane.f32.xlu0 %v828
  %v830 = vpop.xlane.xlu0 %829
  %v831 = vsel %vm815, %v804, 0.0
  %832 = vadd.xlane.f32.xlu0 %v831
  %v833 = vpop.xlane.xlu0 %832
  %v834 = vsel %vm815, %v805, 0.0
  %835 = vadd.xlane.f32.xlu0 %v834
  %v836 = vpop.xlane.xlu0 %835
  %v837 = vsel %vm815, %v806, 0.0
  %838 = vadd.xlane.f32.xlu0 %v837
  %v839 = vpop.xlane.xlu0 %838
  %v840 = vsel %vm815, %v807, 0.0
  %841 = vadd.xlane.f32.xlu0 %v840
  %v842 = vpop.xlane.xlu0 %841
  %v843 = vsel %vm815, %v808, 0.0
  %844 = vadd.xlane.f32.xlu0 %v843
  %v845 = vpop.xlane.xlu0 %844
  %v846 = vsel %vm815, %v809, 0.0
  %847 = vadd.xlane.f32.xlu0 %v846
  %v848 = vpop.xlane.xlu0 %847
  %v849 = vsel %vm815, %v810, 0.0
  %850 = vadd.xlane.f32.xlu0 %v849
  %v851 = vpop.xlane.xlu0 %850
  %v852 = vsel %vm815, %v811, 0.0
  %853 = vadd.xlane.f32.xlu0 %v852
  %v854 = vpop.xlane.xlu0 %853
  %v855 = vsel %vm815, %v812, 0.0
  %856 = vadd.xlane.f32.xlu0 %v855
  %v857 = vpop.xlane.xlu0 %856
  %v858 = vsel %vm815, %v813, 0.0
  %859 = vadd.xlane.f32.xlu0 %v858
  %v860 = vpop.xlane.xlu0 %859
  %v861 = vsel %vm815, %v814, 0.0
  %862 = vadd.xlane.f32.xlu0 %v861
  %v863 = vpop.xlane.xlu0 %862
  %v864 = vmul.f32 %v818, %v310
  %v865 = vmul.f32 %v821, %v310
  %v866 = vmul.f32 %v824, %v310
  %v867 = vmul.f32 %v827, %v310
  %v868 = vmul.f32 %v830, %v310
  %v869 = vmul.f32 %v833, %v310
  %v870 = vmul.f32 %v836, %v310
  %v871 = vmul.f32 %v839, %v310
  %v872 = vmul.f32 %v842, %v310
  %v873 = vmul.f32 %v845, %v310
  %v874 = vmul.f32 %v848, %v310
  %v875 = vmul.f32 %v851, %v310
  %v876 = vmul.f32 %v854, %v310
  %v877 = vmul.f32 %v857, %v310
  %v878 = vmul.f32 %v860, %v310
  %v879 = vmul.f32 %v863, %v310
  %v880 = vadd.f32 %v864, 1e-06
  %v881 = vadd.f32 %v865, 1e-06
  %v882 = vadd.f32 %v866, 1e-06
  %v883 = vadd.f32 %v867, 1e-06
  %v884 = vadd.f32 %v868, 1e-06
  %v885 = vadd.f32 %v869, 1e-06
  %v886 = vadd.f32 %v870, 1e-06
  %v887 = vadd.f32 %v871, 1e-06
  %v888 = vadd.f32 %v872, 1e-06
  %v889 = vadd.f32 %v873, 1e-06
  %v890 = vadd.f32 %v874, 1e-06
  %v891 = vadd.f32 %v875, 1e-06
  %v892 = vadd.f32 %v876, 1e-06
  %v893 = vadd.f32 %v877, 1e-06
  %v894 = vadd.f32 %v878, 1e-06
  %v895 = vadd.f32 %v879, 1e-06
  %v896 = vrsqrt.pop %v880
  %v897 = vrsqrt.pop %v881
  %v898 = vrsqrt.pop %v882
  %v899 = vrsqrt.pop %v883
  %v900 = vrsqrt.pop %v884
  %v901 = vrsqrt.pop %v885
  %v902 = vrsqrt.pop %v886
  %v903 = vrsqrt.pop %v887
  %v904 = vrsqrt.pop %v888
  %v905 = vrsqrt.pop %v889
  %v906 = vrsqrt.pop %v890
  %v907 = vrsqrt.pop %v891
  %v908 = vrsqrt.pop %v892
  %v909 = vrsqrt.pop %v893
  %v910 = vrsqrt.pop %v894
  %v911 = vrsqrt.pop %v895
  %v912 = vmul.f32 %v783, %v896
  %v913 = vmul.f32 %v784, %v897
  %v914 = vmul.f32 %v785, %v898
  %v915 = vmul.f32 %v786, %v899
  %v916 = vmul.f32 %v787, %v900
  %v917 = vmul.f32 %v788, %v901
  %v918 = vmul.f32 %v789, %v902
  %v919 = vmul.f32 %v790, %v903
  %v920 = vmul.f32 %v791, %v904
  %v921 = vmul.f32 %v792, %v905
  %v922 = vmul.f32 %v793, %v906
  %v923 = vmul.f32 %v794, %v907
  %v924 = vmul.f32 %v795, %v908
  %v925 = vmul.f32 %v796, %v909
  %v926 = vmul.f32 %v797, %v910
  %v927 = vmul.f32 %v798, %v911
  %v928 = vld [vmem:[%s5] sm:$0x1]
  %v930 = vlaneseq
  %v931 = vshrl.u32 %v930, 7
  %v932 = vsub.s32 0, %v931
  %v933 = vrot.slane %v928, %v932
  %v935 = vmul.f32 %v933, %v912
  %v936 = vmul.f32 %v933, %v913
  %v937 = vmul.f32 %v933, %v914
  %v938 = vmul.f32 %v933, %v915
  %v939 = vmul.f32 %v933, %v916
  %v940 = vmul.f32 %v933, %v917
  %v941 = vmul.f32 %v933, %v918
  %v942 = vmul.f32 %v933, %v919
  %v943 = vmul.f32 %v933, %v920
  %v944 = vmul.f32 %v933, %v921
  %v945 = vmul.f32 %v933, %v922
  %v946 = vmul.f32 %v933, %v923
  %v947 = vmul.f32 %v933, %v924
  %v948 = vmul.f32 %v933, %v925
  %v949 = vmul.f32 %v933, %v926
  %v950 = vmul.f32 %v933, %v927
  %v951 = vsub.f32 0.0, %v935
  %v952 = vsub.f32 0.0, %v936
  %v953 = vsub.f32 0.0, %v937
  %v954 = vsub.f32 0.0, %v938
  %v955 = vsub.f32 0.0, %v939
  %v956 = vsub.f32 0.0, %v940
  %v957 = vsub.f32 0.0, %v941
  %v958 = vsub.f32 0.0, %v942
  %v959 = vsub.f32 0.0, %v943
  %v960 = vsub.f32 0.0, %v944
  %v961 = vsub.f32 0.0, %v945
  %v962 = vsub.f32 0.0, %v946
  %v963 = vsub.f32 0.0, %v947
  %v964 = vsub.f32 0.0, %v948
  %v965 = vsub.f32 0.0, %v949
  %v966 = vsub.f32 0.0, %v950
  %983 = vrot.lane.b32.xlu0 %v951, 120
  %v984 = vpop.permute.xlu0 %983
  %985 = vrot.lane.b32.xlu0 %v952, 120
  %v986 = vpop.permute.xlu0 %985
  %987 = vrot.lane.b32.xlu0 %v953, 120
  %v988 = vpop.permute.xlu0 %987
  %989 = vrot.lane.b32.xlu0 %v954, 120
  %v990 = vpop.permute.xlu0 %989
  %991 = vrot.lane.b32.xlu0 %v955, 120
  %v992 = vpop.permute.xlu0 %991
  %993 = vrot.lane.b32.xlu0 %v956, 120
  %v994 = vpop.permute.xlu0 %993
  %995 = vrot.lane.b32.xlu0 %v957, 120
  %v996 = vpop.permute.xlu0 %995
  %997 = vrot.lane.b32.xlu0 %v958, 120
  %v998 = vpop.permute.xlu0 %997
  %999 = vrot.lane.b32.xlu0 %v959, 120
  %v1000 = vpop.permute.xlu0 %999
  %1001 = vrot.lane.b32.xlu0 %v960, 120
  %v1002 = vpop.permute.xlu0 %1001
  %1003 = vrot.lane.b32.xlu0 %v961, 120
  %v1004 = vpop.permute.xlu0 %1003
  %1005 = vrot.lane.b32.xlu0 %v962, 120
  %v1006 = vpop.permute.xlu0 %1005
  %1007 = vrot.lane.b32.xlu0 %v963, 120
  %v1008 = vpop.permute.xlu0 %1007
  %1009 = vrot.lane.b32.xlu0 %v964, 120
  %v1010 = vpop.permute.xlu0 %1009
  %1011 = vrot.lane.b32.xlu0 %v965, 120
  %v1012 = vpop.permute.xlu0 %1011
  %1013 = vrot.lane.b32.xlu0 %v966, 120
  %v1014 = vpop.permute.xlu0 %1013
  %1047 = vrot.lane.b32.xlu0 %v935, 8
  %v1048 = vpop.permute.xlu0 %1047
  %1049 = vrot.lane.b32.xlu0 %v936, 8
  %v1050 = vpop.permute.xlu0 %1049
  %1051 = vrot.lane.b32.xlu0 %v937, 8
  %v1052 = vpop.permute.xlu0 %1051
  %1053 = vrot.lane.b32.xlu0 %v938, 8
  %v1054 = vpop.permute.xlu0 %1053
  %1055 = vrot.lane.b32.xlu0 %v939, 8
  %v1056 = vpop.permute.xlu0 %1055
  %1057 = vrot.lane.b32.xlu0 %v940, 8
  %v1058 = vpop.permute.xlu0 %1057
  %1059 = vrot.lane.b32.xlu0 %v941, 8
  %v1060 = vpop.permute.xlu0 %1059
  %1061 = vrot.lane.b32.xlu0 %v942, 8
  %v1062 = vpop.permute.xlu0 %1061
  %1063 = vrot.lane.b32.xlu0 %v943, 8
  %v1064 = vpop.permute.xlu0 %1063
  %1065 = vrot.lane.b32.xlu0 %v944, 8
  %v1066 = vpop.permute.xlu0 %1065
  %1067 = vrot.lane.b32.xlu0 %v945, 8
  %v1068 = vpop.permute.xlu0 %1067
  %1069 = vrot.lane.b32.xlu0 %v946, 8
  %v1070 = vpop.permute.xlu0 %1069
  %1071 = vrot.lane.b32.xlu0 %v947, 8
  %v1072 = vpop.permute.xlu0 %1071
  %1073 = vrot.lane.b32.xlu0 %v948, 8
  %v1074 = vpop.permute.xlu0 %1073
  %1075 = vrot.lane.b32.xlu0 %v949, 8
  %v1076 = vpop.permute.xlu0 %1075
  %1077 = vrot.lane.b32.xlu0 %v950, 8
  %v1078 = vpop.permute.xlu0 %1077
  %v1095 = vsel %vm542, %v984, %v1048
  %v1096 = vsel %vm542, %v986, %v1050
  %v1097 = vsel %vm542, %v988, %v1052
  %v1098 = vsel %vm542, %v990, %v1054
  %v1099 = vsel %vm542, %v992, %v1056
  %v1100 = vsel %vm542, %v994, %v1058
  %v1101 = vsel %vm542, %v996, %v1060
  %v1102 = vsel %vm542, %v998, %v1062
  %v1103 = vsel %vm542, %v1000, %v1064
  %v1104 = vsel %vm542, %v1002, %v1066
  %v1105 = vsel %vm542, %v1004, %v1068
  %v1106 = vsel %vm542, %v1006, %v1070
  %v1107 = vsel %vm542, %v1008, %v1072
  %v1108 = vsel %vm542, %v1010, %v1074
  %v1109 = vsel %vm542, %v1012, %v1076
  %v1110 = vsel %vm542, %v1014, %v1078
  %v1111 = vmul.f32 %v935, %v562
  %v1112 = vmul.f32 %v936, %v566
  %v1113 = vmul.f32 %v937, %v570
  %v1114 = vmul.f32 %v938, %v574
  %v1115 = vmul.f32 %v939, %v578
  %v1116 = vmul.f32 %v940, %v582
  %v1117 = vmul.f32 %v941, %v586
  %v1118 = vmul.f32 %v942, %v590
  %v1119 = vmul.f32 %v943, %v594
  %v1120 = vmul.f32 %v944, %v598
  %v1121 = vmul.f32 %v945, %v602
  %v1122 = vmul.f32 %v946, %v606
  %v1123 = vmul.f32 %v947, %v610
  %v1124 = vmul.f32 %v948, %v614
  %v1125 = vmul.f32 %v949, %v618
  %v1126 = vmul.f32 %v950, %v622
  %v1127 = vmul.f32 %v1095, %v658
  %v1128 = vmul.f32 %v1096, %v662
  %v1129 = vmul.f32 %v1097, %v666
  %v1130 = vmul.f32 %v1098, %v670
  %v1131 = vmul.f32 %v1099, %v674
  %v1132 = vmul.f32 %v1100, %v678
  %v1133 = vmul.f32 %v1101, %v682
  %v1134 = vmul.f32 %v1102, %v686
  %v1135 = vmul.f32 %v1103, %v690
  %v1136 = vmul.f32 %v1104, %v694
  %v1137 = vmul.f32 %v1105, %v698
  %v1138 = vmul.f32 %v1106, %v702
  %v1139 = vmul.f32 %v1107, %v706
  %v1140 = vmul.f32 %v1108, %v710
  %v1141 = vmul.f32 %v1109, %v714
  %v1142 = vmul.f32 %v1110, %v718
  %v1143 = vadd.f32 %v1111, %v1127
  %v1144 = vadd.f32 %v1112, %v1128
  %v1145 = vadd.f32 %v1113, %v1129
  %v1146 = vadd.f32 %v1114, %v1130
  %v1147 = vadd.f32 %v1115, %v1131
  %v1148 = vadd.f32 %v1116, %v1132
  %v1149 = vadd.f32 %v1117, %v1133
  %v1150 = vadd.f32 %v1118, %v1134
  %v1151 = vadd.f32 %v1119, %v1135
  %v1152 = vadd.f32 %v1120, %v1136
  %v1153 = vadd.f32 %v1121, %v1137
  %v1154 = vadd.f32 %v1122, %v1138
  %v1155 = vadd.f32 %v1123, %v1139
  %v1156 = vadd.f32 %v1124, %v1140
  %v1157 = vadd.f32 %v1125, %v1141
  %v1158 = vadd.f32 %v1126, %v1142
  %1159 = vst.msk [vmem:[%s7] sm:$0x3] %vm815, %v1143
  %1160 = vst.msk [vmem:[%s7 + $0x2] sm:$0x3] %vm815, %v1144
  %1161 = vst.msk [vmem:[%s7 + $0x4] sm:$0x3] %vm815, %v1145
  %1162 = vst.msk [vmem:[%s7 + $0x6] sm:$0x3] %vm815, %v1146
  %1163 = vst.msk [vmem:[%s7 + $0x8] sm:$0x3] %vm815, %v1147
  %1164 = vst.msk [vmem:[%s7 + $0xa] sm:$0x3] %vm815, %v1148
  %1165 = vst.msk [vmem:[%s7 + $0xc] sm:$0x3] %vm815, %v1149
  %1166 = vst.msk [vmem:[%s7 + $0xe] sm:$0x3] %vm815, %v1150
  %1167 = vst.msk [vmem:[%s7 + $0x10] sm:$0x3] %vm815, %v1151
  %1168 = vst.msk [vmem:[%s7 + $0x12] sm:$0x3] %vm815, %v1152
  %1169 = vst.msk [vmem:[%s7 + $0x14] sm:$0x3] %vm815, %v1153
  %1170 = vst.msk [vmem:[%s7 + $0x16] sm:$0x3] %vm815, %v1154
  %1171 = vst.msk [vmem:[%s7 + $0x18] sm:$0x3] %vm815, %v1155
  %1172 = vst.msk [vmem:[%s7 + $0x1a] sm:$0x3] %vm815, %v1156
  %1173 = vst.msk [vmem:[%s7 + $0x1c] sm:$0x3] %vm815, %v1157
  %1174 = vst.msk [vmem:[%s7 + $0x1e] sm:$0x3] %vm815, %v1158
  // Predicated region
  $region26: #{dolly_decoder_layer.9} parent=0 // pred_check
    _
  $region27: #{dolly_decoder_layer.9} parent=0 // pred_check_branch
    %1176 = sbr.rel (0) target = $region29
  $region28: #{dolly_decoder_layer.9} parent=0 // pred_region
    _
  $region29: #{dolly_decoder_layer.9} parent=0 // pred_fallthru
    _
  // Predicated region
  $region30: #{dolly_decoder_layer.9} parent=0 // pred_check
    _
  $region31: #{dolly_decoder_layer.9} parent=0 // pred_check_branch
    %1178 = sbr.rel (0) target = $region33
  $region32: #{dolly_decoder_layer.9} parent=0 // pred_region
    _
  $region33: #{dolly_decoder_layer.9} parent=0 // pred_fallthru
    _
  // Predicated region
  $region34: #{dolly_decoder_layer.9} parent=0 // pred_check
    _
  $region35: #{dolly_decoder_layer.9} parent=0 // pred_check_branch
    %1180 = sbr.rel (0) target = $region37
  $region36: #{dolly_decoder_layer.9} parent=0 // pred_region
    _
  $region37: #{dolly_decoder_layer.9} parent=0 // pred_fallthru
    _
  // Predicated region
  $region38: #{dolly_decoder_layer.9} parent=0 // pred_check
    _
  $region39: #{dolly_decoder_layer.9} parent=0 // pred_check_branch
    %1182 = sbr.rel (0) target = $region41
  $region40: #{dolly_decoder_layer.9} parent=0 // pred_region
    _
  $region41: #{dolly_decoder_layer.9} parent=0 // pred_fallthru
    _

// kernel: dolly_decoder_layer.10
$region0: #{dolly_decoder_layer.10}
  #allocation0 [shape = 'u32[]', space=smem, size = 0x4, offset = 0x4, fixed_abs, tag = 'smem constant byte address 0x4 - core index']
  #allocation1 [shape = 'u32[144,128]{1,0:T(1,128)}', space=vmem, size = 0x12000, scoped, tag = 'internal scratch']
  #allocation2 [shape = 'f32[2,8,1]{2,1,0:T(8,128)}', space=vmem, size = 0x2000, scoped, tag = 'scratch operand']
  #allocation3 [shape = 'f32[2,8,1]{2,1,0:T(8,128)}', space=vmem, size = 0x2000, scoped, tag = 'scratch operand']
  #allocation4 [shape = 'f32[2,8,16]{2,1,0:T(8,128)}', space=vmem, size = 0x2000, scoped, tag = 'scratch operand']
  %s0 = inlined_call_operand.vmem [shape: f32[2,2,2,8,16], index: 0, kind: input, shape index: {}]
  %s1 = inlined_call_operand.vmem [shape: f32[2,2,8,16], index: 1, kind: input, shape index: {}]
  %s2 = inlined_call_operand.vmem [shape: f32[2,2,8,16], index: 2, kind: input, shape index: {}]
  %s3 = inlined_call_operand.vmem [shape: f32[2,2,2,8,16], index: 3, kind: output, shape index: {}]
  %s4 = sld [smem:[#allocation0]]
  $region57: #{dolly_decoder_layer.10} parent=0
    _
  %s6 = ssub.s32 1, %s4
  %s7 = scalar_select 0, %s6, %s4
  loop: start=0, step=1, limit=6
  $region2: #{dolly_decoder_layer.10} parent=0 // loop_pre_header
    _
  $region3: #{dolly_decoder_layer.10} parent=0 // loop_header
    %s9 = sphi 0, %s13
    %p10 = scmp.ge.s32.totalorder %s9, 6
    %s16 = sphi 0, %s42
    %s17 = sphi 0, %s38
    %s18 = sphi 0, %s34
    %s19 = sphi 0, %s30
    %s20 = sphi 0, %s16
    %s21 = sphi 0, %s17
    %s22 = sphi 0, %s18
    %s23 = sphi 0, %s19
    %s24 = sphi 0, %s20
    %s25 = sphi 0, %s21
    %s26 = sphi 0, %s22
    %s27 = sphi 0, %s23
    %s49 = sphi 0, %s51
    %s52 = sphi 0, %s49
    %s53 = sphi 0, %s52
    %s69 = sphi 0, %s53
    %s79 = sphi 0, %s81
    %s82 = sphi 0, %s79
    %s83 = sphi 0, %s82
    %s99 = sphi 0, %s83
    %s109 = sphi 0, %s111
    %s112 = sphi 0, %s109
    %s113 = sphi 0, %s112
    %s129 = sphi 0, %s113
    %s139 = sphi 0, %s141
    %s142 = sphi 0, %s139
    %s143 = sphi 0, %s142
    %s159 = sphi 0, %s143
  $region4: #{dolly_decoder_layer.10} parent=0 // loop_header_branch
    %12 = sbr.rel (%p10) target = $region8
  $region5: #{dolly_decoder_layer.10} parent=0 // loop_body
    %s14 = ssub.s32 %s9, 1
    %s15 = ssub.s32 %s9, 2
    %s28 = sadd.s32 1, %s19
    %p29 = scmp.ge.s32.totalorder %s28, 1
    %s30 = scalar_select %p29, 0, %s28
    %s31 = sadd.s32 1, %s18
    %s32 = scalar_select %p29, %s31, %s18
    %p33 = scmp.ge.s32.totalorder %s32, 1
    %s34 = scalar_select %p33, 0, %s32
    %s35 = sadd.s32 1, %s17
    %s36 = scalar_select %p33, %s35, %s17
    %p37 = scmp.ge.s32.totalorder %s36, 2
    %s38 = scalar_select %p37, 0, %s36
    %s39 = sadd.s32 1, %s16
    %s40 = scalar_select %p37, %s39, %s16
    %p41 = scmp.ge.s32.totalorder %s40, 2
    %s42 = scalar_select %p41, 0, %s40
    %s43 = ssub.s32 %s16, %s42
    %s44 = ssub.s32 %s17, %s38
    %s45 = sor.u32 %s43, %s44
    %s46 = ssub.s32 %s18, %s34
    %s47 = sor.u32 %s45, %s46
    %p48 = scmp.eq.s32.totalorder %s47, 0
    %s50 = sadd.s32 %s49, 1
    %s51 = scalar_select %p48, %s49, %s50
    %p54 = pneg %p48
    %p55 = scmp.eq.s32.totalorder %s9, 3
    %p56 = por %p54, %p55
    %p57 = scmp.ne.s32.totalorder %s49, %s52
    %p58 = scmp.eq.s32.totalorder %s9, 0
    %p59 = por %p57, %p58
    %p60 = scmp.ne.s32.totalorder %s49, %s52
    %p61 = scmp.eq.s32.totalorder %s14, 3
    %p62 = por %p60, %p61
    %p63 = scmp.ne.s32.totalorder %s52, %s53
    %p64 = scmp.eq.s32.totalorder %s14, 0
    %p65 = por %p63, %p64
    %p66 = scmp.ne.s32.totalorder %s52, %s53
    %p67 = scmp.eq.s32.totalorder %s15, 3
    %p68 = por %p66, %p67
    %p70 = scmp.ne.s32.totalorder %s53, %s69
    %p71 = scmp.eq.s32.totalorder %s15, 0
    %p72 = por %p70, %p71
    %s73 = ssub.s32 %s16, %s42
    %s74 = ssub.s32 %s17, %s38
    %s75 = sor.u32 %s73, %s74
    %s76 = ssub.s32 %s19, %s30
    %s77 = sor.u32 %s75, %s76
    %p78 = scmp.eq.s32.totalorder %s77, 0
    %s80 = sadd.s32 %s79, 1
    %s81 = scalar_select %p78, %s79, %s80
    %p84 = pneg %p78
    %p85 = scmp.eq.s32.totalorder %s9, 3
    %p86 = por %p84, %p85
    %p87 = scmp.ne.s32.totalorder %s79, %s82
    %p88 = scmp.eq.s32.totalorder %s9, 0
    %p89 = por %p87, %p88
    %p90 = scmp.ne.s32.totalorder %s79, %s82
    %p91 = scmp.eq.s32.totalorder %s14, 3
    %p92 = por %p90, %p91
    %p93 = scmp.ne.s32.totalorder %s82, %s83
    %p94 = scmp.eq.s32.totalorder %s14, 0
    %p95 = por %p93, %p94
    %p96 = scmp.ne.s32.totalorder %s82, %s83
    %p97 = scmp.eq.s32.totalorder %s15, 3
    %p98 = por %p96, %p97
    %p100 = scmp.ne.s32.totalorder %s83, %s99
    %p101 = scmp.eq.s32.totalorder %s15, 0
    %p102 = por %p100, %p101
    %s103 = ssub.s32 %s16, %s42
    %s104 = ssub.s32 %s17, %s38
    %s105 = sor.u32 %s103, %s104
    %s106 = ssub.s32 %s19, %s30
    %s107 = sor.u32 %s105, %s106
    %p108 = scmp.eq.s32.totalorder %s107, 0
    %s110 = sadd.s32 %s109, 1
    %s111 = scalar_select %p108, %s109, %s110
    %p114 = pneg %p108
    %p115 = scmp.eq.s32.totalorder %s9, 3
    %p116 = por %p114, %p115
    %p117 = scmp.ne.s32.totalorder %s109, %s112
    %p118 = scmp.eq.s32.totalorder %s9, 0
    %p119 = por %p117, %p118
    %p120 = scmp.ne.s32.totalorder %s109, %s112
    %p121 = scmp.eq.s32.totalorder %s14, 3
    %p122 = por %p120, %p121
    %p123 = scmp.ne.s32.totalorder %s112, %s113
    %p124 = scmp.eq.s32.totalorder %s14, 0
    %p125 = por %p123, %p124
    %p126 = scmp.ne.s32.totalorder %s112, %s113
    %p127 = scmp.eq.s32.totalorder %s15, 3
    %p128 = por %p126, %p127
    %p130 = scmp.ne.s32.totalorder %s113, %s129
    %p131 = scmp.eq.s32.totalorder %s15, 0
    %p132 = por %p130, %p131
    %s133 = ssub.s32 %s16, %s42
    %s134 = ssub.s32 %s17, %s38
    %s135 = sor.u32 %s133, %s134
    %s136 = ssub.s32 %s18, %s34
    %s137 = sor.u32 %s135, %s136
    %p138 = scmp.eq.s32.totalorder %s137, 0
    %s140 = sadd.s32 %s139, 1
    %s141 = scalar_select %p138, %s139, %s140
    %p144 = pneg %p138
    %p145 = scmp.eq.s32.totalorder %s9, 3
    %p146 = por %p144, %p145
    %p147 = scmp.ne.s32.totalorder %s139, %s142
    %p148 = scmp.eq.s32.totalorder %s9, 0
    %p149 = por %p147, %p148
    %p150 = scmp.ne.s32.totalorder %s139, %s142
    %p151 = scmp.eq.s32.totalorder %s14, 3
    %p152 = por %p150, %p151
    %p153 = scmp.ne.s32.totalorder %s142, %s143
    %p154 = scmp.eq.s32.totalorder %s14, 0
    %p155 = por %p153, %p154
    %p156 = scmp.ne.s32.totalorder %s142, %s143
    %p157 = scmp.eq.s32.totalorder %s15, 3
    %p158 = por %p156, %p157
    %p160 = scmp.ne.s32.totalorder %s143, %s159
    %p161 = scmp.eq.s32.totalorder %s15, 0
    %p162 = por %p160, %p161
    %p163 = scmp.le.s32.totalorder 1, %s9
    %p164 = scmp.lt.s32.totalorder %s9, 5
    %p165 = pnand %p163, %p164
    %p166 = pneg %p165
    // Predicated region
    $region9: #{dolly_decoder_layer.10} parent=5 // pred_check
      _
    $region10: #{dolly_decoder_layer.10} parent=5 // pred_check_branch
      %168 = sbr.rel (%p165) target = $region12
    $region11: #{dolly_decoder_layer.10} parent=5 // pred_region
      %s169 = ssub.s32 %s9, 1
    $region12: #{dolly_decoder_layer.10} parent=5 // pred_fallthru
      _
    %p170 = scmp.lt.s32.totalorder %s9, 4
    // Predicated region
    $region13: #{dolly_decoder_layer.10} parent=5 // pred_check
      %p171 = pneg %p170
    $region14: #{dolly_decoder_layer.10} parent=5 // pred_check_branch
      %173 = sbr.rel (%p171) target = $region16
    $region15: #{dolly_decoder_layer.10} parent=5 // pred_region
      // Predicated region
      $region17: #{dolly_decoder_layer.10} parent=15 // pred_check
        %p174 = pneg %p59
      $region18: #{dolly_decoder_layer.10} parent=15 // pred_check_branch
        %176 = sbr.rel (%p174) target = $region20
      $region19: #{dolly_decoder_layer.10} parent=15 // pred_region
        %p177 = scmp.lt.s32.totalorder %s16, 1
        %s178 = scalar_select %p177, %s16, 1
        %p179 = scmp.lt.s32.totalorder %s17, 1
        %s180 = scalar_select %p179, %s17, 1
        %p181 = scmp.lt.s32.totalorder %s18, 0
        %s182 = scalar_select %p181, %s18, 0
        %s183 = smul.addr %s180, 2
        %s184 = sadd.s32 %s182, %s183
        %s185 = smul.addr %s178, 4
        %s186 = sadd.s32 %s184, %s185
        %s187 = smul.addr %s186, 8
        %s188 = scalar_lea.vmem %s0, %s187
      $region20: #{dolly_decoder_layer.10} parent=15 // pred_fallthru
        _
      // Predicated region
      $region21: #{dolly_decoder_layer.10} parent=15 // pred_check
        %p189 = pneg %p89
      $region22: #{dolly_decoder_layer.10} parent=15 // pred_check_branch
        %191 = sbr.rel (%p189) target = $region24
      $region23: #{dolly_decoder_layer.10} parent=15 // pred_region
        %p192 = scmp.lt.s32.totalorder %s16, 1
        %s193 = scalar_select %p192, %s16, 1
        %p194 = scmp.lt.s32.totalorder %s17, 1
        %s195 = scalar_select %p194, %s17, 1
        %p196 = scmp.lt.s32.totalorder %s19, 0
        %s197 = scalar_select %p196, %s19, 0
        %s198 = sadd.s32 %s197, %s195
        %s199 = smul.addr %s193, 2
        %s200 = sadd.s32 %s198, %s199
        %s201 = smul.addr %s200, 8
        %s202 = scalar_lea.vmem %s1, %s201
      $region24: #{dolly_decoder_layer.10} parent=15 // pred_fallthru
        _
      // Predicated region
      $region25: #{dolly_decoder_layer.10} parent=15 // pred_check
        %p203 = pneg %p119
      $region26: #{dolly_decoder_layer.10} parent=15 // pred_check_branch
        %205 = sbr.rel (%p203) target = $region28
      $region27: #{dolly_decoder_layer.10} parent=15 // pred_region
        %p206 = scmp.lt.s32.totalorder %s16, 1
        %s207 = scalar_select %p206, %s16, 1
        %p208 = scmp.lt.s32.totalorder %s17, 1
        %s209 = scalar_select %p208, %s17, 1
        %p210 = scmp.lt.s32.totalorder %s19, 0
        %s211 = scalar_select %p210, %s19, 0
        %s212 = sadd.s32 %s211, %s209
        %s213 = smul.addr %s207, 2
        %s214 = sadd.s32 %s212, %s213
        %s215 = smul.addr %s214, 8
        %s216 = scalar_lea.vmem %s2, %s215
      $region28: #{dolly_decoder_layer.10} parent=15 // pred_fallthru
        _
    $region16: #{dolly_decoder_layer.10} parent=5 // pred_fallthru
      _
    %p217 = scmp.le.s32.totalorder 1, %s9
    %p218 = scmp.lt.s32.totalorder %s9, 5
    %p219 = pnand %p217, %p218
    %p220 = pneg %p219
    // Predicated region
    $region29: #{dolly_decoder_layer.10} parent=5 // pred_check
      _
    $region30: #{dolly_decoder_layer.10} parent=5 // pred_check_branch
      %222 = sbr.rel (%p219) target = $region32
    $region31: #{dolly_decoder_layer.10} parent=5 // pred_region
      %s223 = ssub.s32 %s9, 1
      %p224 = scmp.lt.s32.totalorder %s20, 1
      %s225 = scalar_select %p224, %s20, 1
      %p226 = scmp.lt.s32.totalorder %s21, 1
      %s227 = scalar_select %p226, %s21, 1
      %p228 = scmp.lt.s32.totalorder %s22, 0
      %s229 = scalar_select %p228, %s22, 0
      %s230 = smul.addr %s227, 2
      %s231 = sadd.s32 %s229, %s230
      %s232 = smul.addr %s225, 4
      %s233 = sadd.s32 %s231, %s232
      %s234 = smul.addr %s233, 8
      %s235 = scalar_lea.vmem %s0, %s234
      %p236 = pneg %p65
      %p237 = pneg %p62
      %p238 = scmp.lt.s32.totalorder %s20, 1
      %s239 = scalar_select %p238, %s20, 1
      %p240 = scmp.lt.s32.totalorder %s21, 1
      %s241 = scalar_select %p240, %s21, 1
      %p242 = scmp.lt.s32.totalorder %s23, 0
      %s243 = scalar_select %p242, %s23, 0
      %s244 = sadd.s32 %s243, %s241
      %s245 = smul.addr %s239, 2
      %s246 = sadd.s32 %s244, %s245
      %s247 = smul.addr %s246, 8
      %s248 = scalar_lea.vmem %s1, %s247
      %p249 = pneg %p95
      %p250 = pneg %p92
      %p251 = scmp.lt.s32.totalorder %s20, 1
      %s252 = scalar_select %p251, %s20, 1
      %p253 = scmp.lt.s32.totalorder %s21, 1
      %s254 = scalar_select %p253, %s21, 1
      %p255 = scmp.lt.s32.totalorder %s23, 0
      %s256 = scalar_select %p255, %s23, 0
      %s257 = sadd.s32 %s256, %s254
      %s258 = smul.addr %s252, 2
      %s259 = sadd.s32 %s257, %s258
      %s260 = smul.addr %s259, 8
      %s261 = scalar_lea.vmem %s2, %s260
      %p262 = pneg %p125
      %p263 = pneg %p122
      %p264 = pneg %p155
      %p265 = pneg %p152
      %p266 = scmp.lt.s32.totalorder %s20, 1
      %s267 = scalar_select %p266, %s20, 1
      %p268 = scmp.lt.s32.totalorder %s21, 1
      %s269 = scalar_select %p268, %s21, 1
      %p270 = scmp.lt.s32.totalorder %s22, 0
      %s271 = scalar_select %p270, %s22, 0
      %s272 = smul.addr %s269, 2
      %s273 = sadd.s32 %s271, %s272
      %s274 = smul.addr %s267, 4
      %s275 = sadd.s32 %s273, %s274
      %s276 = smul.addr %s275, 8
      %s277 = scalar_lea.vmem %s3, %s276
      %p278 = scmp.lt.s32.totalorder %s20, 1
      %s279 = scalar_select %p278, %s20, 1
      %p280 = scmp.lt.s32.totalorder %s21, 1
      %s281 = scalar_select %p280, %s21, 1
      %p282 = scmp.lt.s32.totalorder %s22, 0
      %s283 = scalar_select %p282, %s22, 0
      %s284 = smul.addr %s281, 2
      %s285 = sadd.s32 %s283, %s284
      %s286 = smul.addr %s279, 4
      %s287 = sadd.s32 %s285, %s286
      %s288 = smul.addr %s287, 8
      %s289 = scalar_lea.vmem %s0, %s288
      %p290 = scmp.lt.s32.totalorder %s20, 1
      %s291 = scalar_select %p290, %s20, 1
      %p292 = scmp.lt.s32.totalorder %s21, 1
      %s293 = scalar_select %p292, %s21, 1
      %p294 = scmp.lt.s32.totalorder %s23, 0
      %s295 = scalar_select %p294, %s23, 0
      %s296 = sadd.s32 %s295, %s293
      %s297 = smul.addr %s291, 2
      %s298 = sadd.s32 %s296, %s297
      %s299 = smul.addr %s298, 8
      %s300 = scalar_lea.vmem %s1, %s299
      %p301 = scmp.lt.s32.totalorder %s20, 1
      %s302 = scalar_select %p301, %s20, 1
      %p303 = scmp.lt.s32.totalorder %s21, 1
      %s304 = scalar_select %p303, %s21, 1
      %p305 = scmp.lt.s32.totalorder %s23, 0
      %s306 = scalar_select %p305, %s23, 0
      %s307 = sadd.s32 %s306, %s304
      %s308 = smul.addr %s302, 2
      %s309 = sadd.s32 %s307, %s308
      %s310 = smul.addr %s309, 8
      %s311 = scalar_lea.vmem %s2, %s310
      %p312 = scmp.lt.s32.totalorder %s20, 1
      %s313 = scalar_select %p312, %s20, 1
      %p314 = scmp.lt.s32.totalorder %s21, 1
      %s315 = scalar_select %p314, %s21, 1
      %p316 = scmp.lt.s32.totalorder %s22, 0
      %s317 = scalar_select %p316, %s22, 0
      %s318 = smul.addr %s315, 2
      %s319 = sadd.s32 %s317, %s318
      %s320 = smul.addr %s313, 4
      %s321 = sadd.s32 %s319, %s320
      %s322 = smul.addr %s321, 8
      %s323 = scalar_lea.vmem %s3, %s322
      %p324 = scmp.eq.s32.totalorder %s23, 0
      // Predicated region
      $region33: #{dolly_decoder_layer.10} parent=31 // pred_check
        %p325 = pneg %p324
      $region34: #{dolly_decoder_layer.10} parent=31 // pred_check_branch
        %327 = sbr.rel (%p325) target = $region36
      $region35: #{dolly_decoder_layer.10} parent=31 // pred_region
        %vm328 = vcmask 7168
        %329 = vst.msk [vmem:[#allocation2] sm:$0xff] %vm328, -inf
        %330 = vst.msk [vmem:[#allocation2 + $0x8] sm:$0xff] %vm328, -inf
        %331 = vst.msk [vmem:[#allocation3] sm:$0xff] %vm328, 0.0
        %332 = vst.msk [vmem:[#allocation3 + $0x8] sm:$0xff] %vm328, 0.0
        %vm333 = vcmask 130048
        %334 = vst.msk [vmem:[#allocation4] sm:$0xff] %vm333, 0.0
        %335 = vst.msk [vmem:[#allocation4 + $0x8] sm:$0xff] %vm333, 0.0
      $region36: #{dolly_decoder_layer.10} parent=31 // pred_fallthru
        _
      %s336 = smul.u32 %s23, 8
      %s337 = smul.u32 %s22, 8
      %s338 = sadd.s32 %s337, 7
      %p339 = scmp.le.s32.totalorder %s336, %s338
      // Predicated region
      $region37: #{dolly_decoder_layer.10} parent=31 // pred_check
        %p340 = pneg %p339
      $region38: #{dolly_decoder_layer.10} parent=31 // pred_check_branch
        %342 = sbr.rel (%p340) target = $region40
      $region39: #{dolly_decoder_layer.10} parent=31 // pred_region
        %v343 = vld [vmem:[%s289] sm:$0xff]
        %v344 = vld [vmem:[%s289 + $0x8] sm:$0xff]
        %v345 = vld [vmem:[%s300] sm:$0xff]
        %v346 = vld [vmem:[%s311] sm:$0xff]
        %vm347 = vcmask 130048
        %v349 = vsel %vm347, %v343, 0
        %v352 = vsel %vm347, %v345, 0
        %354 = vmatprep.subr.mxu0 0.0
        %355 = vmatpush1.xpose.msra.mxu0 %v352
        %356 = vmatprep.subr.mxu0 0.0
        %357 = vmatpush1.xpose.msra.mxu0 0.0
        %358 = vmatprep.subr.mxu0 0.0
        %359 = vmatpush1.xpose.msra.mxu0 0.0
        %360 = vmatprep.subr.mxu0 0.0
        %361 = vmatpush1.xpose.msra.mxu0 0.0
        %362 = vmatprep.subr.mxu0 0.0
        %363 = vmatpush1.xpose.msra.mxu0 0.0
        %364 = vmatprep.subr.mxu0 0.0
        %365 = vmatpush1.xpose.msra.mxu0 0.0
        %366 = vmatprep.subr.mxu0 0.0
        %367 = vmatpush1.xpose.msra.mxu0 0.0
        %368 = vmatprep.subr.mxu0 0.0
        %369 = vmatpush1.xpose.msra.mxu0 0.0
        %370 = vmatprep.subr.mxu0 0.0
        %371 = vmatpush1.xpose.msra.mxu0 0.0
        %372 = vmatprep.subr.mxu0 0.0
        %373 = vmatpush1.xpose.msra.mxu0 0.0
        %374 = vmatprep.subr.mxu0 0.0
        %375 = vmatpush1.xpose.msra.mxu0 0.0
        %376 = vmatprep.subr.mxu0 0.0
        %377 = vmatpush1.xpose.msra.mxu0 0.0
        %378 = vmatprep.subr.mxu0 0.0
        %379 = vmatpush1.xpose.msra.mxu0 0.0
        %380 = vmatprep.subr.mxu0 0.0
        %381 = vmatpush1.xpose.msra.mxu0 0.0
        %382 = vmatprep.subr.mxu0 0.0
        %383 = vmatpush1.xpose.msra.mxu0 0.0
        %384 = vmatprep.subr.mxu0 0.0
        %385 = vmatpush1.xpose.msra.mxu0 0.0
        %386 = vmatprep.subr.mxu0 0.0
        %387 = vmatpush1.xpose.msra.mxu0 0.0
        %388 = vmatprep.subr.mxu0 0.0
        %389 = vmatpush1.xpose.msra.mxu0 0.0
        %390 = vmatprep.subr.mxu0 0.0
        %391 = vmatpush1.xpose.msra.mxu0 0.0
        %392 = vmatprep.subr.mxu0 0.0
        %393 = vmatpush1.xpose.msra.mxu0 0.0
        %394 = vmatprep.subr.mxu0 0.0
        %395 = vmatpush1.xpose.msra.mxu0 0.0
        %396 = vmatprep.subr.mxu0 0.0
        %397 = vmatpush1.xpose.msra.mxu0 0.0
        %398 = vmatprep.subr.mxu0 0.0
        %399 = vmatpush1.xpose.msra.mxu0 0.0
        %400 = vmatprep.subr.mxu0 0.0
        %401 = vmatpush1.xpose.msra.mxu0 0.0
        %402 = vmatprep.subr.mxu0 0.0
        %403 = vmatpush1.xpose.msra.mxu0 0.0
        %404 = vmatprep.subr.mxu0 0.0
        %405 = vmatpush1.xpose.msra.mxu0 0.0
        %406 = vmatprep.subr.mxu0 0.0
        %407 = vmatpush1.xpose.msra.mxu0 0.0
        %408 = vmatprep.subr.mxu0 0.0
        %409 = vmatpush1.xpose.msra.mxu0 0.0
        %410 = vmatprep.subr.mxu0 0.0
        %411 = vmatpush1.xpose.msra.mxu0 0.0
        %412 = vmatprep.subr.mxu0 0.0
        %413 = vmatpush1.xpose.msra.mxu0 0.0
        %414 = vmatprep.subr.mxu0 0.0
        %415 = vmatpush1.xpose.msra.mxu0 0.0
        %416 = vmatprep.subr.mxu0 0.0
        %417 = vmatpush1.xpose.msra.mxu0 0.0
        %418 = vmatprep.mubr.f32.mxu0 0.0
        %419 = vmatmul.mubr.f32.gmra.mrb[0].mxu0 %v349
        %v420 = vpop.f32.mrb[0].mxu0
        %v421 = vadd.f32 0.0, %v420
        %v422 = vpop.f32.mrb[0].mxu0
        %423 = vdwg.mxu0
        %v425 = vsel %vm347, %v344, 0
        %427 = vmatprep.subr.mxu0 0.0
        %428 = vmatpush1.xpose.msra.mxu0 %v352
        %429 = vmatprep.subr.mxu0 0.0
        %430 = vmatpush1.xpose.msra.mxu0 0.0
        %431 = vmatprep.subr.mxu0 0.0
        %432 = vmatpush1.xpose.msra.mxu0 0.0
        %433 = vmatprep.subr.mxu0 0.0
        %434 = vmatpush1.xpose.msra.mxu0 0.0
        %435 = vmatprep.subr.mxu0 0.0
        %436 = vmatpush1.xpose.msra.mxu0 0.0
        %437 = vmatprep.subr.mxu0 0.0
        %438 = vmatpush1.xpose.msra.mxu0 0.0
        %439 = vmatprep.subr.mxu0 0.0
        %440 = vmatpush1.xpose.msra.mxu0 0.0
        %441 = vmatprep.subr.mxu0 0.0
        %442 = vmatpush1.xpose.msra.mxu0 0.0
        %443 = vmatprep.subr.mxu0 0.0
        %444 = vmatpush1.xpose.msra.mxu0 0.0
        %445 = vmatprep.subr.mxu0 0.0
        %446 = vmatpush1.xpose.msra.mxu0 0.0
        %447 = vmatprep.subr.mxu0 0.0
        %448 = vmatpush1.xpose.msra.mxu0 0.0
        %449 = vmatprep.subr.mxu0 0.0
        %450 = vmatpush1.xpose.msra.mxu0 0.0
        %451 = vmatprep.subr.mxu0 0.0
        %452 = vmatpush1.xpose.msra.mxu0 0.0
        %453 = vmatprep.subr.mxu0 0.0
        %454 = vmatpush1.xpose.msra.mxu0 0.0
        %455 = vmatprep.subr.mxu0 0.0
        %456 = vmatpush1.xpose.msra.mxu0 0.0
        %457 = vmatprep.subr.mxu0 0.0
        %458 = vmatpush1.xpose.msra.mxu0 0.0
        %459 = vmatprep.subr.mxu0 0.0
        %460 = vmatpush1.xpose.msra.mxu0 0.0
        %461 = vmatprep.subr.mxu0 0.0
        %462 = vmatpush1.xpose.msra.mxu0 0.0
        %463 = vmatprep.subr.mxu0 0.0
        %464 = vmatpush1.xpose.msra.mxu0 0.0
        %465 = vmatprep.subr.mxu0 0.0
        %466 = vmatpush1.xpose.msra.mxu0 0.0
        %467 = vmatprep.subr.mxu0 0.0
        %468 = vmatpush1.xpose.msra.mxu0 0.0
        %469 = vmatprep.subr.mxu0 0.0
        %470 = vmatpush1.xpose.msra.mxu0 0.0
        %471 = vmatprep.subr.mxu0 0.0
        %472 = vmatpush1.xpose.msra.mxu0 0.0
        %473 = vmatprep.subr.mxu0 0.0
        %474 = vmatpush1.xpose.msra.mxu0 0.0
        %475 = vmatprep.subr.mxu0 0.0
        %476 = vmatpush1.xpose.msra.mxu0 0.0
        %477 = vmatprep.subr.mxu0 0.0
        %478 = vmatpush1.xpose.msra.mxu0 0.0
        %479 = vmatprep.subr.mxu0 0.0
        %480 = vmatpush1.xpose.msra.mxu0 0.0
        %481 = vmatprep.subr.mxu0 0.0
        %482 = vmatpush1.xpose.msra.mxu0 0.0
        %483 = vmatprep.subr.mxu0 0.0
        %484 = vmatpush1.xpose.msra.mxu0 0.0
        %485 = vmatprep.subr.mxu0 0.0
        %486 = vmatpush1.xpose.msra.mxu0 0.0
        %487 = vmatprep.subr.mxu0 0.0
        %488 = vmatpush1.xpose.msra.mxu0 0.0
        %489 = vmatprep.subr.mxu0 0.0
        %490 = vmatpush1.xpose.msra.mxu0 0.0
        %491 = vmatprep.mubr.f32.mxu0 0.0
        %492 = vmatmul.mubr.f32.gmra.mrb[0].mxu0 %v425
        %v493 = vpop.f32.mrb[0].mxu0
        %v494 = vadd.f32 0.0, %v493
        %v495 = vpop.f32.mrb[0].mxu0
        %496 = vdwg.mxu0
        %v497 = vmul.f32 %v421, 0.25
        %v498 = vmul.f32 %v494, 0.25
        %v499 = vlaneseq
        %v500 = vshrl.u32 %v499, 7
        %v501 = vstv %s337
        %v502 = vadd.s32 %v500, %v501
        %v503 = vlaneseq
        %v504 = vand.u32 %v503, 127
        %v505 = vstv %s336
        %v506 = vadd.s32 %v504, %v505
        %vm507 = vcmp.le.s32.totalorder %v506, %v502
        %v508 = vsel %vm507, %v497, -1e+30
        %v509 = vsel %vm507, %v498, -1e+30
        %v510 = vld [vmem:[#allocation2] sm:$0xff]
        %v511 = vld [vmem:[#allocation2 + $0x8] sm:$0xff]
        %vm512 = vcmask 64512
        %v513 = vsel %vm512, %v508, -inf
        %514 = vmax.xlane.f32.xlu0 %v513
        %v515 = vpop.xlane.xlu0 %514
        %v516 = vsel %vm512, %v509, -inf
        %517 = vmax.xlane.f32.xlu0 %v516
        %v518 = vpop.xlane.xlu0 %517
        %v519 = vmax.f32 %v510, %v515
        %v520 = vmax.f32 %v511, %v518
        %v521 = vsub.f32 %v510, %v519
        %v522 = vsub.f32 %v511, %v520
        %v523 = vmul.f32 %v521, 1.442695
        %v524 = vpow.pop %v523
        %v525 = vmul.f32 %v522, 1.442695
        %v526 = vpow.pop %v525
        %528 = vset.pattern.permute.xlu0 0
        %529 = vperm.xlu0 %528, %v519
        %v530 = vpop.permute.xlu0 %529
        %533 = vset.pattern.permute.xlu0 0
        %534 = vperm.xlu0 %533, %v520
        %v535 = vpop.permute.xlu0 %534
        %v537 = vsub.f32 %v508, %v530
        %v538 = vsub.f32 %v509, %v535
        %v539 = vmul.f32 %v537, 1.442695
        %v540 = vpow.pop %v539
        %v541 = vmul.f32 %v538, 1.442695
        %v542 = vpow.pop %v541
        %v543 = vld [vmem:[#allocation3] sm:$0xff]
        %v544 = vld [vmem:[#allocation3 + $0x8] sm:$0xff]
        %v545 = vmul.f32 %v524, %v543
        %v546 = vmul.f32 %v526, %v544
        %v547 = vsel %vm512, %v540, 0.0
        %548 = vadd.xlane.f32.xlu0 %v547
        %v549 = vpop.xlane.xlu0 %548
        %v550 = vsel %vm512, %v542, 0.0
        %551 = vadd.xlane.f32.xlu0 %v550
        %v552 = vpop.xlane.xlu0 %551
        %v553 = vadd.f32 %v545, %v549
        %v554 = vadd.f32 %v546, %v552
        %vm555 = vcmask 7168
        %556 = vst.msk [vmem:[#allocation3] sm:$0xff] %vm555, %v553
        %557 = vst.msk [vmem:[#allocation3 + $0x8] sm:$0xff] %vm555, %v554
        %v558 = vld [vmem:[#allocation4] sm:$0xff]
        %v559 = vld [vmem:[#allocation4 + $0x8] sm:$0xff]
        %561 = vset.pattern.permute.xlu0 0
        %562 = vperm.xlu0 %561, %v524
        %v563 = vpop.permute.xlu0 %562
        %566 = vset.pattern.permute.xlu0 0
        %567 = vperm.xlu0 %566, %v526
        %v568 = vpop.permute.xlu0 %567
        %v570 = vmul.f32 %v563, %v558
        %v571 = vmul.f32 %v568, %v559
        %v573 = vsel %vm512, %v540, 0
        %575 = vmatprep.subr.mxu0 0.0
        %576 = vmatpush1.msra.mxu0 %v346
        %577 = vmatprep.subr.mxu0 0.0
        %578 = vmatpush1.msra.mxu0 0.0
        %579 = vmatprep.subr.mxu0 0.0
        %580 = vmatpush1.msra.mxu0 0.0
        %581 = vmatprep.subr.mxu0 0.0
        %582 = vmatpush1.msra.mxu0 0.0
        %583 = vmatprep.subr.mxu0 0.0
        %584 = vmatpush1.msra.mxu0 0.0
        %585 = vmatprep.subr.mxu0 0.0
        %586 = vmatpush1.msra.mxu0 0.0
        %587 = vmatprep.subr.mxu0 0.0
        %588 = vmatpush1.msra.mxu0 0.0
        %589 = vmatprep.subr.mxu0 0.0
        %590 = vmatpush1.msra.mxu0 0.0
        %591 = vmatprep.subr.mxu0 0.0
        %592 = vmatpush1.msra.mxu0 0.0
        %593 = vmatprep.subr.mxu0 0.0
        %594 = vmatpush1.msra.mxu0 0.0
        %595 = vmatprep.subr.mxu0 0.0
        %596 = vmatpush1.msra.mxu0 0.0
        %597 = vmatprep.subr.mxu0 0.0
        %598 = vmatpush1.msra.mxu0 0.0
        %599 = vmatprep.subr.mxu0 0.0
        %600 = vmatpush1.msra.mxu0 0.0
        %601 = vmatprep.subr.mxu0 0.0
        %602 = vmatpush1.msra.mxu0 0.0
        %603 = vmatprep.subr.mxu0 0.0
        %604 = vmatpush1.msra.mxu0 0.0
        %605 = vmatprep.subr.mxu0 0.0
        %606 = vmatpush1.msra.mxu0 0.0
        %607 = vmatprep.subr.mxu0 0.0
        %608 = vmatpush1.msra.mxu0 0.0
        %609 = vmatprep.subr.mxu0 0.0
        %610 = vmatpush1.msra.mxu0 0.0
        %611 = vmatprep.subr.mxu0 0.0
        %612 = vmatpush1.msra.mxu0 0.0
        %613 = vmatprep.subr.mxu0 0.0
        %614 = vmatpush1.msra.mxu0 0.0
        %615 = vmatprep.subr.mxu0 0.0
        %616 = vmatpush1.msra.mxu0 0.0
        %617 = vmatprep.subr.mxu0 0.0
        %618 = vmatpush1.msra.mxu0 0.0
        %619 = vmatprep.subr.mxu0 0.0
        %620 = vmatpush1.msra.mxu0 0.0
        %621 = vmatprep.subr.mxu0 0.0
        %622 = vmatpush1.msra.mxu0 0.0
        %623 = vmatprep.subr.mxu0 0.0
        %624 = vmatpush1.msra.mxu0 0.0
        %625 = vmatprep.subr.mxu0 0.0
        %626 = vmatpush1.msra.mxu0 0.0
        %627 = vmatprep.subr.mxu0 0.0
        %628 = vmatpush1.msra.mxu0 0.0
        %629 = vmatprep.subr.mxu0 0.0
        %630 = vmatpush1.msra.mxu0 0.0
        %631 = vmatprep.subr.mxu0 0.0
        %632 = vmatpush1.msra.mxu0 0.0
        %633 = vmatprep.subr.mxu0 0.0
        %634 = vmatpush1.msra.mxu0 0.0
        %635 = vmatprep.subr.mxu0 0.0
        %636 = vmatpush1.msra.mxu0 0.0
        %637 = vmatprep.subr.mxu0 0.0
        %638 = vmatpush1.msra.mxu0 0.0
        %639 = vmatprep.mubr.f32.mxu0 0.0
        %640 = vmatmul.mubr.f32.gmra.mrb[0].mxu0 %v573
        %v641 = vpop.f32.mrb[0].mxu0
        %v642 = vadd.f32 0.0, %v641
        %v643 = vpop.f32.mrb[0].mxu0
        %644 = vdwg.mxu0
        %v646 = vsel %vm512, %v542, 0
        %648 = vmatprep.subr.mxu0 0.0
        %649 = vmatpush1.msra.mxu0 %v346
        %650 = vmatprep.subr.mxu0 0.0
        %651 = vmatpush1.msra.mxu0 0.0
        %652 = vmatprep.subr.mxu0 0.0
        %653 = vmatpush1.msra.mxu0 0.0
        %654 = vmatprep.subr.mxu0 0.0
        %655 = vmatpush1.msra.mxu0 0.0
        %656 = vmatprep.subr.mxu0 0.0
        %657 = vmatpush1.msra.mxu0 0.0
        %658 = vmatprep.subr.mxu0 0.0
        %659 = vmatpush1.msra.mxu0 0.0
        %660 = vmatprep.subr.mxu0 0.0
        %661 = vmatpush1.msra.mxu0 0.0
        %662 = vmatprep.subr.mxu0 0.0
        %663 = vmatpush1.msra.mxu0 0.0
        %664 = vmatprep.subr.mxu0 0.0
        %665 = vmatpush1.msra.mxu0 0.0
        %666 = vmatprep.subr.mxu0 0.0
        %667 = vmatpush1.msra.mxu0 0.0
        %668 = vmatprep.subr.mxu0 0.0
        %669 = vmatpush1.msra.mxu0 0.0
        %670 = vmatprep.subr.mxu0 0.0
        %671 = vmatpush1.msra.mxu0 0.0
        %672 = vmatprep.subr.mxu0 0.0
        %673 = vmatpush1.msra.mxu0 0.0
        %674 = vmatprep.subr.mxu0 0.0
        %675 = vmatpush1.msra.mxu0 0.0
        %676 = vmatprep.subr.mxu0 0.0
        %677 = vmatpush1.msra.mxu0 0.0
        %678 = vmatprep.subr.mxu0 0.0
        %679 = vmatpush1.msra.mxu0 0.0
        %680 = vmatprep.subr.mxu0 0.0
        %681 = vmatpush1.msra.mxu0 0.0
        %682 = vmatprep.subr.mxu0 0.0
        %683 = vmatpush1.msra.mxu0 0.0
        %684 = vmatprep.subr.mxu0 0.0
        %685 = vmatpush1.msra.mxu0 0.0
        %686 = vmatprep.subr.mxu0 0.0
        %687 = vmatpush1.msra.mxu0 0.0
        %688 = vmatprep.subr.mxu0 0.0
        %689 = vmatpush1.msra.mxu0 0.0
        %690 = vmatprep.subr.mxu0 0.0
        %691 = vmatpush1.msra.mxu0 0.0
        %692 = vmatprep.subr.mxu0 0.0
        %693 = vmatpush1.msra.mxu0 0.0
        %694 = vmatprep.subr.mxu0 0.0
        %695 = vmatpush1.msra.mxu0 0.0
        %696 = vmatprep.subr.mxu0 0.0
        %697 = vmatpush1.msra.mxu0 0.0
        %698 = vmatprep.subr.mxu0 0.0
        %699 = vmatpush1.msra.mxu0 0.0
        %700 = vmatprep.subr.mxu0 0.0
        %701 = vmatpush1.msra.mxu0 0.0
        %702 = vmatprep.subr.mxu0 0.0
        %703 = vmatpush1.msra.mxu0 0.0
        %704 = vmatprep.subr.mxu0 0.0
        %705 = vmatpush1.msra.mxu0 0.0
        %706 = vmatprep.subr.mxu0 0.0
        %707 = vmatpush1.msra.mxu0 0.0
        %708 = vmatprep.subr.mxu0 0.0
        %709 = vmatpush1.msra.mxu0 0.0
        %710 = vmatprep.subr.mxu0 0.0
        %711 = vmatpush1.msra.mxu0 0.0
        %712 = vmatprep.mubr.f32.mxu0 0.0
        %713 = vmatmul.mubr.f32.gmra.mrb[0].mxu0 %v646
        %v714 = vpop.f32.mrb[0].mxu0
        %v715 = vadd.f32 0.0, %v714
        %v716 = vpop.f32.mrb[0].mxu0
        %717 = vdwg.mxu0
        %v718 = vadd.f32 %v570, %v642
        %v719 = vadd.f32 %v571, %v715
        %720 = vst.msk [vmem:[#allocation4] sm:$0xff] %vm347, %v718
        %721 = vst.msk [vmem:[#allocation4 + $0x8] sm:$0xff] %vm347, %v719
        %722 = vst.msk [vmem:[#allocation2] sm:$0xff] %vm555, %v519
        %723 = vst.msk [vmem:[#allocation2 + $0x8] sm:$0xff] %vm555, %v520
      $region40: #{dolly_decoder_layer.10} parent=31 // pred_fallthru
        _
      // Predicated region
      $region41: #{dolly_decoder_layer.10} parent=31 // pred_check
        %p724 = pneg %p324
      $region42: #{dolly_decoder_layer.10} parent=31 // pred_check_branch
        %726 = sbr.rel (%p724) target = $region44
      $region43: #{dolly_decoder_layer.10} parent=31 // pred_region
        %v727 = vld [vmem:[#allocation3] sm:$0xff]
        %v728 = vld [vmem:[#allocation3 + $0x8] sm:$0xff]
        %v729 = vrcp.pop %v727
        %v730 = vrcp.pop %v728
        %v731 = vld [vmem:[#allocation4] sm:$0xff]
        %v732 = vld [vmem:[#allocation4 + $0x8] sm:$0xff]
        %734 = vset.pattern.permute.xlu0 0
        %735 = vperm.xlu0 %734, %v729
        %v736 = vpop.permute.xlu0 %735
        %739 = vset.pattern.permute.xlu0 0
        %740 = vperm.xlu0 %739, %v730
        %v741 = vpop.permute.xlu0 %740
        %v743 = vmul.f32 %v731, %v736
        %v744 = vmul.f32 %v732, %v741
        %vm745 = vcmask 130048
        %746 = vst.msk [vmem:[%s323] sm:$0xff] %vm745, %v743
        %747 = vst.msk [vmem:[%s323 + $0x8] sm:$0xff] %vm745, %v744
      $region44: #{dolly_decoder_layer.10} parent=31 // pred_fallthru
        _
      %p748 = scmp.lt.s32.totalorder %s20, 1
      %s749 = scalar_select %p748, %s20, 1
      %p750 = scmp.lt.s32.totalorder %s21, 1
      %s751 = scalar_select %p750, %s21, 1
      %p752 = scmp.lt.s32.totalorder %s22, 0
      %s753 = scalar_select %p752, %s22, 0
      %s754 = smul.addr %s751, 2
      %s755 = sadd.s32 %s753, %s754
      %s756 = smul.addr %s749, 4
      %s757 = sadd.s32 %s755, %s756
      %s758 = smul.addr %s757, 8
      %s759 = scalar_lea.vmem %s3, %s758
      // Predicated region
      $region45: #{dolly_decoder_layer.10} parent=31 // pred_check
        %p760 = pneg %p152
      $region46: #{dolly_decoder_layer.10} parent=31 // pred_check_branch
        %762 = sbr.rel (%p760) target = $region48
      $region47: #{dolly_decoder_layer.10} parent=31 // pred_region
        _
      $region48: #{dolly_decoder_layer.10} parent=31 // pred_fallthru
        _
    $region32: #{dolly_decoder_layer.10} parent=5 // pred_fallthru
      _
    %p763 = scmp.le.s32.totalorder 2, %s9
    // Predicated region
    $region49: #{dolly_decoder_layer.10} parent=5 // pred_check
      %p764 = pneg %p763
    $region50: #{dolly_decoder_layer.10} parent=5 // pred_check_branch
      %766 = sbr.rel (%p764) target = $region52
    $region51: #{dolly_decoder_layer.10} parent=5 // pred_region
      %s767 = ssub.s32 %s9, 2
      // Predicated region
      $region53: #{dolly_decoder_layer.10} parent=51 // pred_check
        %p768 = pneg %p158
      $region54: #{dolly_decoder_layer.10} parent=51 // pred_check_branch
        %770 = sbr.rel (%p768) target = $region56
      $region55: #{dolly_decoder_layer.10} parent=51 // pred_region
        %p771 = scmp.lt.s32.totalorder %s24, 1
        %s772 = scalar_select %p771, %s24, 1
        %p773 = scmp.lt.s32.totalorder %s25, 1
        %s774 = scalar_select %p773, %s25, 1
        %p775 = scmp.lt.s32.totalorder %s26, 0
        %s776 = scalar_select %p775, %s26, 0
        %s777 = smul.addr %s774, 2
        %s778 = sadd.s32 %s776, %s777
        %s779 = smul.addr %s772, 4
        %s780 = sadd.s32 %s778, %s779
        %s781 = smul.addr %s780, 8
        %s782 = scalar_lea.vmem %s3, %s781
      $region56: #{dolly_decoder_layer.10} parent=51 // pred_fallthru
        _
    $region52: #{dolly_decoder_layer.10} parent=5 // pred_fallthru
      _
  $region6: #{dolly_decoder_layer.10} parent=0 // loop_footer
    %s13 = sadd.s32 1, %s9
  $region7: #{dolly_decoder_layer.10} parent=0 // loop_footer_branch
    %8 = sbr.rel target = $region3
  $region8: #{dolly_decoder_layer.10} parent=0 // loop_exit
    _

// kernel: dolly_decoder_layer.11
$region0: #{dolly_decoder_layer.11}
  #allocation0 [shape = 'u32[]', space=smem, size = 0x4, offset = 0x4, fixed_abs, tag = 'smem constant byte address 0x4 - core index']
  #allocation1 [shape = 'u32[144,128]{1,0:T(1,128)}', space=vmem, size = 0x12000, scoped, tag = 'internal scratch']
  #allocation2 [shape = 'f32[16,64]{1,0:T(8,128)}', space=vmem, size = 0x2000, scoped, tag = 'scratch operand']
  %s0 = inlined_call_operand.vmem [shape: f32[16,64], index: 0, kind: input, shape index: {}]
  %s1 = inlined_call_operand.vmem [shape: f32[64,64], index: 1, kind: input, shape index: {}]
  %s2 = inlined_call_operand.vmem [shape: f32[16,64], index: 2, kind: input, shape index: {}]
  %s3 = inlined_call_operand.vmem [shape: f32[16,64], index: 3, kind: output, shape index: {}]
  %s4 = sld [smem:[#allocation0]]
  $region30: #{dolly_decoder_layer.11} parent=0
    _
  %s6 = ssub.s32 1, %s4
  %s7 = scalar_select 0, %s6, %s4
  // Predicated region
  $region2: #{dolly_decoder_layer.11} parent=0 // pred_check
    _
  $region3: #{dolly_decoder_layer.11} parent=0 // pred_check_branch
    %9 = sbr.rel (0) target = $region5
  $region4: #{dolly_decoder_layer.11} parent=0 // pred_region
    _
  $region5: #{dolly_decoder_layer.11} parent=0 // pred_fallthru
    _
  // Predicated region
  $region6: #{dolly_decoder_layer.11} parent=0 // pred_check
    _
  $region7: #{dolly_decoder_layer.11} parent=0 // pred_check_branch
    %11 = sbr.rel (0) target = $region9
  $region8: #{dolly_decoder_layer.11} parent=0 // pred_region
    _
  $region9: #{dolly_decoder_layer.11} parent=0 // pred_fallthru
    _
  // Predicated region
  $region10: #{dolly_decoder_layer.11} parent=0 // pred_check
    _
  $region11: #{dolly_decoder_layer.11} parent=0 // pred_check_branch
    %13 = sbr.rel (0) target = $region13
  $region12: #{dolly_decoder_layer.11} parent=0 // pred_region
    _
  $region13: #{dolly_decoder_layer.11} parent=0 // pred_fallthru
    _
  %p14 = scmp.eq.s32.totalorder 0, 0
  // Predicated region
  $region14: #{dolly_decoder_layer.11} parent=0 // pred_check
    %p15 = pneg %p14
  $region15: #{dolly_decoder_layer.11} parent=0 // pred_check_branch
    %17 = sbr.rel (%p15) target = $region17
  $region16: #{dolly_decoder_layer.11} parent=0 // pred_region
    %vm18 = vcmask 523264
    %19 = vst.msk [vmem:[#allocation2] sm:$0xff] %vm18, 0.0
    %20 = vst.msk [vmem:[#allocation2 + $0x8] sm:$0xff] %vm18, 0.0
  $region17: #{dolly_decoder_layer.11} parent=0 // pred_fallthru
    _
  %v21 = vld [vmem:[%s0] sm:$0xff]
  %v22 = vld [vmem:[%s0 + $0x8] sm:$0xff]
  %v23 = vld [vmem:[%s1] sm:$0xff]
  %v24 = vld [vmem:[%s1 + $0x8] sm:$0xff]
  %v25 = vld [vmem:[%s1 + $0x10] sm:$0xff]
  %v26 = vld [vmem:[%s1 + $0x18] sm:$0xff]
  %v27 = vld [vmem:[%s1 + $0x20] sm:$0xff]
  %v28 = vld [vmem:[%s1 + $0x28] sm:$0xff]
  %v29 = vld [vmem:[%s1 + $0x30] sm:$0xff]
  %v30 = vld [vmem:[%s1 + $0x38] sm:$0xff]
  %v31 = vld [vmem:[#allocation2] sm:$0xff]
  %v32 = vld [vmem:[#allocation2 + $0x8] sm:$0xff]
  %vm33 = vcmask 523264
  %v35 = vsel %vm33, %v21, 0
  %v38 = vsel %vm33, %v22, 0
  %40 = vmatprep.subr.mxu0 0.0
  %41 = vmatpush1.msra.mxu0 %v23
  %42 = vmatprep.subr.mxu0 0.0
  %43 = vmatpush1.msra.mxu0 %v24
  %44 = vmatprep.subr.mxu0 0.0
  %45 = vmatpush1.msra.mxu0 %v25
  %46 = vmatprep.subr.mxu0 0.0
  %47 = vmatpush1.msra.mxu0 %v26
  %48 = vmatprep.subr.mxu0 0.0
  %49 = vmatpush1.msra.mxu0 %v27
  %50 = vmatprep.subr.mxu0 0.0
  %51 = vmatpush1.msra.mxu0 %v28
  %52 = vmatprep.subr.mxu0 0.0
  %53 = vmatpush1.msra.mxu0 %v29
  %54 = vmatprep.subr.mxu0 0.0
  %55 = vmatpush1.msra.mxu0 %v30
  %56 = vmatprep.subr.mxu0 0.0
  %57 = vmatpush1.msra.mxu0 0.0
  %58 = vmatprep.subr.mxu0 0.0
  %59 = vmatpush1.msra.mxu0 0.0
  %60 = vmatprep.subr.mxu0 0.0
  %61 = vmatpush1.msra.mxu0 0.0
  %62 = vmatprep.subr.mxu0 0.0
  %63 = vmatpush1.msra.mxu0 0.0
  %64 = vmatprep.subr.mxu0 0.0
  %65 = vmatpush1.msra.mxu0 0.0
  %66 = vmatprep.subr.mxu0 0.0
  %67 = vmatpush1.msra.mxu0 0.0
  %68 = vmatprep.subr.mxu0 0.0
  %69 = vmatpush1.msra.mxu0 0.0
  %70 = vmatprep.subr.mxu0 0.0
  %71 = vmatpush1.msra.mxu0 0.0
  %72 = vmatprep.subr.mxu0 0.0
  %73 = vmatpush1.msra.mxu0 0.0
  %74 = vmatprep.subr.mxu0 0.0
  %75 = vmatpush1.msra.mxu0 0.0
  %76 = vmatprep.subr.mxu0 0.0
  %77 = vmatpush1.msra.mxu0 0.0
  %78 = vmatprep.subr.mxu0 0.0
  %79 = vmatpush1.msra.mxu0 0.0
  %80 = vmatprep.subr.mxu0 0.0
  %81 = vmatpush1.msra.mxu0 0.0
  %82 = vmatprep.subr.mxu0 0.0
  %83 = vmatpush1.msra.mxu0 0.0
  %84 = vmatprep.subr.mxu0 0.0
  %85 = vmatpush1.msra.mxu0 0.0
  %86 = vmatprep.subr.mxu0 0.0
  %87 = vmatpush1.msra.mxu0 0.0
  %88 = vmatprep.subr.mxu0 0.0
  %89 = vmatpush1.msra.mxu0 0.0
  %90 = vmatprep.subr.mxu0 0.0
  %91 = vmatpush1.msra.mxu0 0.0
  %92 = vmatprep.subr.mxu0 0.0
  %93 = vmatpush1.msra.mxu0 0.0
  %94 = vmatprep.subr.mxu0 0.0
  %95 = vmatpush1.msra.mxu0 0.0
  %96 = vmatprep.subr.mxu0 0.0
  %97 = vmatpush1.msra.mxu0 0.0
  %98 = vmatprep.subr.mxu0 0.0
  %99 = vmatpush1.msra.mxu0 0.0
  %100 = vmatprep.subr.mxu0 0.0
  %101 = vmatpush1.msra.mxu0 0.0
  %102 = vmatprep.subr.mxu0 0.0
  %103 = vmatpush1.msra.mxu0 0.0
  %104 = vmatprep.mubr.f32.mxu0 0.0
  %105 = vmatmul.mubr.f32.gmra.mrb[0].mxu0 %v35
  %v106 = vpop.f32.mrb[0].mxu0
  %v107 = vadd.f32 0.0, %v106
  %v108 = vpop.f32.mrb[0].mxu0
  %109 = vmatprep.mubr.f32.mxu0 0.0
  %110 = vmatmul.mubr.f32.gmra.mrb[0].mxu0 %v38
  %v111 = vpop.f32.mrb[0].mxu0
  %v112 = vadd.f32 0.0, %v111
  %v113 = vpop.f32.mrb[0].mxu0
  %114 = vdwg.mxu0
  %v115 = vadd.f32 %v31, %v107
  %v116 = vadd.f32 %v32, %v112
  %117 = vst.msk [vmem:[#allocation2] sm:$0xff] %vm33, %v115
  %118 = vst.msk [vmem:[#allocation2 + $0x8] sm:$0xff] %vm33, %v116
  // Predicated region
  $region18: #{dolly_decoder_layer.11} parent=0 // pred_check
    %p119 = pneg %p14
  $region19: #{dolly_decoder_layer.11} parent=0 // pred_check_branch
    %121 = sbr.rel (%p119) target = $region21
  $region20: #{dolly_decoder_layer.11} parent=0 // pred_region
    %v122 = vld [vmem:[#allocation2] sm:$0xff]
    %v123 = vld [vmem:[#allocation2 + $0x8] sm:$0xff]
    %v124 = vld [vmem:[%s2] sm:$0xff]
    %v125 = vld [vmem:[%s2 + $0x8] sm:$0xff]
    %v126 = vadd.f32 %v122, %v124
    %v127 = vadd.f32 %v123, %v125
    %128 = vst.msk [vmem:[%s3] sm:$0xff] %vm33, %v126
    %129 = vst.msk [vmem:[%s3 + $0x8] sm:$0xff] %vm33, %v127
  $region21: #{dolly_decoder_layer.11} parent=0 // pred_fallthru
    _
  // Predicated region
  $region22: #{dolly_decoder_layer.11} parent=0 // pred_check
    _
  $region23: #{dolly_decoder_layer.11} parent=0 // pred_check_branch
    %131 = sbr.rel (0) target = $region25
  $region24: #{dolly_decoder_layer.11} parent=0 // pred_region
    _
  $region25: #{dolly_decoder_layer.11} parent=0 // pred_fallthru
    _
  // Predicated region
  $region26: #{dolly_decoder_layer.11} parent=0 // pred_check
    _
  $region27: #{dolly_decoder_layer.11} parent=0 // pred_check_branch
    %133 = sbr.rel (0) target = $region29
  $region28: #{dolly_decoder_layer.11} parent=0 // pred_region
    _
  $region29: #{dolly_decoder_layer.11} parent=0 // pred_fallthru
    _

// kernel: dolly_decoder_layer.13
$region0: #{dolly_decoder_layer.13}
  #allocation0 [shape = 'u32[]', space=smem, size = 0x4, offset = 0x4, fixed_abs, tag = 'smem constant byte address 0x4 - core index']
  #allocation1 [shape = 'u32[144,128]{1,0:T(1,128)}', space=vmem, size = 0x12000, scoped, tag = 'internal scratch']
  #allocation2 [shape = 'f32[16,64]{1,0:T(8,128)}', space=vmem, size = 0x2000, scoped, tag = 'scratch operand']
  %s0 = inlined_call_operand.vmem [shape: f32[16,64], index: 0, kind: input, shape index: {}]
  %s1 = inlined_call_operand.vmem [shape: f32[64,128], index: 1, kind: input, shape index: {}]
  %s2 = inlined_call_operand.vmem [shape: f32[64,128], index: 2, kind: input, shape index: {}]
  %s3 = inlined_call_operand.vmem [shape: f32[128,64], index: 3, kind: input, shape index: {}]
  %s4 = inlined_call_operand.vmem [shape: f32[16,64], index: 4, kind: input, shape index: {}]
  %s5 = inlined_call_operand.hbm [shape: f32[16,64], index: 5, kind: output, shape index: {}]
  %s6 = sld [smem:[#allocation0]]
  $region38: #{dolly_decoder_layer.13} parent=0
    _
  %s8 = ssub.s32 1, %s6
  %s9 = scalar_select 0, %s8, %s6
  $region1: #{dolly_decoder_layer.13} parent=0
    #allocation3 [shape = 'u8[8192]{0}', space=vmem, size = 0x2000, scoped, tag = 'output window, operand 0, single buffered']
    #allocation4 [shape = 's32[1]{0}', space=sflag, size = 0x4, scoped, tag = 'scoped memory for dolly_decoder_layer.13']
    %10 = vsyncpa [#allocation4], 0
    // Predicated region
    $region2: #{dolly_decoder_layer.13} parent=1 // pred_check
      _
    $region3: #{dolly_decoder_layer.13} parent=1 // pred_check_branch
      %12 = sbr.rel (0) target = $region5
    $region4: #{dolly_decoder_layer.13} parent=1 // pred_region
      _
    $region5: #{dolly_decoder_layer.13} parent=1 // pred_fallthru
      _
    // Predicated region
    $region6: #{dolly_decoder_layer.13} parent=1 // pred_check
      _
    $region7: #{dolly_decoder_layer.13} parent=1 // pred_check_branch
      %14 = sbr.rel (0) target = $region9
    $region8: #{dolly_decoder_layer.13} parent=1 // pred_region
      _
    $region9: #{dolly_decoder_layer.13} parent=1 // pred_fallthru
      _
    // Predicated region
    $region10: #{dolly_decoder_layer.13} parent=1 // pred_check
      _
    $region11: #{dolly_decoder_layer.13} parent=1 // pred_check_branch
      %16 = sbr.rel (0) target = $region13
    $region12: #{dolly_decoder_layer.13} parent=1 // pred_region
      _
    $region13: #{dolly_decoder_layer.13} parent=1 // pred_fallthru
      _
    // Predicated region
    $region14: #{dolly_decoder_layer.13} parent=1 // pred_check
      _
    $region15: #{dolly_decoder_layer.13} parent=1 // pred_check_branch
      %18 = sbr.rel (0) target = $region17
    $region16: #{dolly_decoder_layer.13} parent=1 // pred_region
      _
    $region17: #{dolly_decoder_layer.13} parent=1 // pred_fallthru
      _
    // Predicated region
    $region18: #{dolly_decoder_layer.13} parent=1 // pred_check
      _
    $region19: #{dolly_decoder_layer.13} parent=1 // pred_check_branch
      %20 = sbr.rel (0) target = $region21
    $region20: #{dolly_decoder_layer.13} parent=1 // pred_region
      _
    $region21: #{dolly_decoder_layer.13} parent=1 // pred_fallthru
      _
    %p21 = scmp.eq.s32.totalorder 0, 0
    // Predicated region
    $region22: #{dolly_decoder_layer.13} parent=1 // pred_check
      %p22 = pneg %p21
    $region23: #{dolly_decoder_layer.13} parent=1 // pred_check_branch
      %24 = sbr.rel (%p22) target = $region25
    $region24: #{dolly_decoder_layer.13} parent=1 // pred_region
      %vm25 = vcmask 523264
      %26 = vst.msk [vmem:[#allocation2] sm:$0xff] %vm25, 0.0
      %27 = vst.msk [vmem:[#allocation2 + $0x8] sm:$0xff] %vm25, 0.0
    $region25: #{dolly_decoder_layer.13} parent=1 // pred_fallthru
      _
    %v28 = vld [vmem:[%s0] sm:$0xff]
    %v29 = vld [vmem:[%s0 + $0x8] sm:$0xff]
    %v30 = vld [vmem:[%s1] sm:$0xff]
    %v31 = vld [vmem:[%s1 + $0x8] sm:$0xff]
    %v32 = vld [vmem:[%s1 + $0x10] sm:$0xff]
    %v33 = vld [vmem:[%s1 + $0x18] sm:$0xff]
    %v34 = vld [vmem:[%s1 + $0x20] sm:$0xff]
    %v35 = vld [vmem:[%s1 + $0x28] sm:$0xff]
    %v36 = vld [vmem:[%s1 + $0x30] sm:$0xff]
    %v37 = vld [vmem:[%s1 + $0x38] sm:$0xff]
    %v38 = vld [vmem:[%s2] sm:$0xff]
    %v39 = vld [vmem:[%s2 + $0x8] sm:$0xff]
    %v40 = vld [vmem:[%s2 + $0x10] sm:$0xff]
    %v41 = vld [vmem:[%s2 + $0x18] sm:$0xff]
    %v42 = vld [vmem:[%s2 + $0x20] sm:$0xff]
    %v43 = vld [vmem:[%s2 + $0x28] sm:$0xff]
    %v44 = vld [vmem:[%s2 + $0x30] sm:$0xff]
    %v45 = vld [vmem:[%s2 + $0x38] sm:$0xff]
    %v46 = vld [vmem:[%s3] sm:$0xff]
    %v47 = vld [vmem:[%s3 + $0x8] sm:$0xff]
    %v48 = vld [vmem:[%s3 + $0x10] sm:$0xff]
    %v49 = vld [vmem:[%s3 + $0x18] sm:$0xff]
    %v50 = vld [vmem:[%s3 + $0x20] sm:$0xff]
    %v51 = vld [vmem:[%s3 + $0x28] sm:$0xff]
    %v52 = vld [vmem:[%s3 + $0x30] sm:$0xff]
    %v53 = vld [vmem:[%s3 + $0x38] sm:$0xff]
    %v54 = vld [vmem:[%s3 + $0x40] sm:$0xff]
    %v55 = vld [vmem:[%s3 + $0x48] sm:$0xff]
    %v56 = vld [vmem:[%s3 + $0x50] sm:$0xff]
    %v57 = vld [vmem:[%s3 + $0x58] sm:$0xff]
    %v58 = vld [vmem:[%s3 + $0x60] sm:$0xff]
    %v59 = vld [vmem:[%s3 + $0x68] sm:$0xff]
    %v60 = vld [vmem:[%s3 + $0x70] sm:$0xff]
    %v61 = vld [vmem:[%s3 + $0x78] sm:$0xff]
    %vm62 = vcmask 523264
    %v64 = vsel %vm62, %v28, 0
    %v67 = vsel %vm62, %v29, 0
    %69 = vmatprep.subr.mxu0 0.0
    %70 = vmatpush1.msra.mxu0 %v30
    %71 = vmatprep.subr.mxu0 0.0
    %72 = vmatpush1.msra.mxu0 %v31
    %73 = vmatprep.subr.mxu0 0.0
    %74 = vmatpush1.msra.mxu0 %v32
    %75 = vmatprep.subr.mxu0 0.0
    %76 = vmatpush1.msra.mxu0 %v33
    %77 = vmatprep.subr.mxu0 0.0
    %78 = vmatpush1.msra.mxu0 %v34
    %79 = vmatprep.subr.mxu0 0.0
    %80 = vmatpush1.msra.mxu0 %v35
    %81 = vmatprep.subr.mxu0 0.0
    %82 = vmatpush1.msra.mxu0 %v36
    %83 = vmatprep.subr.mxu0 0.0
    %84 = vmatpush1.msra.mxu0 %v37
    %85 = vmatprep.subr.mxu0 0.0
    %86 = vmatpush1.msra.mxu0 0.0
    %87 = vmatprep.subr.mxu0 0.0
    %88 = vmatpush1.msra.mxu0 0.0
    %89 = vmatprep.subr.mxu0 0.0
    %90 = vmatpush1.msra.mxu0 0.0
    %91 = vmatprep.subr.mxu0 0.0
    %92 = vmatpush1.msra.mxu0 0.0
    %93 = vmatprep.subr.mxu0 0.0
    %94 = vmatpush1.msra.mxu0 0.0
    %95 = vmatprep.subr.mxu0 0.0
    %96 = vmatpush1.msra.mxu0 0.0
    %97 = vmatprep.subr.mxu0 0.0
    %98 = vmatpush1.msra.mxu0 0.0
    %99 = vmatprep.subr.mxu0 0.0
    %100 = vmatpush1.msra.mxu0 0.0
    %101 = vmatprep.subr.mxu0 0.0
    %102 = vmatpush1.msra.mxu0 0.0
    %103 = vmatprep.subr.mxu0 0.0
    %104 = vmatpush1.msra.mxu0 0.0
    %105 = vmatprep.subr.mxu0 0.0
    %106 = vmatpush1.msra.mxu0 0.0
    %107 = vmatprep.subr.mxu0 0.0
    %108 = vmatpush1.msra.mxu0 0.0
    %109 = vmatprep.subr.mxu0 0.0
    %110 = vmatpush1.msra.mxu0 0.0
    %111 = vmatprep.subr.mxu0 0.0
    %112 = vmatpush1.msra.mxu0 0.0
    %113 = vmatprep.subr.mxu0 0.0
    %114 = vmatpush1.msra.mxu0 0.0
    %115 = vmatprep.subr.mxu0 0.0
    %116 = vmatpush1.msra.mxu0 0.0
    %117 = vmatprep.subr.mxu0 0.0
    %118 = vmatpush1.msra.mxu0 0.0
    %119 = vmatprep.subr.mxu0 0.0
    %120 = vmatpush1.msra.mxu0 0.0
    %121 = vmatprep.subr.mxu0 0.0
    %122 = vmatpush1.msra.mxu0 0.0
    %123 = vmatprep.subr.mxu0 0.0
    %124 = vmatpush1.msra.mxu0 0.0
    %125 = vmatprep.subr.mxu0 0.0
    %126 = vmatpush1.msra.mxu0 0.0
    %127 = vmatprep.subr.mxu0 0.0
    %128 = vmatpush1.msra.mxu0 0.0
    %129 = vmatprep.subr.mxu0 0.0
    %130 = vmatpush1.msra.mxu0 0.0
    %131 = vmatprep.subr.mxu0 0.0
    %132 = vmatpush1.msra.mxu0 0.0
    %133 = vmatprep.mubr.f32.mxu0 0.0
    %134 = vmatmul.mubr.f32.gmra.mrb[0].mxu0 %v64
    %v135 = vpop.f32.mrb[0].mxu0
    %v136 = vadd.f32 0.0, %v135
    %v137 = vpop.f32.mrb[0].mxu0
    %138 = vmatprep.mubr.f32.mxu0 0.0
    %139 = vmatmul.mubr.f32.gmra.mrb[0].mxu0 %v67
    %v140 = vpop.f32.mrb[0].mxu0
    %v141 = vadd.f32 0.0, %v140
    %v142 = vpop.f32.mrb[0].mxu0
    %143 = vdwg.mxu0
    %144 = vmatprep.subr.mxu0 0.0
    %145 = vmatpush1.msra.mxu0 %v38
    %146 = vmatprep.subr.mxu0 0.0
    %147 = vmatpush1.msra.mxu0 %v39
    %148 = vmatprep.subr.mxu0 0.0
    %149 = vmatpush1.msra.mxu0 %v40
    %150 = vmatprep.subr.mxu0 0.0
    %151 = vmatpush1.msra.mxu0 %v41
    %152 = vmatprep.subr.mxu0 0.0
    %153 = vmatpush1.msra.mxu0 %v42
    %154 = vmatprep.subr.mxu0 0.0
    %155 = vmatpush1.msra.mxu0 %v43
    %156 = vmatprep.subr.mxu0 0.0
    %157 = vmatpush1.msra.mxu0 %v44
    %158 = vmatprep.subr.mxu0 0.0
    %159 = vmatpush1.msra.mxu0 %v45
    %160 = vmatprep.subr.mxu0 0.0
    %161 = vmatpush1.msra.mxu0 0.0
    %162 = vmatprep.subr.mxu0 0.0
    %163 = vmatpush1.msra.mxu0 0.0
    %164 = vmatprep.subr.mxu0 0.0
    %165 = vmatpush1.msra.mxu0 0.0
    %166 = vmatprep.subr.mxu0 0.0
    %167 = vmatpush1.msra.mxu0 0.0
    %168 = vmatprep.subr.mxu0 0.0
    %169 = vmatpush1.msra.mxu0 0.0
    %170 = vmatprep.subr.mxu0 0.0
    %171 = vmatpush1.msra.mxu0 0.0
    %172 = vmatprep.subr.mxu0 0.0
    %173 = vmatpush1.msra.mxu0 0.0
    %174 = vmatprep.subr.mxu0 0.0
    %175 = vmatpush1.msra.mxu0 0.0
    %176 = vmatprep.subr.mxu0 0.0
    %177 = vmatpush1.msra.mxu0 0.0
    %178 = vmatprep.subr.mxu0 0.0
    %179 = vmatpush1.msra.mxu0 0.0
    %180 = vmatprep.subr.mxu0 0.0
    %181 = vmatpush1.msra.mxu0 0.0
    %182 = vmatprep.subr.mxu0 0.0
    %183 = vmatpush1.msra.mxu0 0.0
    %184 = vmatprep.subr.mxu0 0.0
    %185 = vmatpush1.msra.mxu0 0.0
    %186 = vmatprep.subr.mxu0 0.0
    %187 = vmatpush1.msra.mxu0 0.0
    %188 = vmatprep.subr.mxu0 0.0
    %189 = vmatpush1.msra.mxu0 0.0
    %190 = vmatprep.subr.mxu0 0.0
    %191 = vmatpush1.msra.mxu0 0.0
    %192 = vmatprep.subr.mxu0 0.0
    %193 = vmatpush1.msra.mxu0 0.0
    %194 = vmatprep.subr.mxu0 0.0
    %195 = vmatpush1.msra.mxu0 0.0
    %196 = vmatprep.subr.mxu0 0.0
    %197 = vmatpush1.msra.mxu0 0.0
    %198 = vmatprep.subr.mxu0 0.0
    %199 = vmatpush1.msra.mxu0 0.0
    %200 = vmatprep.subr.mxu0 0.0
    %201 = vmatpush1.msra.mxu0 0.0
    %202 = vmatprep.subr.mxu0 0.0
    %203 = vmatpush1.msra.mxu0 0.0
    %204 = vmatprep.subr.mxu0 0.0
    %205 = vmatpush1.msra.mxu0 0.0
    %206 = vmatprep.subr.mxu0 0.0
    %207 = vmatpush1.msra.mxu0 0.0
    %208 = vmatprep.mubr.f32.mxu0 0.0
    %209 = vmatmul.mubr.f32.gmra.mrb[0].mxu0 %v64
    %v210 = vpop.f32.mrb[0].mxu0
    %v211 = vadd.f32 0.0, %v210
    %v212 = vpop.f32.mrb[0].mxu0
    %213 = vmatprep.mubr.f32.mxu0 0.0
    %214 = vmatmul.mubr.f32.gmra.mrb[0].mxu0 %v67
    %v215 = vpop.f32.mrb[0].mxu0
    %v216 = vadd.f32 0.0, %v215
    %v217 = vpop.f32.mrb[0].mxu0
    %218 = vdwg.mxu0
    %v219 = vxor.u32 %v136, 2147483648
    %v220 = vxor.u32 %v141, 2147483648
    %v221 = vmul.f32 %v219, 1.442695
    %v222 = vpow.pop %v221
    %v223 = vmul.f32 %v220, 1.442695
    %v224 = vpow.pop %v223
    %v225 = vadd.f32 %v222, 1.0
    %v226 = vadd.f32 %v224, 1.0
    %v227 = vrcp.pop %v225
    %v228 = vmul.f32 1.0, %v227
    %v229 = vrcp.pop %v226
    %v230 = vmul.f32 1.0, %v229
    %v231 = vmul.f32 %v136, %v228
    %v232 = vmul.f32 %v141, %v230
    %v233 = vmul.f32 %v231, %v211
    %v234 = vmul.f32 %v232, %v216
    %v235 = vld [vmem:[#allocation2] sm:$0xff]
    %v236 = vld [vmem:[#allocation2 + $0x8] sm:$0xff]
    %237 = vmatprep.subr.mxu0 0.0
    %238 = vmatpush1.msra.mxu0 %v46
    %239 = vmatprep.subr.mxu0 0.0
    %240 = vmatpush1.msra.mxu0 %v47
    %241 = vmatprep.subr.mxu0 0.0
    %242 = vmatpush1.msra.mxu0 %v48
    %243 = vmatprep.subr.mxu0 0.0
    %244 = vmatpush1.msra.mxu0 %v49
    %245 = vmatprep.subr.mxu0 0.0
    %246 = vmatpush1.msra.mxu0 %v50
    %247 = vmatprep.subr.mxu0 0.0
    %248 = vmatpush1.msra.mxu0 %v51
    %249 = vmatprep.subr.mxu0 0.0
    %250 = vmatpush1.msra.mxu0 %v52
    %251 = vmatprep.subr.mxu0 0.0
    %252 = vmatpush1.msra.mxu0 %v53
    %253 = vmatprep.subr.mxu0 0.0
    %254 = vmatpush1.msra.mxu0 %v54
    %255 = vmatprep.subr.mxu0 0.0
    %256 = vmatpush1.msra.mxu0 %v55
    %257 = vmatprep.subr.mxu0 0.0
    %258 = vmatpush1.msra.mxu0 %v56
    %259 = vmatprep.subr.mxu0 0.0
    %260 = vmatpush1.msra.mxu0 %v57
    %261 = vmatprep.subr.mxu0 0.0
    %262 = vmatpush1.msra.mxu0 %v58
    %263 = vmatprep.subr.mxu0 0.0
    %264 = vmatpush1.msra.mxu0 %v59
    %265 = vmatprep.subr.mxu0 0.0
    %266 = vmatpush1.msra.mxu0 %v60
    %267 = vmatprep.subr.mxu0 0.0
    %268 = vmatpush1.msra.mxu0 %v61
    %269 = vmatprep.subr.mxu0 0.0
    %270 = vmatpush1.msra.mxu0 0.0
    %271 = vmatprep.subr.mxu0 0.0
    %272 = vmatpush1.msra.mxu0 0.0
    %273 = vmatprep.subr.mxu0 0.0
    %274 = vmatpush1.msra.mxu0 0.0
    %275 = vmatprep.subr.mxu0 0.0
    %276 = vmatpush1.msra.mxu0 0.0
    %277 = vmatprep.subr.mxu0 0.0
    %278 = vmatpush1.msra.mxu0 0.0
    %279 = vmatprep.subr.mxu0 0.0
    %280 = vmatpush1.msra.mxu0 0.0
    %281 = vmatprep.subr.mxu0 0.0
    %282 = vmatpush1.msra.mxu0 0.0
    %283 = vmatprep.subr.mxu0 0.0
    %284 = vmatpush1.msra.mxu0 0.0
    %285 = vmatprep.subr.mxu0 0.0
    %286 = vmatpush1.msra.mxu0 0.0
    %287 = vmatprep.subr.mxu0 0.0
    %288 = vmatpush1.msra.mxu0 0.0
    %289 = vmatprep.subr.mxu0 0.0
    %290 = vmatpush1.msra.mxu0 0.0
    %291 = vmatprep.subr.mxu0 0.0
    %292 = vmatpush1.msra.mxu0 0.0
    %293 = vmatprep.subr.mxu0 0.0
    %294 = vmatpush1.msra.mxu0 0.0
    %295 = vmatprep.subr.mxu0 0.0
    %296 = vmatpush1.msra.mxu0 0.0
    %297 = vmatprep.subr.mxu0 0.0
    %298 = vmatpush1.msra.mxu0 0.0
    %299 = vmatprep.subr.mxu0 0.0
    %300 = vmatpush1.msra.mxu0 0.0
    %301 = vmatprep.mubr.f32.mxu0 0.0
    %302 = vmatmul.mubr.f32.gmra.mrb[0].mxu0 %v233
    %v303 = vpop.f32.mrb[0].mxu0
    %v304 = vadd.f32 0.0, %v303
    %v305 = vpop.f32.mrb[0].mxu0
    %306 = vmatprep.mubr.f32.mxu0 0.0
    %307 = vmatmul.mubr.f32.gmra.mrb[0].mxu0 %v234
    %v308 = vpop.f32.mrb[0].mxu0
    %v309 = vadd.f32 0.0, %v308
    %v310 = vpop.f32.mrb[0].mxu0
    %311 = vdwg.mxu0
    %v312 = vadd.f32 %v235, %v304
    %v313 = vadd.f32 %v236, %v309
    %314 = vst.msk [vmem:[#allocation2] sm:$0xff] %vm62, %v312
    %315 = vst.msk [vmem:[#allocation2 + $0x8] sm:$0xff] %vm62, %v313
    // Predicated region
    $region26: #{dolly_decoder_layer.13} parent=1 // pred_check
      %p316 = pneg %p21
    $region27: #{dolly_decoder_layer.13} parent=1 // pred_check_branch
      %318 = sbr.rel (%p316) target = $region29
    $region28: #{dolly_decoder_layer.13} parent=1 // pred_region
      %v319 = vld [vmem:[#allocation2] sm:$0xff]
      %v320 = vld [vmem:[#allocation2 + $0x8] sm:$0xff]
      %v321 = vld [vmem:[%s4] sm:$0xff]
      %v322 = vld [vmem:[%s4 + $0x8] sm:$0xff]
      %v323 = vadd.f32 %v319, %v321
      %v324 = vadd.f32 %v320, %v322
      %325 = vst.msk [vmem:[#allocation3] sm:$0xff] %vm62, %v323
      %326 = vst.msk [vmem:[#allocation3 + $0x8] sm:$0xff] %vm62, %v324
    $region29: #{dolly_decoder_layer.13} parent=1 // pred_fallthru
      _
    // Predicated region
    $region30: #{dolly_decoder_layer.13} parent=1 // pred_check
      _
    $region31: #{dolly_decoder_layer.13} parent=1 // pred_check_branch
      %328 = sbr.rel (0) target = $region33
    $region32: #{dolly_decoder_layer.13} parent=1 // pred_region
      %s330 = ssub.s32 256, 256
      %331 = vsyncadd [#allocation4], %s330
      %s332 = sshll.u32 [#allocation3], 4
      %s333 = int_to_ptr.vmem [resolvable:$true] %s332
      %338 = dma.vmem_to_hbm [thread:$0]  %s333, 256, %s5, [#allocation4], 128, 128, 8
    $region33: #{dolly_decoder_layer.13} parent=1 // pred_fallthru
      _
    // Predicated region
    $region34: #{dolly_decoder_layer.13} parent=1 // pred_check
      _
    $region35: #{dolly_decoder_layer.13} parent=1 // pred_check_branch
      %340 = sbr.rel (0) target = $region37
    $region36: #{dolly_decoder_layer.13} parent=1 // pred_region
      %341 = dma.done [#allocation4], 256
    $region37: #{dolly_decoder_layer.13} parent=1 // pred_fallthru
      _
    %342 = vsyncpa [#allocation4], 1

</llo_original>
